<compile_context>
chip_gen: v5e
topology: v5e:2x2
jax: 0.10.0
libtpu: 0.0.40
codegen_flags: <defaults>
</compile_context>

<pallas_src>
import functools

import numpy as np
import jax
import jax.numpy as jnp
from jax import lax
from jax.experimental import pallas as pl
from jax.experimental.pallas import tpu as pltpu

_KERNELS = {
    'linear': [1 / 8, 3 / 8, 3 / 8, 1 / 8],
    'cubic': [-0.01171875, -0.03515625, 0.11328125, 0.43359375,
              0.43359375, 0.11328125, -0.03515625, -0.01171875],
    'lanczos3': [0.003689131001010537, 0.015056144446134567, -0.03399861603975296,
                 -0.066637322306633, 0.13550527393817902, 0.44638532400131226,
                 0.44638532400131226, 0.13550527393817902, -0.066637322306633,
                 -0.03399861603975296, 0.015056144446134567, 0.003689131001010537],
}

_PAD_MODES = {'reflect': 'reflect', 'replicate': 'edge'}   # torch -> numpy/jnp


# ---------------------------------------------------------------------------
# One-time capability probes (tiny pallas_calls, cached).
# ---------------------------------------------------------------------------
@functools.lru_cache(maxsize=None)
def _roll_sign():
    """Sign convention of pltpu.roll relative to jnp.roll (0 if unusable)."""
    def kern(x_ref, o_ref):
        o_ref[...] = pltpu.roll(x_ref[...], 1, axis=1)
    try:
        x = jnp.arange(8 * 128, dtype=jnp.float32).reshape(8, 128)
        out = np.asarray(jax.block_until_ready(
            pl.pallas_call(kern,
                           out_shape=jax.ShapeDtypeStruct((8, 128), jnp.float32))(x)))
        if np.array_equal(out, np.asarray(jnp.roll(x, 1, axis=1))):
            return 1
        if np.array_equal(out, np.asarray(jnp.roll(x, -1, axis=1))):
            return -1
    except Exception:
        pass
    return 0


@functools.lru_cache(maxsize=None)
def _fused_interleave_ok():
    """Whether an in-kernel even/odd lane interleave (stack+reshape) lowers."""
    def kern(a_ref, b_ref, o_ref):
        a, b = a_ref[...], b_ref[...]
        o_ref[...] = jnp.stack([a, b], axis=-1).reshape(a.shape[0], 2 * a.shape[1])
    try:
        a = jnp.arange(8 * 128, dtype=jnp.float32).reshape(8, 128)
        b = a + 0.5
        out = np.asarray(jax.block_until_ready(
            pl.pallas_call(kern,
                           out_shape=jax.ShapeDtypeStruct((8, 256), jnp.float32))(a, b)))
        want = np.asarray(jnp.stack([a, b], axis=-1).reshape(8, 256))
        return bool(np.array_equal(out, want))
    except Exception:
        return False


# ---------------------------------------------------------------------------
# Kernel bodies.
# ---------------------------------------------------------------------------
def _phases(x_ref, halo_ref, taps, rp, roll_sign):
    """Even/odd output phases (f32) for one (rows, T) tile."""
    K = len(taps)
    cp = K - 1                       # conv_transpose1d padding = 2*pad + 1
    x = x_ref[...]                   # (R, T), input dtype (per-tap upcast below)
    h = halo_ref[0]                  # (R, 2*rp): [left halo | right halo]
    R, T = x.shape
    ev = jnp.zeros((R, T), jnp.float32)
    od = jnp.zeros((R, T), jnp.float32)

    # Bulk: every tap is a small static lane shift of the tile (|shift| <= rp <= 3).
    # Only the rp wrapped columns on each side are wrong and get fixed below.
    for k, w in enumerate(taps):
        r = (k + cp) % 2                     # output parity fed by this tap
        off = (r + cp - k) // 2              # offset into the padded tile
        s = (roll_sign * (rp - off)) % T     # normalized positive roll amount
        shifted = x if s == 0 else pltpu.roll(x, s, axis=1)
        contrib = shifted.astype(jnp.float32) * w
        if r == 0:
            ev = ev + contrib
        else:
            od = od + contrib

    # Exact fixup of the rp leftmost / rightmost output columns from the halo
    # and the tile edge columns (a handful of cheap VPU selects).
    col = lax.broadcasted_iota(jnp.int32, (R, T), 1)

    def padded_col(m):
        # Column m of the conceptual padded tile x_pad[:, j*T : j*T + T + 2*rp].
        if m < rp:
            return h[:, m:m + 1]
        if m < T + rp:
            return x[:, m - rp:m - rp + 1]
        return h[:, rp + (m - T - rp):rp + (m - T - rp) + 1]

    edge_cols = sorted(set(list(range(rp)) + [T - rp + i for i in range(rp)]))
    for c in edge_cols:
        ev_c = jnp.zeros((R, 1), jnp.float32)
        od_c = jnp.zeros((R, 1), jnp.float32)
        for k, w in enumerate(taps):
            r = (k + cp) % 2
            off = (r + cp - k) // 2
            v = padded_col(c + off).astype(jnp.float32) * w
            if r == 0:
                ev_c = ev_c + v
            else:
                od_c = od_c + v
        ev = jnp.where(col == c, ev_c, ev)
        od = jnp.where(col == c, od_c, od)
    return ev, od


def _kernel_fused(x_ref, halo_ref, out_ref, *, taps, rp, roll_sign):
    ev, od = _phases(x_ref, halo_ref, taps, rp, roll_sign)
    R, T = ev.shape
    y = jnp.stack([ev, od], axis=-1).reshape(R, 2 * T)   # on-chip lane interleave
    out_ref[...] = y.astype(out_ref.dtype)


def _kernel_split(x_ref, halo_ref, ev_ref, od_ref, *, taps, rp, roll_sign):
    ev, od = _phases(x_ref, halo_ref, taps, rp, roll_sign)
    ev_ref[...] = ev.astype(ev_ref.dtype)
    od_ref[...] = od.astype(od_ref.dtype)


# ---------------------------------------------------------------------------
# Tiling / halo helpers.
# ---------------------------------------------------------------------------
def _pick_tile(L):
    for t in (2048, 1024, 512, 256, 128):
        if L % t == 0:
            return t
    return L                       # full-dim block (allowed by BlockSpec rules)


def _pick_rows(Rtot, T, max_elems=256 * 1024):
    for r in (512, 256, 128, 64, 32, 16, 8):
        if Rtot % r == 0 and r * T <= max_elems:
            return r
    if Rtot % 8 == 0:
        return 8
    return Rtot                    # full-dim block


def _build_halo(x2, rp, T, pad_mode):
    """Per-L-tile halo columns of the (conceptually) padded input.

    Returns (nLT, Rtot, 2*rp): [:, :, :rp] are the rp columns left of each
    tile, [:, :, rp:] the rp columns right of it, with reflect/replicate
    applied at the global boundaries. Tiny (~2*rp/T of the input).
    """
    jmode = _PAD_MODES[pad_mode]
    Rtot, L = x2.shape
    nLT = L // T
    left_edge = jnp.pad(x2[:, :rp + 1], ((0, 0), (rp, 0)), mode=jmode)[:, :rp]
    right_edge = jnp.pad(x2[:, L - rp - 1:], ((0, 0), (0, rp)), mode=jmode)[:, rp + 1:]
    xb = x2.reshape(Rtot, nLT, T)
    hl = jnp.concatenate([left_edge[:, None, :], xb[:, :-1, T - rp:]], axis=1)
    hr = jnp.concatenate([xb[:, 1:, :rp], right_edge[:, None, :]], axis=1)
    halo = jnp.concatenate([hl, hr], axis=-1)            # (Rtot, nLT, 2*rp)
    return jnp.transpose(halo, (1, 0, 2))                # (nLT, Rtot, 2*rp)


# ---------------------------------------------------------------------------
# pallas_call wrappers.
# ---------------------------------------------------------------------------
def _upsample_tiled(x2, taps, rp, pad_mode, fused):
    Rtot, L = x2.shape
    K = len(taps)
    roll_sign = _roll_sign()
    if roll_sign == 0:
        raise RuntimeError('pltpu.roll unavailable on this build')

    T = _pick_tile(L)
    nLT = L // T
    R_blk = _pick_rows(Rtot, T)
    halo = _build_halo(x2, rp, T, pad_mode)

    grid = (Rtot // R_blk, nLT)
    in_specs = [
        pl.BlockSpec((R_blk, T), lambda i, j: (i, j)),
        pl.BlockSpec((1, R_blk, 2 * rp), lambda i, j: (j, i, 0)),
    ]
    itemsize = x2.dtype.itemsize
    cost = pl.CostEstimate(flops=2 * K * Rtot * L, transcendentals=0,
                           bytes_accessed=(3 * Rtot * L + int(halo.size)) * itemsize)
    cparams = pltpu.CompilerParams(dimension_semantics=("parallel", "parallel"))

    if fused:
        kern = functools.partial(_kernel_fused, taps=taps, rp=rp, roll_sign=roll_sign)
        return pl.pallas_call(
            kern, grid=grid, in_specs=in_specs,
            out_specs=pl.BlockSpec((R_blk, 2 * T), lambda i, j: (i, j)),
            out_shape=jax.ShapeDtypeStruct((Rtot, 2 * L), x2.dtype),
            compiler_params=cparams, cost_estimate=cost,
        )(x2, halo)

    kern = functools.partial(_kernel_split, taps=taps, rp=rp, roll_sign=roll_sign)
    ev, od = pl.pallas_call(
        kern, grid=grid, in_specs=in_specs,
        out_specs=[pl.BlockSpec((R_blk, T), lambda i, j: (i, j))] * 2,
        out_shape=[jax.ShapeDtypeStruct((Rtot, L), x2.dtype)] * 2,
        compiler_params=cparams, cost_estimate=cost,
    )(x2, halo)
    # TODO(synk): when the Mosaic build cannot lower the in-kernel lane
    # interleave, it stays as this thin XLA epilogue (extra ~4*N*C*L bytes).
    return jnp.stack([ev, od], axis=-1).reshape(Rtot, 2 * L)


def _fallback_kernel(xpad_ref, even_ref, odd_ref, *, taps, out_len):
    K = len(taps)
    cp = K - 1
    x = xpad_ref[...].astype(jnp.float32)
    even = jnp.zeros(even_ref.shape, jnp.float32)
    odd = jnp.zeros(odd_ref.shape, jnp.float32)
    for k, w in enumerate(taps):
        r = (k + cp) % 2
        off = (r + cp - k) // 2
        contrib = w * x[:, :, off:off + out_len]
        if r == 0:
            even = even + contrib
        else:
            odd = odd + contrib
    even_ref[...] = even.astype(even_ref.dtype)
    odd_ref[...] = odd.astype(odd_ref.dtype)


def _upsample_fallback(x, taps, rp, pad_mode):
    """Conservative previously-validated path (full pad, external interleave)."""
    N, C, L = x.shape
    x_pad = jnp.pad(x, ((0, 0), (0, 0), (rp, rp)), mode=_PAD_MODES[pad_mode])
    L_pad = L + 2 * rp
    kern = functools.partial(_fallback_kernel, taps=taps, out_len=L)
    even, odd = pl.pallas_call(
        kern, grid=(N,),
        in_specs=[pl.BlockSpec((1, C, L_pad), lambda i: (i, 0, 0))],
        out_specs=[pl.BlockSpec((1, C, L), lambda i: (i, 0, 0))] * 2,
        out_shape=[jax.ShapeDtypeStruct((N, C, L), x.dtype)] * 2,
        compiler_params=pltpu.CompilerParams(dimension_semantics=("parallel",)),
    )(x_pad)
    return jnp.stack([even, odd], axis=-1).reshape(N, C, 2 * L)


def upsample1d(x, kernel='linear', pad_mode='reflect'):
    """x: (N, C, L) -> (N, C, 2L); matches Upsample1d(kernel, pad_mode).forward."""
    if pad_mode not in _PAD_MODES:
        raise ValueError(f'unsupported pad_mode: {pad_mode!r}')
    taps = tuple(float(v) * 2.0 for v in _KERNELS[kernel])    # kernel_1d = base * 2
    K = len(taps)
    pad = K // 2 - 1
    rp = (pad + 1) // 2
    N, C, L = x.shape
    if L <= rp:
        raise ValueError('input length too small for the requested padding')

    x2 = x.reshape(N * C, L)
    attempts = [True, False] if _fused_interleave_ok() else [False]
    for fused in attempts:
        try:
            y2 = _upsample_tiled(x2, taps, rp, pad_mode, fused)
            y2 = jax.block_until_ready(y2)
            return y2.reshape(N, C, 2 * L)
        except Exception:
            continue
    return _upsample_fallback(x, taps, rp, pad_mode)


# ---------------------------------------------------------------------------
# Reference + self-test.
# ---------------------------------------------------------------------------
def _reference_upsample1d(x, kernel='linear'):
    """Direct numpy transcription of F.conv_transpose1d semantics."""
    taps = np.asarray(_KERNELS[kernel], dtype=np.float64) * 2.0
    K = len(taps)
    pad = K // 2 - 1
    rp = (pad + 1) // 2
    cp = pad * 2 + 1
    xp = np.pad(np.asarray(x, np.float64), ((0, 0), (0, 0), (rp, rp)), mode='reflect')
    N, C, Lp = xp.shape
    out_len = (Lp - 1) * 2 - 2 * cp + K
    out = np.zeros((N, C, out_len), np.float64)
    for o in range(out_len):
        for k in range(K):
            num = o + cp - k
            if num % 2 == 0:
                i = num // 2
                if 0 <= i < Lp:
                    out[..., o] += xp[..., i] * taps[k]
    return out


if __name__ == "__main__":
    key = jax.random.PRNGKey(0)
    k_small, k_big = jax.random.split(key)

    # Small shape consistent with the module: (batch=2, channels=4, length=16).
    x = jax.random.normal(k_small, (2, 4, 16), dtype=jnp.float32)
    y = jax.block_until_ready(upsample1d(x, kernel='linear', pad_mode='reflect'))
    assert y.shape == (2, 4, 32), y.shape
    np.testing.assert_allclose(np.asarray(y),
                               _reference_upsample1d(np.asarray(x), 'linear'),
                               rtol=1e-5, atol=1e-5)

    # The other resampling kernels on the same input (review correctness item).
    for kname in ('cubic', 'lanczos3'):
        yk = jax.block_until_ready(upsample1d(x, kernel=kname))
        np.testing.assert_allclose(np.asarray(yk),
                                   _reference_upsample1d(np.asarray(x), kname),
                                   rtol=1e-5, atol=1e-5)

    # Multi-tile case exercising the row- and length-tiled grid plus halos.
    xb = jax.random.normal(k_big, (2, 48, 1280), dtype=jnp.float32)
    for kname in ('linear', 'lanczos3'):
        yb = jax.block_until_ready(upsample1d(xb, kernel=kname))
        np.testing.assert_allclose(np.asarray(yb),
                                   _reference_upsample1d(np.asarray(xb), kname),
                                   rtol=1e-5, atol=1e-5)

    print("KERNEL_OK")
</pallas_src>

<mosaic_0001>
module attributes {stable_mosaic.version = 11 : i64} {
  func.func @kern(%arg0: memref<8x128xf32, #tpu.memory_space<vmem>>, %arg1: memref<8x128xf32, #tpu.memory_space<vmem>>, %arg2: memref<8x256xf32, #tpu.memory_space<vmem>>) attributes {dimension_semantics = [], scalar_prefetch = 0 : i64, scratch_operands = 0 : i64, tpu.core_type = #tpu.core_type<tc>} {
    %c0 = arith.constant 0 : index
    %c0_0 = arith.constant 0 : index
    %0 = vector.load %arg0[%c0, %c0_0] : memref<8x128xf32, #tpu.memory_space<vmem>>, vector<8x128xf32>
    %c0_1 = arith.constant 0 : index
    %c0_2 = arith.constant 0 : index
    %1 = vector.load %arg1[%c0_1, %c0_2] : memref<8x128xf32, #tpu.memory_space<vmem>>, vector<8x128xf32>
    %2 = vector.shape_cast %0 : vector<8x128xf32> to vector<8x128x1xf32>
    %3 = vector.shape_cast %1 : vector<8x128xf32> to vector<8x128x1xf32>
    %4 = tpu.concatenate %2, %3 in 2 : vector<8x128x1xf32>, vector<8x128x1xf32> -> vector<8x128x2xf32>
    %5 = vector.shape_cast %4 : vector<8x128x2xf32> to vector<8x256xf32>
    %c0_3 = arith.constant 0 : index
    %c0_4 = arith.constant 0 : index
    %6 = vector.load %arg2[%c0_3, %c0_4] : memref<8x256xf32, #tpu.memory_space<vmem>>, vector<8x256xf32>
    tpu.vector_store %arg2[%c0_3, %c0_4], %5 {strides = array<i32>} : memref<8x256xf32, #tpu.memory_space<vmem>>, vector<8x256xf32>,
    return
  }
}

module attributes {stable_mosaic.version = 11 : i64} {
  func.func @kern(%arg0: memref<8x128xf32, #tpu.memory_space<vmem>>, %arg1: memref<8x128xf32, #tpu.memory_space<vmem>>) attributes {dimension_semantics = [], scalar_prefetch = 0 : i64, scratch_operands = 0 : i64, tpu.core_type = #tpu.core_type<tc>} {
    %c0 = arith.constant 0 : index
    %c0_0 = arith.constant 0 : index
    %0 = vector.load %arg0[%c0, %c0_0] : memref<8x128xf32, #tpu.memory_space<vmem>>, vector<8x128xf32>
    %c1_i32 = arith.constant 1 : i32
    %1 = tpu.dynamic_rotate %0 by %c1_i32 dim 1 : vector<8x128xf32>, i32 -> vector<8x128xf32>
    %c0_1 = arith.constant 0 : index
    %c0_2 = arith.constant 0 : index
    %2 = vector.load %arg1[%c0_1, %c0_2] : memref<8x128xf32, #tpu.memory_space<vmem>>, vector<8x128xf32>
    tpu.vector_store %arg1[%c0_1, %c0_2], %1 {strides = array<i32>} : memref<8x128xf32, #tpu.memory_space<vmem>>, vector<8x128xf32>,
    return
  }
}

module attributes {stable_mosaic.version = 11 : i64} {
  func.func @_fallback_kernel(%arg0: i32, %arg1: memref<1x4x18xf32, #tpu.memory_space<vmem>>, %arg2: memref<1x4x16xf32, #tpu.memory_space<vmem>>, %arg3: memref<1x4x16xf32, #tpu.memory_space<vmem>>) attributes {dimension_semantics = [#tpu.dimension_semantics<parallel>], iteration_bounds = array<i64: 2>, scalar_prefetch = 0 : i64, scratch_operands = 0 : i64, tpu.core_type = #tpu.core_type<tc>, window_params = [{transform_indices = @transform_0, window_bounds = array<i64: 1, 4, 18>}, {transform_indices = @transform_1, window_bounds = array<i64: 1, 4, 16>}, {transform_indices = @transform_2, window_bounds = array<i64: 1, 4, 16>}]} {
    %c0 = arith.constant 0 : index
    %c0_0 = arith.constant 0 : index
    %c0_1 = arith.constant 0 : index
    %0 = vector.load %arg1[%c0, %c0_0, %c0_1] : memref<1x4x18xf32, #tpu.memory_space<vmem>>, vector<1x4x18xf32>
    %cst = arith.constant 0.000000e+00 : f32
    %1 = vector.broadcast %cst : f32 to vector<1x4x16xf32>
    %cst_2 = arith.constant 0.000000e+00 : f32
    %2 = vector.broadcast %cst_2 : f32 to vector<1x4x16xf32>
    %3 = vector.extract_strided_slice %0 {offsets = [0, 0, 2], sizes = [1, 4, 16], strides = [1, 1, 1]} : vector<1x4x18xf32> to vector<1x4x16xf32>
    %cst_3 = arith.constant 2.500000e-01 : f32
    %4 = vector.broadcast %cst_3 : f32 to vector<1x4x16xf32>
    %5 = arith.mulf %4, %3 : vector<1x4x16xf32>
    %6 = arith.addf %2, %5 : vector<1x4x16xf32>
    %7 = vector.extract_strided_slice %0 {offsets = [0, 0, 1], sizes = [1, 4, 16], strides = [1, 1, 1]} : vector<1x4x18xf32> to vector<1x4x16xf32>
    %cst_4 = arith.constant 7.500000e-01 : f32
    %8 = vector.broadcast %cst_4 : f32 to vector<1x4x16xf32>
    %9 = arith.mulf %8, %7 : vector<1x4x16xf32>
    %10 = arith.addf %1, %9 : vector<1x4x16xf32>
    %11 = vector.extract_strided_slice %0 {offsets = [0, 0, 1], sizes = [1, 4, 16], strides = [1, 1, 1]} : vector<1x4x18xf32> to vector<1x4x16xf32>
    %cst_5 = arith.constant 7.500000e-01 : f32
    %12 = vector.broadcast %cst_5 : f32 to vector<1x4x16xf32>
    %13 = arith.mulf %12, %11 : vector<1x4x16xf32>
    %14 = arith.addf %6, %13 : vector<1x4x16xf32>
    %15 = vector.extract_strided_slice %0 {offsets = [0, 0, 0], sizes = [1, 4, 16], strides = [1, 1, 1]} : vector<1x4x18xf32> to vector<1x4x16xf32>
    %cst_6 = arith.constant 2.500000e-01 : f32
    %16 = vector.broadcast %cst_6 : f32 to vector<1x4x16xf32>
    %17 = arith.mulf %16, %15 : vector<1x4x16xf32>
    %18 = arith.addf %10, %17 : vector<1x4x16xf32>
    %c0_7 = arith.constant 0 : index
    %c0_8 = arith.constant 0 : index
    %c0_9 = arith.constant 0 : index
    %19 = vector.load %arg2[%c0_7, %c0_8, %c0_9] : memref<1x4x16xf32, #tpu.memory_space<vmem>>, vector<1x4x16xf32>
    tpu.vector_store %arg2[%c0_7, %c0_8, %c0_9], %18 {strides = array<i32>} : memref<1x4x16xf32, #tpu.memory_space<vmem>>, vector<1x4x16xf32>,
    %c0_10 = arith.constant 0 : index
    %c0_11 = arith.constant 0 : index
    %c0_12 = arith.constant 0 : index
    %20 = vector.load %arg3[%c0_10, %c0_11, %c0_12] : memref<1x4x16xf32, #tpu.memory_space<vmem>>, vector<1x4x16xf32>
    tpu.vector_store %arg3[%c0_10, %c0_11, %c0_12], %14 {strides = array<i32>} : memref<1x4x16xf32, #tpu.memory_space<vmem>>, vector<1x4x16xf32>,
    return
  }
  func.func @transform_0(%arg0: i32) -> (i32, i32, i32) {
    %c0_i32 = arith.constant 0 : i32
    %c0_i32_0 = arith.constant 0 : i32
    %c0_i32_1 = arith.constant 0 : i32
    return %arg0, %c0_i32, %c0_i32_0 : i32, i32, i32
  }
  func.func @transform_1(%arg0: i32) -> (i32, i32, i32) {
    %c0_i32 = arith.constant 0 : i32
    %c0_i32_0 = arith.constant 0 : i32
    %c0_i32_1 = arith.constant 0 : i32
    return %arg0, %c0_i32, %c0_i32_0 : i32, i32, i32
  }
  func.func @transform_2(%arg0: i32) -> (i32, i32, i32) {
    %c0_i32 = arith.constant 0 : i32
    %c0_i32_0 = arith.constant 0 : i32
    %c0_i32_1 = arith.constant 0 : i32
    return %arg0, %c0_i32, %c0_i32_0 : i32, i32, i32
  }
}

</mosaic_0001>

<llo_original>
// kernel: tpu_custom_call.1
$region0: #{tpu_custom_call.1}
  #allocation0 [shape = 'u32[]', space=smem, size = 0x4, offset = 0x4, fixed_abs, tag = 'smem constant byte address 0x4 - core index']
  #allocation1 [shape = 'u32[72,128]{1,0:T(1,128)}', space=vmem, size = 0x9000, scoped, tag = 'internal scratch']
  %s0 = inlined_call_operand.hbm [shape: f32[8,128], index: 0, kind: input, shape index: {}]
  %s1 = inlined_call_operand.hbm [shape: f32[8,128], index: 1, kind: input, shape index: {}]
  %s2 = inlined_call_operand.hbm [shape: f32[8,256], index: 2, kind: output, shape index: {}]
  %s3 = sld [smem:[#allocation0]]
  $region26: #{tpu_custom_call.1} parent=0
    _
  %s5 = ssub.s32 1, %s3
  %s6 = scalar_select 0, %s5, %s3
  $region1: #{tpu_custom_call.1} parent=0
    #allocation2 [shape = 'u8[4096]{0}', space=vmem, size = 0x1000, scoped, tag = 'input window, operand 0, single buffered']
    #allocation3 [shape = 's32[1]{0}', space=sflag, size = 0x4, scoped, tag = 'scoped memory for tpu_custom_call.1']
    #allocation4 [shape = 's32[1]{0}', space=sflag, size = 0x4, scoped, tag = 'scoped memory for tpu_custom_call.1']
    #allocation5 [shape = 'u8[4096]{0}', space=vmem, size = 0x1000, scoped, tag = 'input window, operand 1, single buffered']
    #allocation6 [shape = 's32[1]{0}', space=sflag, size = 0x4, scoped, tag = 'scoped memory for tpu_custom_call.1']
    #allocation7 [shape = 'u8[8192]{0}', space=vmem, size = 0x2000, scoped, tag = 'output window, operand 0, single buffered']
    %7 = vsyncpa [#allocation3], 0
    %8 = vsyncpa [#allocation6], 0
    %9 = vsyncpa [#allocation4], 0
    // Predicated region
    $region2: #{tpu_custom_call.1} parent=1 // pred_check
      _
    $region3: #{tpu_custom_call.1} parent=1 // pred_check_branch
      %11 = sbr.rel (0) target = $region5
    $region4: #{tpu_custom_call.1} parent=1 // pred_region
      %13 = vsyncadd [#allocation3], 0
      %s15 = sshll.u32 %s0, 4
      %s16 = int_to_ptr.hbm [resolvable:$true] %s15
      %s17 = sshll.u32 [#allocation2], 4
      %s18 = int_to_ptr.vmem [resolvable:$true] %s17
      %20 = dma.hbm_to_vmem [thread:$0]  %s16, 128, %s18, [#allocation3]
    $region5: #{tpu_custom_call.1} parent=1 // pred_fallthru
      _
    // Predicated region
    $region6: #{tpu_custom_call.1} parent=1 // pred_check
      _
    $region7: #{tpu_custom_call.1} parent=1 // pred_check_branch
      %22 = sbr.rel (0) target = $region9
    $region8: #{tpu_custom_call.1} parent=1 // pred_region
      %24 = vsyncadd [#allocation6], 0
      %s26 = sshll.u32 %s1, 4
      %s27 = int_to_ptr.hbm [resolvable:$true] %s26
      %s28 = sshll.u32 [#allocation5], 4
      %s29 = int_to_ptr.vmem [resolvable:$true] %s28
      %31 = dma.hbm_to_vmem [thread:$0]  %s27, 128, %s29, [#allocation6]
    $region9: #{tpu_custom_call.1} parent=1 // pred_fallthru
      _
    // Predicated region
    $region10: #{tpu_custom_call.1} parent=1 // pred_check
      _
    $region11: #{tpu_custom_call.1} parent=1 // pred_check_branch
      %33 = sbr.rel (0) target = $region13
    $region12: #{tpu_custom_call.1} parent=1 // pred_region
      %35 = dma.done [#allocation3], 128
    $region13: #{tpu_custom_call.1} parent=1 // pred_fallthru
      _
    // Predicated region
    $region14: #{tpu_custom_call.1} parent=1 // pred_check
      _
    $region15: #{tpu_custom_call.1} parent=1 // pred_check_branch
      %37 = sbr.rel (0) target = $region17
    $region16: #{tpu_custom_call.1} parent=1 // pred_region
      %39 = dma.done [#allocation6], 128
    $region17: #{tpu_custom_call.1} parent=1 // pred_fallthru
      _
    %v40 = vld [vmem:[#allocation2] sm:$0xff]
    %v41 = vld [vmem:[#allocation5] sm:$0xff]
    %v42 = vperm.slane %v40, 0
    %v43 = vlaneseq
    %v44 = vshrl.u32 %v43, 7
    %46 = vset.pattern.permute.xlu0 %v44
    %47 = vperm.xlu0 %46, %v42
    %v48 = vpop.permute.xlu0 %47
    %v49 = vlaneseq
    %v50 = vshrl.u32 %v49, 7
    %v51 = vadd.s32 %v50, 8
    %52 = vset.pattern.permute.xlu0 %v51
    %53 = vperm.xlu0 %52, %v42
    %v54 = vpop.permute.xlu0 %53
    %v55 = vlaneseq
    %v56 = vshrl.u32 %v55, 7
    %v57 = vadd.s32 %v56, 16
    %58 = vset.pattern.permute.xlu0 %v57
    %59 = vperm.xlu0 %58, %v42
    %v60 = vpop.permute.xlu0 %59
    %v61 = vlaneseq
    %v62 = vshrl.u32 %v61, 7
    %v63 = vadd.s32 %v62, 24
    %64 = vset.pattern.permute.xlu0 %v63
    %65 = vperm.xlu0 %64, %v42
    %v66 = vpop.permute.xlu0 %65
    %v67 = vlaneseq
    %v68 = vshrl.u32 %v67, 7
    %v69 = vadd.s32 %v68, 32
    %70 = vset.pattern.permute.xlu0 %v69
    %71 = vperm.xlu0 %70, %v42
    %v72 = vpop.permute.xlu0 %71
    %v73 = vlaneseq
    %v74 = vshrl.u32 %v73, 7
    %v75 = vadd.s32 %v74, 40
    %76 = vset.pattern.permute.xlu0 %v75
    %77 = vperm.xlu0 %76, %v42
    %v78 = vpop.permute.xlu0 %77
    %v79 = vlaneseq
    %v80 = vshrl.u32 %v79, 7
    %v81 = vadd.s32 %v80, 48
    %82 = vset.pattern.permute.xlu0 %v81
    %83 = vperm.xlu0 %82, %v42
    %v84 = vpop.permute.xlu0 %83
    %v85 = vlaneseq
    %v86 = vshrl.u32 %v85, 7
    %v87 = vadd.s32 %v86, 56
    %88 = vset.pattern.permute.xlu0 %v87
    %89 = vperm.xlu0 %88, %v42
    %v90 = vpop.permute.xlu0 %89
    %v91 = vlaneseq
    %v92 = vshrl.u32 %v91, 7
    %v93 = vadd.s32 %v92, 64
    %94 = vset.pattern.permute.xlu0 %v93
    %95 = vperm.xlu0 %94, %v42
    %v96 = vpop.permute.xlu0 %95
    %v97 = vlaneseq
    %v98 = vshrl.u32 %v97, 7
    %v99 = vadd.s32 %v98, 72
    %100 = vset.pattern.permute.xlu0 %v99
    %101 = vperm.xlu0 %100, %v42
    %v102 = vpop.permute.xlu0 %101
    %v103 = vlaneseq
    %v104 = vshrl.u32 %v103, 7
    %v105 = vadd.s32 %v104, 80
    %106 = vset.pattern.permute.xlu0 %v105
    %107 = vperm.xlu0 %106, %v42
    %v108 = vpop.permute.xlu0 %107
    %v109 = vlaneseq
    %v110 = vshrl.u32 %v109, 7
    %v111 = vadd.s32 %v110, 88
    %112 = vset.pattern.permute.xlu0 %v111
    %113 = vperm.xlu0 %112, %v42
    %v114 = vpop.permute.xlu0 %113
    %v115 = vlaneseq
    %v116 = vshrl.u32 %v115, 7
    %v117 = vadd.s32 %v116, 96
    %118 = vset.pattern.permute.xlu0 %v117
    %119 = vperm.xlu0 %118, %v42
    %v120 = vpop.permute.xlu0 %119
    %v121 = vlaneseq
    %v122 = vshrl.u32 %v121, 7
    %v123 = vadd.s32 %v122, 104
    %124 = vset.pattern.permute.xlu0 %v123
    %125 = vperm.xlu0 %124, %v42
    %v126 = vpop.permute.xlu0 %125
    %v127 = vlaneseq
    %v128 = vshrl.u32 %v127, 7
    %v129 = vadd.s32 %v128, 112
    %130 = vset.pattern.permute.xlu0 %v129
    %131 = vperm.xlu0 %130, %v42
    %v132 = vpop.permute.xlu0 %131
    %v133 = vlaneseq
    %v134 = vshrl.u32 %v133, 7
    %v135 = vadd.s32 %v134, 120
    %136 = vset.pattern.permute.xlu0 %v135
    %137 = vperm.xlu0 %136, %v42
    %v138 = vpop.permute.xlu0 %137
    %v139 = vperm.slane %v40, 1
    %v140 = vlaneseq
    %v141 = vshrl.u32 %v140, 7
    %143 = vset.pattern.permute.xlu0 %v141
    %144 = vperm.xlu0 %143, %v139
    %v145 = vpop.permute.xlu0 %144
    %v146 = vlaneseq
    %v147 = vshrl.u32 %v146, 7
    %v148 = vadd.s32 %v147, 8
    %149 = vset.pattern.permute.xlu0 %v148
    %150 = vperm.xlu0 %149, %v139
    %v151 = vpop.permute.xlu0 %150
    %v152 = vlaneseq
    %v153 = vshrl.u32 %v152, 7
    %v154 = vadd.s32 %v153, 16
    %155 = vset.pattern.permute.xlu0 %v154
    %156 = vperm.xlu0 %155, %v139
    %v157 = vpop.permute.xlu0 %156
    %v158 = vlaneseq
    %v159 = vshrl.u32 %v158, 7
    %v160 = vadd.s32 %v159, 24
    %161 = vset.pattern.permute.xlu0 %v160
    %162 = vperm.xlu0 %161, %v139
    %v163 = vpop.permute.xlu0 %162
    %v164 = vlaneseq
    %v165 = vshrl.u32 %v164, 7
    %v166 = vadd.s32 %v165, 32
    %167 = vset.pattern.permute.xlu0 %v166
    %168 = vperm.xlu0 %167, %v139
    %v169 = vpop.permute.xlu0 %168
    %v170 = vlaneseq
    %v171 = vshrl.u32 %v170, 7
    %v172 = vadd.s32 %v171, 40
    %173 = vset.pattern.permute.xlu0 %v172
    %174 = vperm.xlu0 %173, %v139
    %v175 = vpop.permute.xlu0 %174
    %v176 = vlaneseq
    %v177 = vshrl.u32 %v176, 7
    %v178 = vadd.s32 %v177, 48
    %179 = vset.pattern.permute.xlu0 %v178
    %180 = vperm.xlu0 %179, %v139
    %v181 = vpop.permute.xlu0 %180
    %v182 = vlaneseq
    %v183 = vshrl.u32 %v182, 7
    %v184 = vadd.s32 %v183, 56
    %185 = vset.pattern.permute.xlu0 %v184
    %186 = vperm.xlu0 %185, %v139
    %v187 = vpop.permute.xlu0 %186
    %v188 = vlaneseq
    %v189 = vshrl.u32 %v188, 7
    %v190 = vadd.s32 %v189, 64
    %191 = vset.pattern.permute.xlu0 %v190
    %192 = vperm.xlu0 %191, %v139
    %v193 = vpop.permute.xlu0 %192
    %v194 = vlaneseq
    %v195 = vshrl.u32 %v194, 7
    %v196 = vadd.s32 %v195, 72
    %197 = vset.pattern.permute.xlu0 %v196
    %198 = vperm.xlu0 %197, %v139
    %v199 = vpop.permute.xlu0 %198
    %v200 = vlaneseq
    %v201 = vshrl.u32 %v200, 7
    %v202 = vadd.s32 %v201, 80
    %203 = vset.pattern.permute.xlu0 %v202
    %204 = vperm.xlu0 %203, %v139
    %v205 = vpop.permute.xlu0 %204
    %v206 = vlaneseq
    %v207 = vshrl.u32 %v206, 7
    %v208 = vadd.s32 %v207, 88
    %209 = vset.pattern.permute.xlu0 %v208
    %210 = vperm.xlu0 %209, %v139
    %v211 = vpop.permute.xlu0 %210
    %v212 = vlaneseq
    %v213 = vshrl.u32 %v212, 7
    %v214 = vadd.s32 %v213, 96
    %215 = vset.pattern.permute.xlu0 %v214
    %216 = vperm.xlu0 %215, %v139
    %v217 = vpop.permute.xlu0 %216
    %v218 = vlaneseq
    %v219 = vshrl.u32 %v218, 7
    %v220 = vadd.s32 %v219, 104
    %221 = vset.pattern.permute.xlu0 %v220
    %222 = vperm.xlu0 %221, %v139
    %v223 = vpop.permute.xlu0 %222
    %v224 = vlaneseq
    %v225 = vshrl.u32 %v224, 7
    %v226 = vadd.s32 %v225, 112
    %227 = vset.pattern.permute.xlu0 %v226
    %228 = vperm.xlu0 %227, %v139
    %v229 = vpop.permute.xlu0 %228
    %v230 = vlaneseq
    %v231 = vshrl.u32 %v230, 7
    %v232 = vadd.s32 %v231, 120
    %233 = vset.pattern.permute.xlu0 %v232
    %234 = vperm.xlu0 %233, %v139
    %v235 = vpop.permute.xlu0 %234
    %v236 = vperm.slane %v40, 2
    %v237 = vlaneseq
    %v238 = vshrl.u32 %v237, 7
    %240 = vset.pattern.permute.xlu0 %v238
    %241 = vperm.xlu0 %240, %v236
    %v242 = vpop.permute.xlu0 %241
    %v243 = vlaneseq
    %v244 = vshrl.u32 %v243, 7
    %v245 = vadd.s32 %v244, 8
    %246 = vset.pattern.permute.xlu0 %v245
    %247 = vperm.xlu0 %246, %v236
    %v248 = vpop.permute.xlu0 %247
    %v249 = vlaneseq
    %v250 = vshrl.u32 %v249, 7
    %v251 = vadd.s32 %v250, 16
    %252 = vset.pattern.permute.xlu0 %v251
    %253 = vperm.xlu0 %252, %v236
    %v254 = vpop.permute.xlu0 %253
    %v255 = vlaneseq
    %v256 = vshrl.u32 %v255, 7
    %v257 = vadd.s32 %v256, 24
    %258 = vset.pattern.permute.xlu0 %v257
    %259 = vperm.xlu0 %258, %v236
    %v260 = vpop.permute.xlu0 %259
    %v261 = vlaneseq
    %v262 = vshrl.u32 %v261, 7
    %v263 = vadd.s32 %v262, 32
    %264 = vset.pattern.permute.xlu0 %v263
    %265 = vperm.xlu0 %264, %v236
    %v266 = vpop.permute.xlu0 %265
    %v267 = vlaneseq
    %v268 = vshrl.u32 %v267, 7
    %v269 = vadd.s32 %v268, 40
    %270 = vset.pattern.permute.xlu0 %v269
    %271 = vperm.xlu0 %270, %v236
    %v272 = vpop.permute.xlu0 %271
    %v273 = vlaneseq
    %v274 = vshrl.u32 %v273, 7
    %v275 = vadd.s32 %v274, 48
    %276 = vset.pattern.permute.xlu0 %v275
    %277 = vperm.xlu0 %276, %v236
    %v278 = vpop.permute.xlu0 %277
    %v279 = vlaneseq
    %v280 = vshrl.u32 %v279, 7
    %v281 = vadd.s32 %v280, 56
    %282 = vset.pattern.permute.xlu0 %v281
    %283 = vperm.xlu0 %282, %v236
    %v284 = vpop.permute.xlu0 %283
    %v285 = vlaneseq
    %v286 = vshrl.u32 %v285, 7
    %v287 = vadd.s32 %v286, 64
    %288 = vset.pattern.permute.xlu0 %v287
    %289 = vperm.xlu0 %288, %v236
    %v290 = vpop.permute.xlu0 %289
    %v291 = vlaneseq
    %v292 = vshrl.u32 %v291, 7
    %v293 = vadd.s32 %v292, 72
    %294 = vset.pattern.permute.xlu0 %v293
    %295 = vperm.xlu0 %294, %v236
    %v296 = vpop.permute.xlu0 %295
    %v297 = vlaneseq
    %v298 = vshrl.u32 %v297, 7
    %v299 = vadd.s32 %v298, 80
    %300 = vset.pattern.permute.xlu0 %v299
    %301 = vperm.xlu0 %300, %v236
    %v302 = vpop.permute.xlu0 %301
    %v303 = vlaneseq
    %v304 = vshrl.u32 %v303, 7
    %v305 = vadd.s32 %v304, 88
    %306 = vset.pattern.permute.xlu0 %v305
    %307 = vperm.xlu0 %306, %v236
    %v308 = vpop.permute.xlu0 %307
    %v309 = vlaneseq
    %v310 = vshrl.u32 %v309, 7
    %v311 = vadd.s32 %v310, 96
    %312 = vset.pattern.permute.xlu0 %v311
    %313 = vperm.xlu0 %312, %v236
    %v314 = vpop.permute.xlu0 %313
    %v315 = vlaneseq
    %v316 = vshrl.u32 %v315, 7
    %v317 = vadd.s32 %v316, 104
    %318 = vset.pattern.permute.xlu0 %v317
    %319 = vperm.xlu0 %318, %v236
    %v320 = vpop.permute.xlu0 %319
    %v321 = vlaneseq
    %v322 = vshrl.u32 %v321, 7
    %v323 = vadd.s32 %v322, 112
    %324 = vset.pattern.permute.xlu0 %v323
    %325 = vperm.xlu0 %324, %v236
    %v326 = vpop.permute.xlu0 %325
    %v327 = vlaneseq
    %v328 = vshrl.u32 %v327, 7
    %v329 = vadd.s32 %v328, 120
    %330 = vset.pattern.permute.xlu0 %v329
    %331 = vperm.xlu0 %330, %v236
    %v332 = vpop.permute.xlu0 %331
    %v333 = vperm.slane %v40, 3
    %v334 = vlaneseq
    %v335 = vshrl.u32 %v334, 7
    %337 = vset.pattern.permute.xlu0 %v335
    %338 = vperm.xlu0 %337, %v333
    %v339 = vpop.permute.xlu0 %338
    %v340 = vlaneseq
    %v341 = vshrl.u32 %v340, 7
    %v342 = vadd.s32 %v341, 8
    %343 = vset.pattern.permute.xlu0 %v342
    %344 = vperm.xlu0 %343, %v333
    %v345 = vpop.permute.xlu0 %344
    %v346 = vlaneseq
    %v347 = vshrl.u32 %v346, 7
    %v348 = vadd.s32 %v347, 16
    %349 = vset.pattern.permute.xlu0 %v348
    %350 = vperm.xlu0 %349, %v333
    %v351 = vpop.permute.xlu0 %350
    %v352 = vlaneseq
    %v353 = vshrl.u32 %v352, 7
    %v354 = vadd.s32 %v353, 24
    %355 = vset.pattern.permute.xlu0 %v354
    %356 = vperm.xlu0 %355, %v333
    %v357 = vpop.permute.xlu0 %356
    %v358 = vlaneseq
    %v359 = vshrl.u32 %v358, 7
    %v360 = vadd.s32 %v359, 32
    %361 = vset.pattern.permute.xlu0 %v360
    %362 = vperm.xlu0 %361, %v333
    %v363 = vpop.permute.xlu0 %362
    %v364 = vlaneseq
    %v365 = vshrl.u32 %v364, 7
    %v366 = vadd.s32 %v365, 40
    %367 = vset.pattern.permute.xlu0 %v366
    %368 = vperm.xlu0 %367, %v333
    %v369 = vpop.permute.xlu0 %368
    %v370 = vlaneseq
    %v371 = vshrl.u32 %v370, 7
    %v372 = vadd.s32 %v371, 48
    %373 = vset.pattern.permute.xlu0 %v372
    %374 = vperm.xlu0 %373, %v333
    %v375 = vpop.permute.xlu0 %374
    %v376 = vlaneseq
    %v377 = vshrl.u32 %v376, 7
    %v378 = vadd.s32 %v377, 56
    %379 = vset.pattern.permute.xlu0 %v378
    %380 = vperm.xlu0 %379, %v333
    %v381 = vpop.permute.xlu0 %380
    %v382 = vlaneseq
    %v383 = vshrl.u32 %v382, 7
    %v384 = vadd.s32 %v383, 64
    %385 = vset.pattern.permute.xlu0 %v384
    %386 = vperm.xlu0 %385, %v333
    %v387 = vpop.permute.xlu0 %386
    %v388 = vlaneseq
    %v389 = vshrl.u32 %v388, 7
    %v390 = vadd.s32 %v389, 72
    %391 = vset.pattern.permute.xlu0 %v390
    %392 = vperm.xlu0 %391, %v333
    %v393 = vpop.permute.xlu0 %392
    %v394 = vlaneseq
    %v395 = vshrl.u32 %v394, 7
    %v396 = vadd.s32 %v395, 80
    %397 = vset.pattern.permute.xlu0 %v396
    %398 = vperm.xlu0 %397, %v333
    %v399 = vpop.permute.xlu0 %398
    %v400 = vlaneseq
    %v401 = vshrl.u32 %v400, 7
    %v402 = vadd.s32 %v401, 88
    %403 = vset.pattern.permute.xlu0 %v402
    %404 = vperm.xlu0 %403, %v333
    %v405 = vpop.permute.xlu0 %404
    %v406 = vlaneseq
    %v407 = vshrl.u32 %v406, 7
    %v408 = vadd.s32 %v407, 96
    %409 = vset.pattern.permute.xlu0 %v408
    %410 = vperm.xlu0 %409, %v333
    %v411 = vpop.permute.xlu0 %410
    %v412 = vlaneseq
    %v413 = vshrl.u32 %v412, 7
    %v414 = vadd.s32 %v413, 104
    %415 = vset.pattern.permute.xlu0 %v414
    %416 = vperm.xlu0 %415, %v333
    %v417 = vpop.permute.xlu0 %416
    %v418 = vlaneseq
    %v419 = vshrl.u32 %v418, 7
    %v420 = vadd.s32 %v419, 112
    %421 = vset.pattern.permute.xlu0 %v420
    %422 = vperm.xlu0 %421, %v333
    %v423 = vpop.permute.xlu0 %422
    %v424 = vlaneseq
    %v425 = vshrl.u32 %v424, 7
    %v426 = vadd.s32 %v425, 120
    %427 = vset.pattern.permute.xlu0 %v426
    %428 = vperm.xlu0 %427, %v333
    %v429 = vpop.permute.xlu0 %428
    %v430 = vperm.slane %v40, 4
    %v431 = vlaneseq
    %v432 = vshrl.u32 %v431, 7
    %434 = vset.pattern.permute.xlu0 %v432
    %435 = vperm.xlu0 %434, %v430
    %v436 = vpop.permute.xlu0 %435
    %v437 = vlaneseq
    %v438 = vshrl.u32 %v437, 7
    %v439 = vadd.s32 %v438, 8
    %440 = vset.pattern.permute.xlu0 %v439
    %441 = vperm.xlu0 %440, %v430
    %v442 = vpop.permute.xlu0 %441
    %v443 = vlaneseq
    %v444 = vshrl.u32 %v443, 7
    %v445 = vadd.s32 %v444, 16
    %446 = vset.pattern.permute.xlu0 %v445
    %447 = vperm.xlu0 %446, %v430
    %v448 = vpop.permute.xlu0 %447
    %v449 = vlaneseq
    %v450 = vshrl.u32 %v449, 7
    %v451 = vadd.s32 %v450, 24
    %452 = vset.pattern.permute.xlu0 %v451
    %453 = vperm.xlu0 %452, %v430
    %v454 = vpop.permute.xlu0 %453
    %v455 = vlaneseq
    %v456 = vshrl.u32 %v455, 7
    %v457 = vadd.s32 %v456, 32
    %458 = vset.pattern.permute.xlu0 %v457
    %459 = vperm.xlu0 %458, %v430
    %v460 = vpop.permute.xlu0 %459
    %v461 = vlaneseq
    %v462 = vshrl.u32 %v461, 7
    %v463 = vadd.s32 %v462, 40
    %464 = vset.pattern.permute.xlu0 %v463
    %465 = vperm.xlu0 %464, %v430
    %v466 = vpop.permute.xlu0 %465
    %v467 = vlaneseq
    %v468 = vshrl.u32 %v467, 7
    %v469 = vadd.s32 %v468, 48
    %470 = vset.pattern.permute.xlu0 %v469
    %471 = vperm.xlu0 %470, %v430
    %v472 = vpop.permute.xlu0 %471
    %v473 = vlaneseq
    %v474 = vshrl.u32 %v473, 7
    %v475 = vadd.s32 %v474, 56
    %476 = vset.pattern.permute.xlu0 %v475
    %477 = vperm.xlu0 %476, %v430
    %v478 = vpop.permute.xlu0 %477
    %v479 = vlaneseq
    %v480 = vshrl.u32 %v479, 7
    %v481 = vadd.s32 %v480, 64
    %482 = vset.pattern.permute.xlu0 %v481
    %483 = vperm.xlu0 %482, %v430
    %v484 = vpop.permute.xlu0 %483
    %v485 = vlaneseq
    %v486 = vshrl.u32 %v485, 7
    %v487 = vadd.s32 %v486, 72
    %488 = vset.pattern.permute.xlu0 %v487
    %489 = vperm.xlu0 %488, %v430
    %v490 = vpop.permute.xlu0 %489
    %v491 = vlaneseq
    %v492 = vshrl.u32 %v491, 7
    %v493 = vadd.s32 %v492, 80
    %494 = vset.pattern.permute.xlu0 %v493
    %495 = vperm.xlu0 %494, %v430
    %v496 = vpop.permute.xlu0 %495
    %v497 = vlaneseq
    %v498 = vshrl.u32 %v497, 7
    %v499 = vadd.s32 %v498, 88
    %500 = vset.pattern.permute.xlu0 %v499
    %501 = vperm.xlu0 %500, %v430
    %v502 = vpop.permute.xlu0 %501
    %v503 = vlaneseq
    %v504 = vshrl.u32 %v503, 7
    %v505 = vadd.s32 %v504, 96
    %506 = vset.pattern.permute.xlu0 %v505
    %507 = vperm.xlu0 %506, %v430
    %v508 = vpop.permute.xlu0 %507
    %v509 = vlaneseq
    %v510 = vshrl.u32 %v509, 7
    %v511 = vadd.s32 %v510, 104
    %512 = vset.pattern.permute.xlu0 %v511
    %513 = vperm.xlu0 %512, %v430
    %v514 = vpop.permute.xlu0 %513
    %v515 = vlaneseq
    %v516 = vshrl.u32 %v515, 7
    %v517 = vadd.s32 %v516, 112
    %518 = vset.pattern.permute.xlu0 %v517
    %519 = vperm.xlu0 %518, %v430
    %v520 = vpop.permute.xlu0 %519
    %v521 = vlaneseq
    %v522 = vshrl.u32 %v521, 7
    %v523 = vadd.s32 %v522, 120
    %524 = vset.pattern.permute.xlu0 %v523
    %525 = vperm.xlu0 %524, %v430
    %v526 = vpop.permute.xlu0 %525
    %v527 = vperm.slane %v40, 5
    %v528 = vlaneseq
    %v529 = vshrl.u32 %v528, 7
    %531 = vset.pattern.permute.xlu0 %v529
    %532 = vperm.xlu0 %531, %v527
    %v533 = vpop.permute.xlu0 %532
    %v534 = vlaneseq
    %v535 = vshrl.u32 %v534, 7
    %v536 = vadd.s32 %v535, 8
    %537 = vset.pattern.permute.xlu0 %v536
    %538 = vperm.xlu0 %537, %v527
    %v539 = vpop.permute.xlu0 %538
    %v540 = vlaneseq
    %v541 = vshrl.u32 %v540, 7
    %v542 = vadd.s32 %v541, 16
    %543 = vset.pattern.permute.xlu0 %v542
    %544 = vperm.xlu0 %543, %v527
    %v545 = vpop.permute.xlu0 %544
    %v546 = vlaneseq
    %v547 = vshrl.u32 %v546, 7
    %v548 = vadd.s32 %v547, 24
    %549 = vset.pattern.permute.xlu0 %v548
    %550 = vperm.xlu0 %549, %v527
    %v551 = vpop.permute.xlu0 %550
    %v552 = vlaneseq
    %v553 = vshrl.u32 %v552, 7
    %v554 = vadd.s32 %v553, 32
    %555 = vset.pattern.permute.xlu0 %v554
    %556 = vperm.xlu0 %555, %v527
    %v557 = vpop.permute.xlu0 %556
    %v558 = vlaneseq
    %v559 = vshrl.u32 %v558, 7
    %v560 = vadd.s32 %v559, 40
    %561 = vset.pattern.permute.xlu0 %v560
    %562 = vperm.xlu0 %561, %v527
    %v563 = vpop.permute.xlu0 %562
    %v564 = vlaneseq
    %v565 = vshrl.u32 %v564, 7
    %v566 = vadd.s32 %v565, 48
    %567 = vset.pattern.permute.xlu0 %v566
    %568 = vperm.xlu0 %567, %v527
    %v569 = vpop.permute.xlu0 %568
    %v570 = vlaneseq
    %v571 = vshrl.u32 %v570, 7
    %v572 = vadd.s32 %v571, 56
    %573 = vset.pattern.permute.xlu0 %v572
    %574 = vperm.xlu0 %573, %v527
    %v575 = vpop.permute.xlu0 %574
    %v576 = vlaneseq
    %v577 = vshrl.u32 %v576, 7
    %v578 = vadd.s32 %v577, 64
    %579 = vset.pattern.permute.xlu0 %v578
    %580 = vperm.xlu0 %579, %v527
    %v581 = vpop.permute.xlu0 %580
    %v582 = vlaneseq
    %v583 = vshrl.u32 %v582, 7
    %v584 = vadd.s32 %v583, 72
    %585 = vset.pattern.permute.xlu0 %v584
    %586 = vperm.xlu0 %585, %v527
    %v587 = vpop.permute.xlu0 %586
    %v588 = vlaneseq
    %v589 = vshrl.u32 %v588, 7
    %v590 = vadd.s32 %v589, 80
    %591 = vset.pattern.permute.xlu0 %v590
    %592 = vperm.xlu0 %591, %v527
    %v593 = vpop.permute.xlu0 %592
    %v594 = vlaneseq
    %v595 = vshrl.u32 %v594, 7
    %v596 = vadd.s32 %v595, 88
    %597 = vset.pattern.permute.xlu0 %v596
    %598 = vperm.xlu0 %597, %v527
    %v599 = vpop.permute.xlu0 %598
    %v600 = vlaneseq
    %v601 = vshrl.u32 %v600, 7
    %v602 = vadd.s32 %v601, 96
    %603 = vset.pattern.permute.xlu0 %v602
    %604 = vperm.xlu0 %603, %v527
    %v605 = vpop.permute.xlu0 %604
    %v606 = vlaneseq
    %v607 = vshrl.u32 %v606, 7
    %v608 = vadd.s32 %v607, 104
    %609 = vset.pattern.permute.xlu0 %v608
    %610 = vperm.xlu0 %609, %v527
    %v611 = vpop.permute.xlu0 %610
    %v612 = vlaneseq
    %v613 = vshrl.u32 %v612, 7
    %v614 = vadd.s32 %v613, 112
    %615 = vset.pattern.permute.xlu0 %v614
    %616 = vperm.xlu0 %615, %v527
    %v617 = vpop.permute.xlu0 %616
    %v618 = vlaneseq
    %v619 = vshrl.u32 %v618, 7
    %v620 = vadd.s32 %v619, 120
    %621 = vset.pattern.permute.xlu0 %v620
    %622 = vperm.xlu0 %621, %v527
    %v623 = vpop.permute.xlu0 %622
    %v624 = vperm.slane %v40, 6
    %v625 = vlaneseq
    %v626 = vshrl.u32 %v625, 7
    %628 = vset.pattern.permute.xlu0 %v626
    %629 = vperm.xlu0 %628, %v624
    %v630 = vpop.permute.xlu0 %629
    %v631 = vlaneseq
    %v632 = vshrl.u32 %v631, 7
    %v633 = vadd.s32 %v632, 8
    %634 = vset.pattern.permute.xlu0 %v633
    %635 = vperm.xlu0 %634, %v624
    %v636 = vpop.permute.xlu0 %635
    %v637 = vlaneseq
    %v638 = vshrl.u32 %v637, 7
    %v639 = vadd.s32 %v638, 16
    %640 = vset.pattern.permute.xlu0 %v639
    %641 = vperm.xlu0 %640, %v624
    %v642 = vpop.permute.xlu0 %641
    %v643 = vlaneseq
    %v644 = vshrl.u32 %v643, 7
    %v645 = vadd.s32 %v644, 24
    %646 = vset.pattern.permute.xlu0 %v645
    %647 = vperm.xlu0 %646, %v624
    %v648 = vpop.permute.xlu0 %647
    %v649 = vlaneseq
    %v650 = vshrl.u32 %v649, 7
    %v651 = vadd.s32 %v650, 32
    %652 = vset.pattern.permute.xlu0 %v651
    %653 = vperm.xlu0 %652, %v624
    %v654 = vpop.permute.xlu0 %653
    %v655 = vlaneseq
    %v656 = vshrl.u32 %v655, 7
    %v657 = vadd.s32 %v656, 40
    %658 = vset.pattern.permute.xlu0 %v657
    %659 = vperm.xlu0 %658, %v624
    %v660 = vpop.permute.xlu0 %659
    %v661 = vlaneseq
    %v662 = vshrl.u32 %v661, 7
    %v663 = vadd.s32 %v662, 48
    %664 = vset.pattern.permute.xlu0 %v663
    %665 = vperm.xlu0 %664, %v624
    %v666 = vpop.permute.xlu0 %665
    %v667 = vlaneseq
    %v668 = vshrl.u32 %v667, 7
    %v669 = vadd.s32 %v668, 56
    %670 = vset.pattern.permute.xlu0 %v669
    %671 = vperm.xlu0 %670, %v624
    %v672 = vpop.permute.xlu0 %671
    %v673 = vlaneseq
    %v674 = vshrl.u32 %v673, 7
    %v675 = vadd.s32 %v674, 64
    %676 = vset.pattern.permute.xlu0 %v675
    %677 = vperm.xlu0 %676, %v624
    %v678 = vpop.permute.xlu0 %677
    %v679 = vlaneseq
    %v680 = vshrl.u32 %v679, 7
    %v681 = vadd.s32 %v680, 72
    %682 = vset.pattern.permute.xlu0 %v681
    %683 = vperm.xlu0 %682, %v624
    %v684 = vpop.permute.xlu0 %683
    %v685 = vlaneseq
    %v686 = vshrl.u32 %v685, 7
    %v687 = vadd.s32 %v686, 80
    %688 = vset.pattern.permute.xlu0 %v687
    %689 = vperm.xlu0 %688, %v624
    %v690 = vpop.permute.xlu0 %689
    %v691 = vlaneseq
    %v692 = vshrl.u32 %v691, 7
    %v693 = vadd.s32 %v692, 88
    %694 = vset.pattern.permute.xlu0 %v693
    %695 = vperm.xlu0 %694, %v624
    %v696 = vpop.permute.xlu0 %695
    %v697 = vlaneseq
    %v698 = vshrl.u32 %v697, 7
    %v699 = vadd.s32 %v698, 96
    %700 = vset.pattern.permute.xlu0 %v699
    %701 = vperm.xlu0 %700, %v624
    %v702 = vpop.permute.xlu0 %701
    %v703 = vlaneseq
    %v704 = vshrl.u32 %v703, 7
    %v705 = vadd.s32 %v704, 104
    %706 = vset.pattern.permute.xlu0 %v705
    %707 = vperm.xlu0 %706, %v624
    %v708 = vpop.permute.xlu0 %707
    %v709 = vlaneseq
    %v710 = vshrl.u32 %v709, 7
    %v711 = vadd.s32 %v710, 112
    %712 = vset.pattern.permute.xlu0 %v711
    %713 = vperm.xlu0 %712, %v624
    %v714 = vpop.permute.xlu0 %713
    %v715 = vlaneseq
    %v716 = vshrl.u32 %v715, 7
    %v717 = vadd.s32 %v716, 120
    %718 = vset.pattern.permute.xlu0 %v717
    %719 = vperm.xlu0 %718, %v624
    %v720 = vpop.permute.xlu0 %719
    %v721 = vperm.slane %v40, 7
    %v722 = vlaneseq
    %v723 = vshrl.u32 %v722, 7
    %725 = vset.pattern.permute.xlu0 %v723
    %726 = vperm.xlu0 %725, %v721
    %v727 = vpop.permute.xlu0 %726
    %v728 = vlaneseq
    %v729 = vshrl.u32 %v728, 7
    %v730 = vadd.s32 %v729, 8
    %731 = vset.pattern.permute.xlu0 %v730
    %732 = vperm.xlu0 %731, %v721
    %v733 = vpop.permute.xlu0 %732
    %v734 = vlaneseq
    %v735 = vshrl.u32 %v734, 7
    %v736 = vadd.s32 %v735, 16
    %737 = vset.pattern.permute.xlu0 %v736
    %738 = vperm.xlu0 %737, %v721
    %v739 = vpop.permute.xlu0 %738
    %v740 = vlaneseq
    %v741 = vshrl.u32 %v740, 7
    %v742 = vadd.s32 %v741, 24
    %743 = vset.pattern.permute.xlu0 %v742
    %744 = vperm.xlu0 %743, %v721
    %v745 = vpop.permute.xlu0 %744
    %v746 = vlaneseq
    %v747 = vshrl.u32 %v746, 7
    %v748 = vadd.s32 %v747, 32
    %749 = vset.pattern.permute.xlu0 %v748
    %750 = vperm.xlu0 %749, %v721
    %v751 = vpop.permute.xlu0 %750
    %v752 = vlaneseq
    %v753 = vshrl.u32 %v752, 7
    %v754 = vadd.s32 %v753, 40
    %755 = vset.pattern.permute.xlu0 %v754
    %756 = vperm.xlu0 %755, %v721
    %v757 = vpop.permute.xlu0 %756
    %v758 = vlaneseq
    %v759 = vshrl.u32 %v758, 7
    %v760 = vadd.s32 %v759, 48
    %761 = vset.pattern.permute.xlu0 %v760
    %762 = vperm.xlu0 %761, %v721
    %v763 = vpop.permute.xlu0 %762
    %v764 = vlaneseq
    %v765 = vshrl.u32 %v764, 7
    %v766 = vadd.s32 %v765, 56
    %767 = vset.pattern.permute.xlu0 %v766
    %768 = vperm.xlu0 %767, %v721
    %v769 = vpop.permute.xlu0 %768
    %v770 = vlaneseq
    %v771 = vshrl.u32 %v770, 7
    %v772 = vadd.s32 %v771, 64
    %773 = vset.pattern.permute.xlu0 %v772
    %774 = vperm.xlu0 %773, %v721
    %v775 = vpop.permute.xlu0 %774
    %v776 = vlaneseq
    %v777 = vshrl.u32 %v776, 7
    %v778 = vadd.s32 %v777, 72
    %779 = vset.pattern.permute.xlu0 %v778
    %780 = vperm.xlu0 %779, %v721
    %v781 = vpop.permute.xlu0 %780
    %v782 = vlaneseq
    %v783 = vshrl.u32 %v782, 7
    %v784 = vadd.s32 %v783, 80
    %785 = vset.pattern.permute.xlu0 %v784
    %786 = vperm.xlu0 %785, %v721
    %v787 = vpop.permute.xlu0 %786
    %v788 = vlaneseq
    %v789 = vshrl.u32 %v788, 7
    %v790 = vadd.s32 %v789, 88
    %791 = vset.pattern.permute.xlu0 %v790
    %792 = vperm.xlu0 %791, %v721
    %v793 = vpop.permute.xlu0 %792
    %v794 = vlaneseq
    %v795 = vshrl.u32 %v794, 7
    %v796 = vadd.s32 %v795, 96
    %797 = vset.pattern.permute.xlu0 %v796
    %798 = vperm.xlu0 %797, %v721
    %v799 = vpop.permute.xlu0 %798
    %v800 = vlaneseq
    %v801 = vshrl.u32 %v800, 7
    %v802 = vadd.s32 %v801, 104
    %803 = vset.pattern.permute.xlu0 %v802
    %804 = vperm.xlu0 %803, %v721
    %v805 = vpop.permute.xlu0 %804
    %v806 = vlaneseq
    %v807 = vshrl.u32 %v806, 7
    %v808 = vadd.s32 %v807, 112
    %809 = vset.pattern.permute.xlu0 %v808
    %810 = vperm.xlu0 %809, %v721
    %v811 = vpop.permute.xlu0 %810
    %v812 = vlaneseq
    %v813 = vshrl.u32 %v812, 7
    %v814 = vadd.s32 %v813, 120
    %815 = vset.pattern.permute.xlu0 %v814
    %816 = vperm.xlu0 %815, %v721
    %v817 = vpop.permute.xlu0 %816
    %v818 = vperm.slane %v41, 0
    %v819 = vlaneseq
    %v820 = vshrl.u32 %v819, 7
    %822 = vset.pattern.permute.xlu0 %v820
    %823 = vperm.xlu0 %822, %v818
    %v824 = vpop.permute.xlu0 %823
    %v825 = vlaneseq
    %v826 = vshrl.u32 %v825, 7
    %v827 = vadd.s32 %v826, 8
    %828 = vset.pattern.permute.xlu0 %v827
    %829 = vperm.xlu0 %828, %v818
    %v830 = vpop.permute.xlu0 %829
    %v831 = vlaneseq
    %v832 = vshrl.u32 %v831, 7
    %v833 = vadd.s32 %v832, 16
    %834 = vset.pattern.permute.xlu0 %v833
    %835 = vperm.xlu0 %834, %v818
    %v836 = vpop.permute.xlu0 %835
    %v837 = vlaneseq
    %v838 = vshrl.u32 %v837, 7
    %v839 = vadd.s32 %v838, 24
    %840 = vset.pattern.permute.xlu0 %v839
    %841 = vperm.xlu0 %840, %v818
    %v842 = vpop.permute.xlu0 %841
    %v843 = vlaneseq
    %v844 = vshrl.u32 %v843, 7
    %v845 = vadd.s32 %v844, 32
    %846 = vset.pattern.permute.xlu0 %v845
    %847 = vperm.xlu0 %846, %v818
    %v848 = vpop.permute.xlu0 %847
    %v849 = vlaneseq
    %v850 = vshrl.u32 %v849, 7
    %v851 = vadd.s32 %v850, 40
    %852 = vset.pattern.permute.xlu0 %v851
    %853 = vperm.xlu0 %852, %v818
    %v854 = vpop.permute.xlu0 %853
    %v855 = vlaneseq
    %v856 = vshrl.u32 %v855, 7
    %v857 = vadd.s32 %v856, 48
    %858 = vset.pattern.permute.xlu0 %v857
    %859 = vperm.xlu0 %858, %v818
    %v860 = vpop.permute.xlu0 %859
    %v861 = vlaneseq
    %v862 = vshrl.u32 %v861, 7
    %v863 = vadd.s32 %v862, 56
    %864 = vset.pattern.permute.xlu0 %v863
    %865 = vperm.xlu0 %864, %v818
    %v866 = vpop.permute.xlu0 %865
    %v867 = vlaneseq
    %v868 = vshrl.u32 %v867, 7
    %v869 = vadd.s32 %v868, 64
    %870 = vset.pattern.permute.xlu0 %v869
    %871 = vperm.xlu0 %870, %v818
    %v872 = vpop.permute.xlu0 %871
    %v873 = vlaneseq
    %v874 = vshrl.u32 %v873, 7
    %v875 = vadd.s32 %v874, 72
    %876 = vset.pattern.permute.xlu0 %v875
    %877 = vperm.xlu0 %876, %v818
    %v878 = vpop.permute.xlu0 %877
    %v879 = vlaneseq
    %v880 = vshrl.u32 %v879, 7
    %v881 = vadd.s32 %v880, 80
    %882 = vset.pattern.permute.xlu0 %v881
    %883 = vperm.xlu0 %882, %v818
    %v884 = vpop.permute.xlu0 %883
    %v885 = vlaneseq
    %v886 = vshrl.u32 %v885, 7
    %v887 = vadd.s32 %v886, 88
    %888 = vset.pattern.permute.xlu0 %v887
    %889 = vperm.xlu0 %888, %v818
    %v890 = vpop.permute.xlu0 %889
    %v891 = vlaneseq
    %v892 = vshrl.u32 %v891, 7
    %v893 = vadd.s32 %v892, 96
    %894 = vset.pattern.permute.xlu0 %v893
    %895 = vperm.xlu0 %894, %v818
    %v896 = vpop.permute.xlu0 %895
    %v897 = vlaneseq
    %v898 = vshrl.u32 %v897, 7
    %v899 = vadd.s32 %v898, 104
    %900 = vset.pattern.permute.xlu0 %v899
    %901 = vperm.xlu0 %900, %v818
    %v902 = vpop.permute.xlu0 %901
    %v903 = vlaneseq
    %v904 = vshrl.u32 %v903, 7
    %v905 = vadd.s32 %v904, 112
    %906 = vset.pattern.permute.xlu0 %v905
    %907 = vperm.xlu0 %906, %v818
    %v908 = vpop.permute.xlu0 %907
    %v909 = vlaneseq
    %v910 = vshrl.u32 %v909, 7
    %v911 = vadd.s32 %v910, 120
    %912 = vset.pattern.permute.xlu0 %v911
    %913 = vperm.xlu0 %912, %v818
    %v914 = vpop.permute.xlu0 %913
    %v915 = vperm.slane %v41, 1
    %v916 = vlaneseq
    %v917 = vshrl.u32 %v916, 7
    %919 = vset.pattern.permute.xlu0 %v917
    %920 = vperm.xlu0 %919, %v915
    %v921 = vpop.permute.xlu0 %920
    %v922 = vlaneseq
    %v923 = vshrl.u32 %v922, 7
    %v924 = vadd.s32 %v923, 8
    %925 = vset.pattern.permute.xlu0 %v924
    %926 = vperm.xlu0 %925, %v915
    %v927 = vpop.permute.xlu0 %926
    %v928 = vlaneseq
    %v929 = vshrl.u32 %v928, 7
    %v930 = vadd.s32 %v929, 16
    %931 = vset.pattern.permute.xlu0 %v930
    %932 = vperm.xlu0 %931, %v915
    %v933 = vpop.permute.xlu0 %932
    %v934 = vlaneseq
    %v935 = vshrl.u32 %v934, 7
    %v936 = vadd.s32 %v935, 24
    %937 = vset.pattern.permute.xlu0 %v936
    %938 = vperm.xlu0 %937, %v915
    %v939 = vpop.permute.xlu0 %938
    %v940 = vlaneseq
    %v941 = vshrl.u32 %v940, 7
    %v942 = vadd.s32 %v941, 32
    %943 = vset.pattern.permute.xlu0 %v942
    %944 = vperm.xlu0 %943, %v915
    %v945 = vpop.permute.xlu0 %944
    %v946 = vlaneseq
    %v947 = vshrl.u32 %v946, 7
    %v948 = vadd.s32 %v947, 40
    %949 = vset.pattern.permute.xlu0 %v948
    %950 = vperm.xlu0 %949, %v915
    %v951 = vpop.permute.xlu0 %950
    %v952 = vlaneseq
    %v953 = vshrl.u32 %v952, 7
    %v954 = vadd.s32 %v953, 48
    %955 = vset.pattern.permute.xlu0 %v954
    %956 = vperm.xlu0 %955, %v915
    %v957 = vpop.permute.xlu0 %956
    %v958 = vlaneseq
    %v959 = vshrl.u32 %v958, 7
    %v960 = vadd.s32 %v959, 56
    %961 = vset.pattern.permute.xlu0 %v960
    %962 = vperm.xlu0 %961, %v915
    %v963 = vpop.permute.xlu0 %962
    %v964 = vlaneseq
    %v965 = vshrl.u32 %v964, 7
    %v966 = vadd.s32 %v965, 64
    %967 = vset.pattern.permute.xlu0 %v966
    %968 = vperm.xlu0 %967, %v915
    %v969 = vpop.permute.xlu0 %968
    %v970 = vlaneseq
    %v971 = vshrl.u32 %v970, 7
    %v972 = vadd.s32 %v971, 72
    %973 = vset.pattern.permute.xlu0 %v972
    %974 = vperm.xlu0 %973, %v915
    %v975 = vpop.permute.xlu0 %974
    %v976 = vlaneseq
    %v977 = vshrl.u32 %v976, 7
    %v978 = vadd.s32 %v977, 80
    %979 = vset.pattern.permute.xlu0 %v978
    %980 = vperm.xlu0 %979, %v915
    %v981 = vpop.permute.xlu0 %980
    %v982 = vlaneseq
    %v983 = vshrl.u32 %v982, 7
    %v984 = vadd.s32 %v983, 88
    %985 = vset.pattern.permute.xlu0 %v984
    %986 = vperm.xlu0 %985, %v915
    %v987 = vpop.permute.xlu0 %986
    %v988 = vlaneseq
    %v989 = vshrl.u32 %v988, 7
    %v990 = vadd.s32 %v989, 96
    %991 = vset.pattern.permute.xlu0 %v990
    %992 = vperm.xlu0 %991, %v915
    %v993 = vpop.permute.xlu0 %992
    %v994 = vlaneseq
    %v995 = vshrl.u32 %v994, 7
    %v996 = vadd.s32 %v995, 104
    %997 = vset.pattern.permute.xlu0 %v996
    %998 = vperm.xlu0 %997, %v915
    %v999 = vpop.permute.xlu0 %998
    %v1000 = vlaneseq
    %v1001 = vshrl.u32 %v1000, 7
    %v1002 = vadd.s32 %v1001, 112
    %1003 = vset.pattern.permute.xlu0 %v1002
    %1004 = vperm.xlu0 %1003, %v915
    %v1005 = vpop.permute.xlu0 %1004
    %v1006 = vlaneseq
    %v1007 = vshrl.u32 %v1006, 7
    %v1008 = vadd.s32 %v1007, 120
    %1009 = vset.pattern.permute.xlu0 %v1008
    %1010 = vperm.xlu0 %1009, %v915
    %v1011 = vpop.permute.xlu0 %1010
    %v1012 = vperm.slane %v41, 2
    %v1013 = vlaneseq
    %v1014 = vshrl.u32 %v1013, 7
    %1016 = vset.pattern.permute.xlu0 %v1014
    %1017 = vperm.xlu0 %1016, %v1012
    %v1018 = vpop.permute.xlu0 %1017
    %v1019 = vlaneseq
    %v1020 = vshrl.u32 %v1019, 7
    %v1021 = vadd.s32 %v1020, 8
    %1022 = vset.pattern.permute.xlu0 %v1021
    %1023 = vperm.xlu0 %1022, %v1012
    %v1024 = vpop.permute.xlu0 %1023
    %v1025 = vlaneseq
    %v1026 = vshrl.u32 %v1025, 7
    %v1027 = vadd.s32 %v1026, 16
    %1028 = vset.pattern.permute.xlu0 %v1027
    %1029 = vperm.xlu0 %1028, %v1012
    %v1030 = vpop.permute.xlu0 %1029
    %v1031 = vlaneseq
    %v1032 = vshrl.u32 %v1031, 7
    %v1033 = vadd.s32 %v1032, 24
    %1034 = vset.pattern.permute.xlu0 %v1033
    %1035 = vperm.xlu0 %1034, %v1012
    %v1036 = vpop.permute.xlu0 %1035
    %v1037 = vlaneseq
    %v1038 = vshrl.u32 %v1037, 7
    %v1039 = vadd.s32 %v1038, 32
    %1040 = vset.pattern.permute.xlu0 %v1039
    %1041 = vperm.xlu0 %1040, %v1012
    %v1042 = vpop.permute.xlu0 %1041
    %v1043 = vlaneseq
    %v1044 = vshrl.u32 %v1043, 7
    %v1045 = vadd.s32 %v1044, 40
    %1046 = vset.pattern.permute.xlu0 %v1045
    %1047 = vperm.xlu0 %1046, %v1012
    %v1048 = vpop.permute.xlu0 %1047
    %v1049 = vlaneseq
    %v1050 = vshrl.u32 %v1049, 7
    %v1051 = vadd.s32 %v1050, 48
    %1052 = vset.pattern.permute.xlu0 %v1051
    %1053 = vperm.xlu0 %1052, %v1012
    %v1054 = vpop.permute.xlu0 %1053
    %v1055 = vlaneseq
    %v1056 = vshrl.u32 %v1055, 7
    %v1057 = vadd.s32 %v1056, 56
    %1058 = vset.pattern.permute.xlu0 %v1057
    %1059 = vperm.xlu0 %1058, %v1012
    %v1060 = vpop.permute.xlu0 %1059
    %v1061 = vlaneseq
    %v1062 = vshrl.u32 %v1061, 7
    %v1063 = vadd.s32 %v1062, 64
    %1064 = vset.pattern.permute.xlu0 %v1063
    %1065 = vperm.xlu0 %1064, %v1012
    %v1066 = vpop.permute.xlu0 %1065
    %v1067 = vlaneseq
    %v1068 = vshrl.u32 %v1067, 7
    %v1069 = vadd.s32 %v1068, 72
    %1070 = vset.pattern.permute.xlu0 %v1069
    %1071 = vperm.xlu0 %1070, %v1012
    %v1072 = vpop.permute.xlu0 %1071
    %v1073 = vlaneseq
    %v1074 = vshrl.u32 %v1073, 7
    %v1075 = vadd.s32 %v1074, 80
    %1076 = vset.pattern.permute.xlu0 %v1075
    %1077 = vperm.xlu0 %1076, %v1012
    %v1078 = vpop.permute.xlu0 %1077
    %v1079 = vlaneseq
    %v1080 = vshrl.u32 %v1079, 7
    %v1081 = vadd.s32 %v1080, 88
    %1082 = vset.pattern.permute.xlu0 %v1081
    %1083 = vperm.xlu0 %1082, %v1012
    %v1084 = vpop.permute.xlu0 %1083
    %v1085 = vlaneseq
    %v1086 = vshrl.u32 %v1085, 7
    %v1087 = vadd.s32 %v1086, 96
    %1088 = vset.pattern.permute.xlu0 %v1087
    %1089 = vperm.xlu0 %1088, %v1012
    %v1090 = vpop.permute.xlu0 %1089
    %v1091 = vlaneseq
    %v1092 = vshrl.u32 %v1091, 7
    %v1093 = vadd.s32 %v1092, 104
    %1094 = vset.pattern.permute.xlu0 %v1093
    %1095 = vperm.xlu0 %1094, %v1012
    %v1096 = vpop.permute.xlu0 %1095
    %v1097 = vlaneseq
    %v1098 = vshrl.u32 %v1097, 7
    %v1099 = vadd.s32 %v1098, 112
    %1100 = vset.pattern.permute.xlu0 %v1099
    %1101 = vperm.xlu0 %1100, %v1012
    %v1102 = vpop.permute.xlu0 %1101
    %v1103 = vlaneseq
    %v1104 = vshrl.u32 %v1103, 7
    %v1105 = vadd.s32 %v1104, 120
    %1106 = vset.pattern.permute.xlu0 %v1105
    %1107 = vperm.xlu0 %1106, %v1012
    %v1108 = vpop.permute.xlu0 %1107
    %v1109 = vperm.slane %v41, 3
    %v1110 = vlaneseq
    %v1111 = vshrl.u32 %v1110, 7
    %1113 = vset.pattern.permute.xlu0 %v1111
    %1114 = vperm.xlu0 %1113, %v1109
    %v1115 = vpop.permute.xlu0 %1114
    %v1116 = vlaneseq
    %v1117 = vshrl.u32 %v1116, 7
    %v1118 = vadd.s32 %v1117, 8
    %1119 = vset.pattern.permute.xlu0 %v1118
    %1120 = vperm.xlu0 %1119, %v1109
    %v1121 = vpop.permute.xlu0 %1120
    %v1122 = vlaneseq
    %v1123 = vshrl.u32 %v1122, 7
    %v1124 = vadd.s32 %v1123, 16
    %1125 = vset.pattern.permute.xlu0 %v1124
    %1126 = vperm.xlu0 %1125, %v1109
    %v1127 = vpop.permute.xlu0 %1126
    %v1128 = vlaneseq
    %v1129 = vshrl.u32 %v1128, 7
    %v1130 = vadd.s32 %v1129, 24
    %1131 = vset.pattern.permute.xlu0 %v1130
    %1132 = vperm.xlu0 %1131, %v1109
    %v1133 = vpop.permute.xlu0 %1132
    %v1134 = vlaneseq
    %v1135 = vshrl.u32 %v1134, 7
    %v1136 = vadd.s32 %v1135, 32
    %1137 = vset.pattern.permute.xlu0 %v1136
    %1138 = vperm.xlu0 %1137, %v1109
    %v1139 = vpop.permute.xlu0 %1138
    %v1140 = vlaneseq
    %v1141 = vshrl.u32 %v1140, 7
    %v1142 = vadd.s32 %v1141, 40
    %1143 = vset.pattern.permute.xlu0 %v1142
    %1144 = vperm.xlu0 %1143, %v1109
    %v1145 = vpop.permute.xlu0 %1144
    %v1146 = vlaneseq
    %v1147 = vshrl.u32 %v1146, 7
    %v1148 = vadd.s32 %v1147, 48
    %1149 = vset.pattern.permute.xlu0 %v1148
    %1150 = vperm.xlu0 %1149, %v1109
    %v1151 = vpop.permute.xlu0 %1150
    %v1152 = vlaneseq
    %v1153 = vshrl.u32 %v1152, 7
    %v1154 = vadd.s32 %v1153, 56
    %1155 = vset.pattern.permute.xlu0 %v1154
    %1156 = vperm.xlu0 %1155, %v1109
    %v1157 = vpop.permute.xlu0 %1156
    %v1158 = vlaneseq
    %v1159 = vshrl.u32 %v1158, 7
    %v1160 = vadd.s32 %v1159, 64
    %1161 = vset.pattern.permute.xlu0 %v1160
    %1162 = vperm.xlu0 %1161, %v1109
    %v1163 = vpop.permute.xlu0 %1162
    %v1164 = vlaneseq
    %v1165 = vshrl.u32 %v1164, 7
    %v1166 = vadd.s32 %v1165, 72
    %1167 = vset.pattern.permute.xlu0 %v1166
    %1168 = vperm.xlu0 %1167, %v1109
    %v1169 = vpop.permute.xlu0 %1168
    %v1170 = vlaneseq
    %v1171 = vshrl.u32 %v1170, 7
    %v1172 = vadd.s32 %v1171, 80
    %1173 = vset.pattern.permute.xlu0 %v1172
    %1174 = vperm.xlu0 %1173, %v1109
    %v1175 = vpop.permute.xlu0 %1174
    %v1176 = vlaneseq
    %v1177 = vshrl.u32 %v1176, 7
    %v1178 = vadd.s32 %v1177, 88
    %1179 = vset.pattern.permute.xlu0 %v1178
    %1180 = vperm.xlu0 %1179, %v1109
    %v1181 = vpop.permute.xlu0 %1180
    %v1182 = vlaneseq
    %v1183 = vshrl.u32 %v1182, 7
    %v1184 = vadd.s32 %v1183, 96
    %1185 = vset.pattern.permute.xlu0 %v1184
    %1186 = vperm.xlu0 %1185, %v1109
    %v1187 = vpop.permute.xlu0 %1186
    %v1188 = vlaneseq
    %v1189 = vshrl.u32 %v1188, 7
    %v1190 = vadd.s32 %v1189, 104
    %1191 = vset.pattern.permute.xlu0 %v1190
    %1192 = vperm.xlu0 %1191, %v1109
    %v1193 = vpop.permute.xlu0 %1192
    %v1194 = vlaneseq
    %v1195 = vshrl.u32 %v1194, 7
    %v1196 = vadd.s32 %v1195, 112
    %1197 = vset.pattern.permute.xlu0 %v1196
    %1198 = vperm.xlu0 %1197, %v1109
    %v1199 = vpop.permute.xlu0 %1198
    %v1200 = vlaneseq
    %v1201 = vshrl.u32 %v1200, 7
    %v1202 = vadd.s32 %v1201, 120
    %1203 = vset.pattern.permute.xlu0 %v1202
    %1204 = vperm.xlu0 %1203, %v1109
    %v1205 = vpop.permute.xlu0 %1204
    %v1206 = vperm.slane %v41, 4
    %v1207 = vlaneseq
    %v1208 = vshrl.u32 %v1207, 7
    %1210 = vset.pattern.permute.xlu0 %v1208
    %1211 = vperm.xlu0 %1210, %v1206
    %v1212 = vpop.permute.xlu0 %1211
    %v1213 = vlaneseq
    %v1214 = vshrl.u32 %v1213, 7
    %v1215 = vadd.s32 %v1214, 8
    %1216 = vset.pattern.permute.xlu0 %v1215
    %1217 = vperm.xlu0 %1216, %v1206
    %v1218 = vpop.permute.xlu0 %1217
    %v1219 = vlaneseq
    %v1220 = vshrl.u32 %v1219, 7
    %v1221 = vadd.s32 %v1220, 16
    %1222 = vset.pattern.permute.xlu0 %v1221
    %1223 = vperm.xlu0 %1222, %v1206
    %v1224 = vpop.permute.xlu0 %1223
    %v1225 = vlaneseq
    %v1226 = vshrl.u32 %v1225, 7
    %v1227 = vadd.s32 %v1226, 24
    %1228 = vset.pattern.permute.xlu0 %v1227
    %1229 = vperm.xlu0 %1228, %v1206
    %v1230 = vpop.permute.xlu0 %1229
    %v1231 = vlaneseq
    %v1232 = vshrl.u32 %v1231, 7
    %v1233 = vadd.s32 %v1232, 32
    %1234 = vset.pattern.permute.xlu0 %v1233
    %1235 = vperm.xlu0 %1234, %v1206
    %v1236 = vpop.permute.xlu0 %1235
    %v1237 = vlaneseq
    %v1238 = vshrl.u32 %v1237, 7
    %v1239 = vadd.s32 %v1238, 40
    %1240 = vset.pattern.permute.xlu0 %v1239
    %1241 = vperm.xlu0 %1240, %v1206
    %v1242 = vpop.permute.xlu0 %1241
    %v1243 = vlaneseq
    %v1244 = vshrl.u32 %v1243, 7
    %v1245 = vadd.s32 %v1244, 48
    %1246 = vset.pattern.permute.xlu0 %v1245
    %1247 = vperm.xlu0 %1246, %v1206
    %v1248 = vpop.permute.xlu0 %1247
    %v1249 = vlaneseq
    %v1250 = vshrl.u32 %v1249, 7
    %v1251 = vadd.s32 %v1250, 56
    %1252 = vset.pattern.permute.xlu0 %v1251
    %1253 = vperm.xlu0 %1252, %v1206
    %v1254 = vpop.permute.xlu0 %1253
    %v1255 = vlaneseq
    %v1256 = vshrl.u32 %v1255, 7
    %v1257 = vadd.s32 %v1256, 64
    %1258 = vset.pattern.permute.xlu0 %v1257
    %1259 = vperm.xlu0 %1258, %v1206
    %v1260 = vpop.permute.xlu0 %1259
    %v1261 = vlaneseq
    %v1262 = vshrl.u32 %v1261, 7
    %v1263 = vadd.s32 %v1262, 72
    %1264 = vset.pattern.permute.xlu0 %v1263
    %1265 = vperm.xlu0 %1264, %v1206
    %v1266 = vpop.permute.xlu0 %1265
    %v1267 = vlaneseq
    %v1268 = vshrl.u32 %v1267, 7
    %v1269 = vadd.s32 %v1268, 80
    %1270 = vset.pattern.permute.xlu0 %v1269
    %1271 = vperm.xlu0 %1270, %v1206
    %v1272 = vpop.permute.xlu0 %1271
    %v1273 = vlaneseq
    %v1274 = vshrl.u32 %v1273, 7
    %v1275 = vadd.s32 %v1274, 88
    %1276 = vset.pattern.permute.xlu0 %v1275
    %1277 = vperm.xlu0 %1276, %v1206
    %v1278 = vpop.permute.xlu0 %1277
    %v1279 = vlaneseq
    %v1280 = vshrl.u32 %v1279, 7
    %v1281 = vadd.s32 %v1280, 96
    %1282 = vset.pattern.permute.xlu0 %v1281
    %1283 = vperm.xlu0 %1282, %v1206
    %v1284 = vpop.permute.xlu0 %1283
    %v1285 = vlaneseq
    %v1286 = vshrl.u32 %v1285, 7
    %v1287 = vadd.s32 %v1286, 104
    %1288 = vset.pattern.permute.xlu0 %v1287
    %1289 = vperm.xlu0 %1288, %v1206
    %v1290 = vpop.permute.xlu0 %1289
    %v1291 = vlaneseq
    %v1292 = vshrl.u32 %v1291, 7
    %v1293 = vadd.s32 %v1292, 112
    %1294 = vset.pattern.permute.xlu0 %v1293
    %1295 = vperm.xlu0 %1294, %v1206
    %v1296 = vpop.permute.xlu0 %1295
    %v1297 = vlaneseq
    %v1298 = vshrl.u32 %v1297, 7
    %v1299 = vadd.s32 %v1298, 120
    %1300 = vset.pattern.permute.xlu0 %v1299
    %1301 = vperm.xlu0 %1300, %v1206
    %v1302 = vpop.permute.xlu0 %1301
    %v1303 = vperm.slane %v41, 5
    %v1304 = vlaneseq
    %v1305 = vshrl.u32 %v1304, 7
    %1307 = vset.pattern.permute.xlu0 %v1305
    %1308 = vperm.xlu0 %1307, %v1303
    %v1309 = vpop.permute.xlu0 %1308
    %v1310 = vlaneseq
    %v1311 = vshrl.u32 %v1310, 7
    %v1312 = vadd.s32 %v1311, 8
    %1313 = vset.pattern.permute.xlu0 %v1312
    %1314 = vperm.xlu0 %1313, %v1303
    %v1315 = vpop.permute.xlu0 %1314
    %v1316 = vlaneseq
    %v1317 = vshrl.u32 %v1316, 7
    %v1318 = vadd.s32 %v1317, 16
    %1319 = vset.pattern.permute.xlu0 %v1318
    %1320 = vperm.xlu0 %1319, %v1303
    %v1321 = vpop.permute.xlu0 %1320
    %v1322 = vlaneseq
    %v1323 = vshrl.u32 %v1322, 7
    %v1324 = vadd.s32 %v1323, 24
    %1325 = vset.pattern.permute.xlu0 %v1324
    %1326 = vperm.xlu0 %1325, %v1303
    %v1327 = vpop.permute.xlu0 %1326
    %v1328 = vlaneseq
    %v1329 = vshrl.u32 %v1328, 7
    %v1330 = vadd.s32 %v1329, 32
    %1331 = vset.pattern.permute.xlu0 %v1330
    %1332 = vperm.xlu0 %1331, %v1303
    %v1333 = vpop.permute.xlu0 %1332
    %v1334 = vlaneseq
    %v1335 = vshrl.u32 %v1334, 7
    %v1336 = vadd.s32 %v1335, 40
    %1337 = vset.pattern.permute.xlu0 %v1336
    %1338 = vperm.xlu0 %1337, %v1303
    %v1339 = vpop.permute.xlu0 %1338
    %v1340 = vlaneseq
    %v1341 = vshrl.u32 %v1340, 7
    %v1342 = vadd.s32 %v1341, 48
    %1343 = vset.pattern.permute.xlu0 %v1342
    %1344 = vperm.xlu0 %1343, %v1303
    %v1345 = vpop.permute.xlu0 %1344
    %v1346 = vlaneseq
    %v1347 = vshrl.u32 %v1346, 7
    %v1348 = vadd.s32 %v1347, 56
    %1349 = vset.pattern.permute.xlu0 %v1348
    %1350 = vperm.xlu0 %1349, %v1303
    %v1351 = vpop.permute.xlu0 %1350
    %v1352 = vlaneseq
    %v1353 = vshrl.u32 %v1352, 7
    %v1354 = vadd.s32 %v1353, 64
    %1355 = vset.pattern.permute.xlu0 %v1354
    %1356 = vperm.xlu0 %1355, %v1303
    %v1357 = vpop.permute.xlu0 %1356
    %v1358 = vlaneseq
    %v1359 = vshrl.u32 %v1358, 7
    %v1360 = vadd.s32 %v1359, 72
    %1361 = vset.pattern.permute.xlu0 %v1360
    %1362 = vperm.xlu0 %1361, %v1303
    %v1363 = vpop.permute.xlu0 %1362
    %v1364 = vlaneseq
    %v1365 = vshrl.u32 %v1364, 7
    %v1366 = vadd.s32 %v1365, 80
    %1367 = vset.pattern.permute.xlu0 %v1366
    %1368 = vperm.xlu0 %1367, %v1303
    %v1369 = vpop.permute.xlu0 %1368
    %v1370 = vlaneseq
    %v1371 = vshrl.u32 %v1370, 7
    %v1372 = vadd.s32 %v1371, 88
    %1373 = vset.pattern.permute.xlu0 %v1372
    %1374 = vperm.xlu0 %1373, %v1303
    %v1375 = vpop.permute.xlu0 %1374
    %v1376 = vlaneseq
    %v1377 = vshrl.u32 %v1376, 7
    %v1378 = vadd.s32 %v1377, 96
    %1379 = vset.pattern.permute.xlu0 %v1378
    %1380 = vperm.xlu0 %1379, %v1303
    %v1381 = vpop.permute.xlu0 %1380
    %v1382 = vlaneseq
    %v1383 = vshrl.u32 %v1382, 7
    %v1384 = vadd.s32 %v1383, 104
    %1385 = vset.pattern.permute.xlu0 %v1384
    %1386 = vperm.xlu0 %1385, %v1303
    %v1387 = vpop.permute.xlu0 %1386
    %v1388 = vlaneseq
    %v1389 = vshrl.u32 %v1388, 7
    %v1390 = vadd.s32 %v1389, 112
    %1391 = vset.pattern.permute.xlu0 %v1390
    %1392 = vperm.xlu0 %1391, %v1303
    %v1393 = vpop.permute.xlu0 %1392
    %v1394 = vlaneseq
    %v1395 = vshrl.u32 %v1394, 7
    %v1396 = vadd.s32 %v1395, 120
    %1397 = vset.pattern.permute.xlu0 %v1396
    %1398 = vperm.xlu0 %1397, %v1303
    %v1399 = vpop.permute.xlu0 %1398
    %v1400 = vperm.slane %v41, 6
    %v1401 = vlaneseq
    %v1402 = vshrl.u32 %v1401, 7
    %1404 = vset.pattern.permute.xlu0 %v1402
    %1405 = vperm.xlu0 %1404, %v1400
    %v1406 = vpop.permute.xlu0 %1405
    %v1407 = vlaneseq
    %v1408 = vshrl.u32 %v1407, 7
    %v1409 = vadd.s32 %v1408, 8
    %1410 = vset.pattern.permute.xlu0 %v1409
    %1411 = vperm.xlu0 %1410, %v1400
    %v1412 = vpop.permute.xlu0 %1411
    %v1413 = vlaneseq
    %v1414 = vshrl.u32 %v1413, 7
    %v1415 = vadd.s32 %v1414, 16
    %1416 = vset.pattern.permute.xlu0 %v1415
    %1417 = vperm.xlu0 %1416, %v1400
    %v1418 = vpop.permute.xlu0 %1417
    %v1419 = vlaneseq
    %v1420 = vshrl.u32 %v1419, 7
    %v1421 = vadd.s32 %v1420, 24
    %1422 = vset.pattern.permute.xlu0 %v1421
    %1423 = vperm.xlu0 %1422, %v1400
    %v1424 = vpop.permute.xlu0 %1423
    %v1425 = vlaneseq
    %v1426 = vshrl.u32 %v1425, 7
    %v1427 = vadd.s32 %v1426, 32
    %1428 = vset.pattern.permute.xlu0 %v1427
    %1429 = vperm.xlu0 %1428, %v1400
    %v1430 = vpop.permute.xlu0 %1429
    %v1431 = vlaneseq
    %v1432 = vshrl.u32 %v1431, 7
    %v1433 = vadd.s32 %v1432, 40
    %1434 = vset.pattern.permute.xlu0 %v1433
    %1435 = vperm.xlu0 %1434, %v1400
    %v1436 = vpop.permute.xlu0 %1435
    %v1437 = vlaneseq
    %v1438 = vshrl.u32 %v1437, 7
    %v1439 = vadd.s32 %v1438, 48
    %1440 = vset.pattern.permute.xlu0 %v1439
    %1441 = vperm.xlu0 %1440, %v1400
    %v1442 = vpop.permute.xlu0 %1441
    %v1443 = vlaneseq
    %v1444 = vshrl.u32 %v1443, 7
    %v1445 = vadd.s32 %v1444, 56
    %1446 = vset.pattern.permute.xlu0 %v1445
    %1447 = vperm.xlu0 %1446, %v1400
    %v1448 = vpop.permute.xlu0 %1447
    %v1449 = vlaneseq
    %v1450 = vshrl.u32 %v1449, 7
    %v1451 = vadd.s32 %v1450, 64
    %1452 = vset.pattern.permute.xlu0 %v1451
    %1453 = vperm.xlu0 %1452, %v1400
    %v1454 = vpop.permute.xlu0 %1453
    %v1455 = vlaneseq
    %v1456 = vshrl.u32 %v1455, 7
    %v1457 = vadd.s32 %v1456, 72
    %1458 = vset.pattern.permute.xlu0 %v1457
    %1459 = vperm.xlu0 %1458, %v1400
    %v1460 = vpop.permute.xlu0 %1459
    %v1461 = vlaneseq
    %v1462 = vshrl.u32 %v1461, 7
    %v1463 = vadd.s32 %v1462, 80
    %1464 = vset.pattern.permute.xlu0 %v1463
    %1465 = vperm.xlu0 %1464, %v1400
    %v1466 = vpop.permute.xlu0 %1465
    %v1467 = vlaneseq
    %v1468 = vshrl.u32 %v1467, 7
    %v1469 = vadd.s32 %v1468, 88
    %1470 = vset.pattern.permute.xlu0 %v1469
    %1471 = vperm.xlu0 %1470, %v1400
    %v1472 = vpop.permute.xlu0 %1471
    %v1473 = vlaneseq
    %v1474 = vshrl.u32 %v1473, 7
    %v1475 = vadd.s32 %v1474, 96
    %1476 = vset.pattern.permute.xlu0 %v1475
    %1477 = vperm.xlu0 %1476, %v1400
    %v1478 = vpop.permute.xlu0 %1477
    %v1479 = vlaneseq
    %v1480 = vshrl.u32 %v1479, 7
    %v1481 = vadd.s32 %v1480, 104
    %1482 = vset.pattern.permute.xlu0 %v1481
    %1483 = vperm.xlu0 %1482, %v1400
    %v1484 = vpop.permute.xlu0 %1483
    %v1485 = vlaneseq
    %v1486 = vshrl.u32 %v1485, 7
    %v1487 = vadd.s32 %v1486, 112
    %1488 = vset.pattern.permute.xlu0 %v1487
    %1489 = vperm.xlu0 %1488, %v1400
    %v1490 = vpop.permute.xlu0 %1489
    %v1491 = vlaneseq
    %v1492 = vshrl.u32 %v1491, 7
    %v1493 = vadd.s32 %v1492, 120
    %1494 = vset.pattern.permute.xlu0 %v1493
    %1495 = vperm.xlu0 %1494, %v1400
    %v1496 = vpop.permute.xlu0 %1495
    %v1497 = vperm.slane %v41, 7
    %v1498 = vlaneseq
    %v1499 = vshrl.u32 %v1498, 7
    %1501 = vset.pattern.permute.xlu0 %v1499
    %1502 = vperm.xlu0 %1501, %v1497
    %v1503 = vpop.permute.xlu0 %1502
    %v1504 = vlaneseq
    %v1505 = vshrl.u32 %v1504, 7
    %v1506 = vadd.s32 %v1505, 8
    %1507 = vset.pattern.permute.xlu0 %v1506
    %1508 = vperm.xlu0 %1507, %v1497
    %v1509 = vpop.permute.xlu0 %1508
    %v1510 = vlaneseq
    %v1511 = vshrl.u32 %v1510, 7
    %v1512 = vadd.s32 %v1511, 16
    %1513 = vset.pattern.permute.xlu0 %v1512
    %1514 = vperm.xlu0 %1513, %v1497
    %v1515 = vpop.permute.xlu0 %1514
    %v1516 = vlaneseq
    %v1517 = vshrl.u32 %v1516, 7
    %v1518 = vadd.s32 %v1517, 24
    %1519 = vset.pattern.permute.xlu0 %v1518
    %1520 = vperm.xlu0 %1519, %v1497
    %v1521 = vpop.permute.xlu0 %1520
    %v1522 = vlaneseq
    %v1523 = vshrl.u32 %v1522, 7
    %v1524 = vadd.s32 %v1523, 32
    %1525 = vset.pattern.permute.xlu0 %v1524
    %1526 = vperm.xlu0 %1525, %v1497
    %v1527 = vpop.permute.xlu0 %1526
    %v1528 = vlaneseq
    %v1529 = vshrl.u32 %v1528, 7
    %v1530 = vadd.s32 %v1529, 40
    %1531 = vset.pattern.permute.xlu0 %v1530
    %1532 = vperm.xlu0 %1531, %v1497
    %v1533 = vpop.permute.xlu0 %1532
    %v1534 = vlaneseq
    %v1535 = vshrl.u32 %v1534, 7
    %v1536 = vadd.s32 %v1535, 48
    %1537 = vset.pattern.permute.xlu0 %v1536
    %1538 = vperm.xlu0 %1537, %v1497
    %v1539 = vpop.permute.xlu0 %1538
    %v1540 = vlaneseq
    %v1541 = vshrl.u32 %v1540, 7
    %v1542 = vadd.s32 %v1541, 56
    %1543 = vset.pattern.permute.xlu0 %v1542
    %1544 = vperm.xlu0 %1543, %v1497
    %v1545 = vpop.permute.xlu0 %1544
    %v1546 = vlaneseq
    %v1547 = vshrl.u32 %v1546, 7
    %v1548 = vadd.s32 %v1547, 64
    %1549 = vset.pattern.permute.xlu0 %v1548
    %1550 = vperm.xlu0 %1549, %v1497
    %v1551 = vpop.permute.xlu0 %1550
    %v1552 = vlaneseq
    %v1553 = vshrl.u32 %v1552, 7
    %v1554 = vadd.s32 %v1553, 72
    %1555 = vset.pattern.permute.xlu0 %v1554
    %1556 = vperm.xlu0 %1555, %v1497
    %v1557 = vpop.permute.xlu0 %1556
    %v1558 = vlaneseq
    %v1559 = vshrl.u32 %v1558, 7
    %v1560 = vadd.s32 %v1559, 80
    %1561 = vset.pattern.permute.xlu0 %v1560
    %1562 = vperm.xlu0 %1561, %v1497
    %v1563 = vpop.permute.xlu0 %1562
    %v1564 = vlaneseq
    %v1565 = vshrl.u32 %v1564, 7
    %v1566 = vadd.s32 %v1565, 88
    %1567 = vset.pattern.permute.xlu0 %v1566
    %1568 = vperm.xlu0 %1567, %v1497
    %v1569 = vpop.permute.xlu0 %1568
    %v1570 = vlaneseq
    %v1571 = vshrl.u32 %v1570, 7
    %v1572 = vadd.s32 %v1571, 96
    %1573 = vset.pattern.permute.xlu0 %v1572
    %1574 = vperm.xlu0 %1573, %v1497
    %v1575 = vpop.permute.xlu0 %1574
    %v1576 = vlaneseq
    %v1577 = vshrl.u32 %v1576, 7
    %v1578 = vadd.s32 %v1577, 104
    %1579 = vset.pattern.permute.xlu0 %v1578
    %1580 = vperm.xlu0 %1579, %v1497
    %v1581 = vpop.permute.xlu0 %1580
    %v1582 = vlaneseq
    %v1583 = vshrl.u32 %v1582, 7
    %v1584 = vadd.s32 %v1583, 112
    %1585 = vset.pattern.permute.xlu0 %v1584
    %1586 = vperm.xlu0 %1585, %v1497
    %v1587 = vpop.permute.xlu0 %1586
    %v1588 = vlaneseq
    %v1589 = vshrl.u32 %v1588, 7
    %v1590 = vadd.s32 %v1589, 120
    %1591 = vset.pattern.permute.xlu0 %v1590
    %1592 = vperm.xlu0 %1591, %v1497
    %v1593 = vpop.permute.xlu0 %1592
    %vm1594 = vcmask 7168
    %v1595 = vsel %vm1594, %v48, %v824
    %v1596 = vsel %vm1594, %v54, %v830
    %v1597 = vsel %vm1594, %v60, %v836
    %v1598 = vsel %vm1594, %v66, %v842
    %v1599 = vsel %vm1594, %v72, %v848
    %v1600 = vsel %vm1594, %v78, %v854
    %v1601 = vsel %vm1594, %v84, %v860
    %v1602 = vsel %vm1594, %v90, %v866
    %v1603 = vsel %vm1594, %v96, %v872
    %v1604 = vsel %vm1594, %v102, %v878
    %v1605 = vsel %vm1594, %v108, %v884
    %v1606 = vsel %vm1594, %v114, %v890
    %v1607 = vsel %vm1594, %v120, %v896
    %v1608 = vsel %vm1594, %v126, %v902
    %v1609 = vsel %vm1594, %v132, %v908
    %v1610 = vsel %vm1594, %v138, %v914
    %v1611 = vsel %vm1594, %v145, %v921
    %v1612 = vsel %vm1594, %v151, %v927
    %v1613 = vsel %vm1594, %v157, %v933
    %v1614 = vsel %vm1594, %v163, %v939
    %v1615 = vsel %vm1594, %v169, %v945
    %v1616 = vsel %vm1594, %v175, %v951
    %v1617 = vsel %vm1594, %v181, %v957
    %v1618 = vsel %vm1594, %v187, %v963
    %v1619 = vsel %vm1594, %v193, %v969
    %v1620 = vsel %vm1594, %v199, %v975
    %v1621 = vsel %vm1594, %v205, %v981
    %v1622 = vsel %vm1594, %v211, %v987
    %v1623 = vsel %vm1594, %v217, %v993
    %v1624 = vsel %vm1594, %v223, %v999
    %v1625 = vsel %vm1594, %v229, %v1005
    %v1626 = vsel %vm1594, %v235, %v1011
    %v1627 = vsel %vm1594, %v242, %v1018
    %v1628 = vsel %vm1594, %v248, %v1024
    %v1629 = vsel %vm1594, %v254, %v1030
    %v1630 = vsel %vm1594, %v260, %v1036
    %v1631 = vsel %vm1594, %v266, %v1042
    %v1632 = vsel %vm1594, %v272, %v1048
    %v1633 = vsel %vm1594, %v278, %v1054
    %v1634 = vsel %vm1594, %v284, %v1060
    %v1635 = vsel %vm1594, %v290, %v1066
    %v1636 = vsel %vm1594, %v296, %v1072
    %v1637 = vsel %vm1594, %v302, %v1078
    %v1638 = vsel %vm1594, %v308, %v1084
    %v1639 = vsel %vm1594, %v314, %v1090
    %v1640 = vsel %vm1594, %v320, %v1096
    %v1641 = vsel %vm1594, %v326, %v1102
    %v1642 = vsel %vm1594, %v332, %v1108
    %v1643 = vsel %vm1594, %v339, %v1115
    %v1644 = vsel %vm1594, %v345, %v1121
    %v1645 = vsel %vm1594, %v351, %v1127
    %v1646 = vsel %vm1594, %v357, %v1133
    %v1647 = vsel %vm1594, %v363, %v1139
    %v1648 = vsel %vm1594, %v369, %v1145
    %v1649 = vsel %vm1594, %v375, %v1151
    %v1650 = vsel %vm1594, %v381, %v1157
    %v1651 = vsel %vm1594, %v387, %v1163
    %v1652 = vsel %vm1594, %v393, %v1169
    %v1653 = vsel %vm1594, %v399, %v1175
    %v1654 = vsel %vm1594, %v405, %v1181
    %v1655 = vsel %vm1594, %v411, %v1187
    %v1656 = vsel %vm1594, %v417, %v1193
    %v1657 = vsel %vm1594, %v423, %v1199
    %v1658 = vsel %vm1594, %v429, %v1205
    %v1659 = vsel %vm1594, %v436, %v1212
    %v1660 = vsel %vm1594, %v442, %v1218
    %v1661 = vsel %vm1594, %v448, %v1224
    %v1662 = vsel %vm1594, %v454, %v1230
    %v1663 = vsel %vm1594, %v460, %v1236
    %v1664 = vsel %vm1594, %v466, %v1242
    %v1665 = vsel %vm1594, %v472, %v1248
    %v1666 = vsel %vm1594, %v478, %v1254
    %v1667 = vsel %vm1594, %v484, %v1260
    %v1668 = vsel %vm1594, %v490, %v1266
    %v1669 = vsel %vm1594, %v496, %v1272
    %v1670 = vsel %vm1594, %v502, %v1278
    %v1671 = vsel %vm1594, %v508, %v1284
    %v1672 = vsel %vm1594, %v514, %v1290
    %v1673 = vsel %vm1594, %v520, %v1296
    %v1674 = vsel %vm1594, %v526, %v1302
    %v1675 = vsel %vm1594, %v533, %v1309
    %v1676 = vsel %vm1594, %v539, %v1315
    %v1677 = vsel %vm1594, %v545, %v1321
    %v1678 = vsel %vm1594, %v551, %v1327
    %v1679 = vsel %vm1594, %v557, %v1333
    %v1680 = vsel %vm1594, %v563, %v1339
    %v1681 = vsel %vm1594, %v569, %v1345
    %v1682 = vsel %vm1594, %v575, %v1351
    %v1683 = vsel %vm1594, %v581, %v1357
    %v1684 = vsel %vm1594, %v587, %v1363
    %v1685 = vsel %vm1594, %v593, %v1369
    %v1686 = vsel %vm1594, %v599, %v1375
    %v1687 = vsel %vm1594, %v605, %v1381
    %v1688 = vsel %vm1594, %v611, %v1387
    %v1689 = vsel %vm1594, %v617, %v1393
    %v1690 = vsel %vm1594, %v623, %v1399
    %v1691 = vsel %vm1594, %v630, %v1406
    %v1692 = vsel %vm1594, %v636, %v1412
    %v1693 = vsel %vm1594, %v642, %v1418
    %v1694 = vsel %vm1594, %v648, %v1424
    %v1695 = vsel %vm1594, %v654, %v1430
    %v1696 = vsel %vm1594, %v660, %v1436
    %v1697 = vsel %vm1594, %v666, %v1442
    %v1698 = vsel %vm1594, %v672, %v1448
    %v1699 = vsel %vm1594, %v678, %v1454
    %v1700 = vsel %vm1594, %v684, %v1460
    %v1701 = vsel %vm1594, %v690, %v1466
    %v1702 = vsel %vm1594, %v696, %v1472
    %v1703 = vsel %vm1594, %v702, %v1478
    %v1704 = vsel %vm1594, %v708, %v1484
    %v1705 = vsel %vm1594, %v714, %v1490
    %v1706 = vsel %vm1594, %v720, %v1496
    %v1707 = vsel %vm1594, %v727, %v1503
    %v1708 = vsel %vm1594, %v733, %v1509
    %v1709 = vsel %vm1594, %v739, %v1515
    %v1710 = vsel %vm1594, %v745, %v1521
    %v1711 = vsel %vm1594, %v751, %v1527
    %v1712 = vsel %vm1594, %v757, %v1533
    %v1713 = vsel %vm1594, %v763, %v1539
    %v1714 = vsel %vm1594, %v769, %v1545
    %v1715 = vsel %vm1594, %v775, %v1551
    %v1716 = vsel %vm1594, %v781, %v1557
    %v1717 = vsel %vm1594, %v787, %v1563
    %v1718 = vsel %vm1594, %v793, %v1569
    %v1719 = vsel %vm1594, %v799, %v1575
    %v1720 = vsel %vm1594, %v805, %v1581
    %v1721 = vsel %vm1594, %v811, %v1587
    %v1722 = vsel %vm1594, %v817, %v1593
    %v1723 = vrot.slane %v1627, 4
    %vm1724 = vcmask 1047556
    %v1725 = vsel %vm1724, %v1723, %v1595
    %v1726 = vrot.slane %v1595, 4
    %v1727 = vsel %vm1724, %v1627, %v1726
    %v1729 = vunpack.c.l.s4 1983009808
    %v1730 = vunpack.c.0.s8 %v1729
    %v1731 = vperm.slane %v1725, %v1730
    %v1733 = vunpack.c.l.s4 1983009808
    %v1734 = vunpack.c.0.s8 %v1733
    %v1735 = vperm.slane %v1727, %v1734
    %v1736 = vrot.slane %v1643, 4
    %v1737 = vsel %vm1724, %v1736, %v1611
    %v1738 = vrot.slane %v1611, 4
    %v1739 = vsel %vm1724, %v1643, %v1738
    %v1741 = vunpack.c.l.s4 1983009808
    %v1742 = vunpack.c.0.s8 %v1741
    %v1743 = vperm.slane %v1737, %v1742
    %v1745 = vunpack.c.l.s4 1983009808
    %v1746 = vunpack.c.0.s8 %v1745
    %v1747 = vperm.slane %v1739, %v1746
    %v1748 = vrot.slane %v1691, 4
    %v1749 = vsel %vm1724, %v1748, %v1659
    %v1750 = vrot.slane %v1659, 4
    %v1751 = vsel %vm1724, %v1691, %v1750
    %v1753 = vunpack.c.l.s4 1983009808
    %v1754 = vunpack.c.0.s8 %v1753
    %v1755 = vperm.slane %v1749, %v1754
    %v1757 = vunpack.c.l.s4 1983009808
    %v1758 = vunpack.c.0.s8 %v1757
    %v1759 = vperm.slane %v1751, %v1758
    %v1760 = vrot.slane %v1707, 4
    %v1761 = vsel %vm1724, %v1760, %v1675
    %v1762 = vrot.slane %v1675, 4
    %v1763 = vsel %vm1724, %v1707, %v1762
    %v1765 = vunpack.c.l.s4 1983009808
    %v1766 = vunpack.c.0.s8 %v1765
    %v1767 = vperm.slane %v1761, %v1766
    %v1769 = vunpack.c.l.s4 1983009808
    %v1770 = vunpack.c.0.s8 %v1769
    %v1771 = vperm.slane %v1763, %v1770
    %v1772 = vrot.slane %v1743, 4
    %v1773 = vsel %vm1724, %v1772, %v1731
    %v1774 = vrot.slane %v1731, 4
    %v1775 = vsel %vm1724, %v1743, %v1774
    %v1777 = vunpack.c.l.s4 1934713408
    %v1778 = vunpack.c.0.s8 %v1777
    %v1779 = vperm.slane %v1773, %v1778
    %v1781 = vunpack.c.l.s4 1934713408
    %v1782 = vunpack.c.0.s8 %v1781
    %v1783 = vperm.slane %v1775, %v1782
    %v1784 = vrot.slane %v1747, 4
    %v1785 = vsel %vm1724, %v1784, %v1735
    %v1786 = vrot.slane %v1735, 4
    %v1787 = vsel %vm1724, %v1747, %v1786
    %v1789 = vunpack.c.l.s4 1934713408
    %v1790 = vunpack.c.0.s8 %v1789
    %v1791 = vperm.slane %v1785, %v1790
    %v1793 = vunpack.c.l.s4 1934713408
    %v1794 = vunpack.c.0.s8 %v1793
    %v1795 = vperm.slane %v1787, %v1794
    %v1796 = vrot.slane %v1767, 4
    %v1797 = vsel %vm1724, %v1796, %v1755
    %v1798 = vrot.slane %v1755, 4
    %v1799 = vsel %vm1724, %v1767, %v1798
    %v1801 = vunpack.c.l.s4 1934713408
    %v1802 = vunpack.c.0.s8 %v1801
    %v1803 = vperm.slane %v1797, %v1802
    %v1805 = vunpack.c.l.s4 1934713408
    %v1806 = vunpack.c.0.s8 %v1805
    %v1807 = vperm.slane %v1799, %v1806
    %v1808 = vrot.slane %v1771, 4
    %v1809 = vsel %vm1724, %v1808, %v1759
    %v1810 = vrot.slane %v1759, 4
    %v1811 = vsel %vm1724, %v1771, %v1810
    %v1813 = vunpack.c.l.s4 1934713408
    %v1814 = vunpack.c.0.s8 %v1813
    %v1815 = vperm.slane %v1809, %v1814
    %v1817 = vunpack.c.l.s4 1934713408
    %v1818 = vunpack.c.0.s8 %v1817
    %v1819 = vperm.slane %v1811, %v1818
    %v1820 = vrot.slane %v1803, 4
    %v1821 = vsel %vm1724, %v1820, %v1779
    %v1822 = vrot.slane %v1779, 4
    %v1823 = vsel %vm1724, %v1803, %v1822
    %v1824 = vrot.slane %v1807, 4
    %v1825 = vsel %vm1724, %v1824, %v1783
    %v1826 = vrot.slane %v1783, 4
    %v1827 = vsel %vm1724, %v1807, %v1826
    %v1828 = vrot.slane %v1815, 4
    %v1829 = vsel %vm1724, %v1828, %v1791
    %v1830 = vrot.slane %v1791, 4
    %v1831 = vsel %vm1724, %v1815, %v1830
    %v1832 = vrot.slane %v1819, 4
    %v1833 = vsel %vm1724, %v1832, %v1795
    %v1834 = vrot.slane %v1795, 4
    %v1835 = vsel %vm1724, %v1819, %v1834
    %v1836 = vrot.slane %v1628, 4
    %v1837 = vsel %vm1724, %v1836, %v1596
    %v1838 = vrot.slane %v1596, 4
    %v1839 = vsel %vm1724, %v1628, %v1838
    %v1841 = vunpack.c.l.s4 1983009808
    %v1842 = vunpack.c.0.s8 %v1841
    %v1843 = vperm.slane %v1837, %v1842
    %v1845 = vunpack.c.l.s4 1983009808
    %v1846 = vunpack.c.0.s8 %v1845
    %v1847 = vperm.slane %v1839, %v1846
    %v1848 = vrot.slane %v1644, 4
    %v1849 = vsel %vm1724, %v1848, %v1612
    %v1850 = vrot.slane %v1612, 4
    %v1851 = vsel %vm1724, %v1644, %v1850
    %v1853 = vunpack.c.l.s4 1983009808
    %v1854 = vunpack.c.0.s8 %v1853
    %v1855 = vperm.slane %v1849, %v1854
    %v1857 = vunpack.c.l.s4 1983009808
    %v1858 = vunpack.c.0.s8 %v1857
    %v1859 = vperm.slane %v1851, %v1858
    %v1860 = vrot.slane %v1692, 4
    %v1861 = vsel %vm1724, %v1860, %v1660
    %v1862 = vrot.slane %v1660, 4
    %v1863 = vsel %vm1724, %v1692, %v1862
    %v1865 = vunpack.c.l.s4 1983009808
    %v1866 = vunpack.c.0.s8 %v1865
    %v1867 = vperm.slane %v1861, %v1866
    %v1869 = vunpack.c.l.s4 1983009808
    %v1870 = vunpack.c.0.s8 %v1869
    %v1871 = vperm.slane %v1863, %v1870
    %v1872 = vrot.slane %v1708, 4
    %v1873 = vsel %vm1724, %v1872, %v1676
    %v1874 = vrot.slane %v1676, 4
    %v1875 = vsel %vm1724, %v1708, %v1874
    %v1877 = vunpack.c.l.s4 1983009808
    %v1878 = vunpack.c.0.s8 %v1877
    %v1879 = vperm.slane %v1873, %v1878
    %v1881 = vunpack.c.l.s4 1983009808
    %v1882 = vunpack.c.0.s8 %v1881
    %v1883 = vperm.slane %v1875, %v1882
    %v1884 = vrot.slane %v1855, 4
    %v1885 = vsel %vm1724, %v1884, %v1843
    %v1886 = vrot.slane %v1843, 4
    %v1887 = vsel %vm1724, %v1855, %v1886
    %v1889 = vunpack.c.l.s4 1934713408
    %v1890 = vunpack.c.0.s8 %v1889
    %v1891 = vperm.slane %v1885, %v1890
    %v1893 = vunpack.c.l.s4 1934713408
    %v1894 = vunpack.c.0.s8 %v1893
    %v1895 = vperm.slane %v1887, %v1894
    %v1896 = vrot.slane %v1859, 4
    %v1897 = vsel %vm1724, %v1896, %v1847
    %v1898 = vrot.slane %v1847, 4
    %v1899 = vsel %vm1724, %v1859, %v1898
    %v1901 = vunpack.c.l.s4 1934713408
    %v1902 = vunpack.c.0.s8 %v1901
    %v1903 = vperm.slane %v1897, %v1902
    %v1905 = vunpack.c.l.s4 1934713408
    %v1906 = vunpack.c.0.s8 %v1905
    %v1907 = vperm.slane %v1899, %v1906
    %v1908 = vrot.slane %v1879, 4
    %v1909 = vsel %vm1724, %v1908, %v1867
    %v1910 = vrot.slane %v1867, 4
    %v1911 = vsel %vm1724, %v1879, %v1910
    %v1913 = vunpack.c.l.s4 1934713408
    %v1914 = vunpack.c.0.s8 %v1913
    %v1915 = vperm.slane %v1909, %v1914
    %v1917 = vunpack.c.l.s4 1934713408
    %v1918 = vunpack.c.0.s8 %v1917
    %v1919 = vperm.slane %v1911, %v1918
    %v1920 = vrot.slane %v1883, 4
    %v1921 = vsel %vm1724, %v1920, %v1871
    %v1922 = vrot.slane %v1871, 4
    %v1923 = vsel %vm1724, %v1883, %v1922
    %v1925 = vunpack.c.l.s4 1934713408
    %v1926 = vunpack.c.0.s8 %v1925
    %v1927 = vperm.slane %v1921, %v1926
    %v1929 = vunpack.c.l.s4 1934713408
    %v1930 = vunpack.c.0.s8 %v1929
    %v1931 = vperm.slane %v1923, %v1930
    %v1932 = vrot.slane %v1915, 4
    %v1933 = vsel %vm1724, %v1932, %v1891
    %v1934 = vrot.slane %v1891, 4
    %v1935 = vsel %vm1724, %v1915, %v1934
    %v1936 = vrot.slane %v1919, 4
    %v1937 = vsel %vm1724, %v1936, %v1895
    %v1938 = vrot.slane %v1895, 4
    %v1939 = vsel %vm1724, %v1919, %v1938
    %v1940 = vrot.slane %v1927, 4
    %v1941 = vsel %vm1724, %v1940, %v1903
    %v1942 = vrot.slane %v1903, 4
    %v1943 = vsel %vm1724, %v1927, %v1942
    %v1944 = vrot.slane %v1931, 4
    %v1945 = vsel %vm1724, %v1944, %v1907
    %v1946 = vrot.slane %v1907, 4
    %v1947 = vsel %vm1724, %v1931, %v1946
    %v1948 = vrot.slane %v1629, 4
    %v1949 = vsel %vm1724, %v1948, %v1597
    %v1950 = vrot.slane %v1597, 4
    %v1951 = vsel %vm1724, %v1629, %v1950
    %v1953 = vunpack.c.l.s4 1983009808
    %v1954 = vunpack.c.0.s8 %v1953
    %v1955 = vperm.slane %v1949, %v1954
    %v1957 = vunpack.c.l.s4 1983009808
    %v1958 = vunpack.c.0.s8 %v1957
    %v1959 = vperm.slane %v1951, %v1958
    %v1960 = vrot.slane %v1645, 4
    %v1961 = vsel %vm1724, %v1960, %v1613
    %v1962 = vrot.slane %v1613, 4
    %v1963 = vsel %vm1724, %v1645, %v1962
    %v1965 = vunpack.c.l.s4 1983009808
    %v1966 = vunpack.c.0.s8 %v1965
    %v1967 = vperm.slane %v1961, %v1966
    %v1969 = vunpack.c.l.s4 1983009808
    %v1970 = vunpack.c.0.s8 %v1969
    %v1971 = vperm.slane %v1963, %v1970
    %v1972 = vrot.slane %v1693, 4
    %v1973 = vsel %vm1724, %v1972, %v1661
    %v1974 = vrot.slane %v1661, 4
    %v1975 = vsel %vm1724, %v1693, %v1974
    %v1977 = vunpack.c.l.s4 1983009808
    %v1978 = vunpack.c.0.s8 %v1977
    %v1979 = vperm.slane %v1973, %v1978
    %v1981 = vunpack.c.l.s4 1983009808
    %v1982 = vunpack.c.0.s8 %v1981
    %v1983 = vperm.slane %v1975, %v1982
    %v1984 = vrot.slane %v1709, 4
    %v1985 = vsel %vm1724, %v1984, %v1677
    %v1986 = vrot.slane %v1677, 4
    %v1987 = vsel %vm1724, %v1709, %v1986
    %v1989 = vunpack.c.l.s4 1983009808
    %v1990 = vunpack.c.0.s8 %v1989
    %v1991 = vperm.slane %v1985, %v1990
    %v1993 = vunpack.c.l.s4 1983009808
    %v1994 = vunpack.c.0.s8 %v1993
    %v1995 = vperm.slane %v1987, %v1994
    %v1996 = vrot.slane %v1967, 4
    %v1997 = vsel %vm1724, %v1996, %v1955
    %v1998 = vrot.slane %v1955, 4
    %v1999 = vsel %vm1724, %v1967, %v1998
    %v2001 = vunpack.c.l.s4 1934713408
    %v2002 = vunpack.c.0.s8 %v2001
    %v2003 = vperm.slane %v1997, %v2002
    %v2005 = vunpack.c.l.s4 1934713408
    %v2006 = vunpack.c.0.s8 %v2005
    %v2007 = vperm.slane %v1999, %v2006
    %v2008 = vrot.slane %v1971, 4
    %v2009 = vsel %vm1724, %v2008, %v1959
    %v2010 = vrot.slane %v1959, 4
    %v2011 = vsel %vm1724, %v1971, %v2010
    %v2013 = vunpack.c.l.s4 1934713408
    %v2014 = vunpack.c.0.s8 %v2013
    %v2015 = vperm.slane %v2009, %v2014
    %v2017 = vunpack.c.l.s4 1934713408
    %v2018 = vunpack.c.0.s8 %v2017
    %v2019 = vperm.slane %v2011, %v2018
    %v2020 = vrot.slane %v1991, 4
    %v2021 = vsel %vm1724, %v2020, %v1979
    %v2022 = vrot.slane %v1979, 4
    %v2023 = vsel %vm1724, %v1991, %v2022
    %v2025 = vunpack.c.l.s4 1934713408
    %v2026 = vunpack.c.0.s8 %v2025
    %v2027 = vperm.slane %v2021, %v2026
    %v2029 = vunpack.c.l.s4 1934713408
    %v2030 = vunpack.c.0.s8 %v2029
    %v2031 = vperm.slane %v2023, %v2030
    %v2032 = vrot.slane %v1995, 4
    %v2033 = vsel %vm1724, %v2032, %v1983
    %v2034 = vrot.slane %v1983, 4
    %v2035 = vsel %vm1724, %v1995, %v2034
    %v2037 = vunpack.c.l.s4 1934713408
    %v2038 = vunpack.c.0.s8 %v2037
    %v2039 = vperm.slane %v2033, %v2038
    %v2041 = vunpack.c.l.s4 1934713408
    %v2042 = vunpack.c.0.s8 %v2041
    %v2043 = vperm.slane %v2035, %v2042
    %v2044 = vrot.slane %v2027, 4
    %v2045 = vsel %vm1724, %v2044, %v2003
    %v2046 = vrot.slane %v2003, 4
    %v2047 = vsel %vm1724, %v2027, %v2046
    %v2048 = vrot.slane %v2031, 4
    %v2049 = vsel %vm1724, %v2048, %v2007
    %v2050 = vrot.slane %v2007, 4
    %v2051 = vsel %vm1724, %v2031, %v2050
    %v2052 = vrot.slane %v2039, 4
    %v2053 = vsel %vm1724, %v2052, %v2015
    %v2054 = vrot.slane %v2015, 4
    %v2055 = vsel %vm1724, %v2039, %v2054
    %v2056 = vrot.slane %v2043, 4
    %v2057 = vsel %vm1724, %v2056, %v2019
    %v2058 = vrot.slane %v2019, 4
    %v2059 = vsel %vm1724, %v2043, %v2058
    %v2060 = vrot.slane %v1630, 4
    %v2061 = vsel %vm1724, %v2060, %v1598
    %v2062 = vrot.slane %v1598, 4
    %v2063 = vsel %vm1724, %v1630, %v2062
    %v2065 = vunpack.c.l.s4 1983009808
    %v2066 = vunpack.c.0.s8 %v2065
    %v2067 = vperm.slane %v2061, %v2066
    %v2069 = vunpack.c.l.s4 1983009808
    %v2070 = vunpack.c.0.s8 %v2069
    %v2071 = vperm.slane %v2063, %v2070
    %v2072 = vrot.slane %v1646, 4
    %v2073 = vsel %vm1724, %v2072, %v1614
    %v2074 = vrot.slane %v1614, 4
    %v2075 = vsel %vm1724, %v1646, %v2074
    %v2077 = vunpack.c.l.s4 1983009808
    %v2078 = vunpack.c.0.s8 %v2077
    %v2079 = vperm.slane %v2073, %v2078
    %v2081 = vunpack.c.l.s4 1983009808
    %v2082 = vunpack.c.0.s8 %v2081
    %v2083 = vperm.slane %v2075, %v2082
    %v2084 = vrot.slane %v1694, 4
    %v2085 = vsel %vm1724, %v2084, %v1662
    %v2086 = vrot.slane %v1662, 4
    %v2087 = vsel %vm1724, %v1694, %v2086
    %v2089 = vunpack.c.l.s4 1983009808
    %v2090 = vunpack.c.0.s8 %v2089
    %v2091 = vperm.slane %v2085, %v2090
    %v2093 = vunpack.c.l.s4 1983009808
    %v2094 = vunpack.c.0.s8 %v2093
    %v2095 = vperm.slane %v2087, %v2094
    %v2096 = vrot.slane %v1710, 4
    %v2097 = vsel %vm1724, %v2096, %v1678
    %v2098 = vrot.slane %v1678, 4
    %v2099 = vsel %vm1724, %v1710, %v2098
    %v2101 = vunpack.c.l.s4 1983009808
    %v2102 = vunpack.c.0.s8 %v2101
    %v2103 = vperm.slane %v2097, %v2102
    %v2105 = vunpack.c.l.s4 1983009808
    %v2106 = vunpack.c.0.s8 %v2105
    %v2107 = vperm.slane %v2099, %v2106
    %v2108 = vrot.slane %v2079, 4
    %v2109 = vsel %vm1724, %v2108, %v2067
    %v2110 = vrot.slane %v2067, 4
    %v2111 = vsel %vm1724, %v2079, %v2110
    %v2113 = vunpack.c.l.s4 1934713408
    %v2114 = vunpack.c.0.s8 %v2113
    %v2115 = vperm.slane %v2109, %v2114
    %v2117 = vunpack.c.l.s4 1934713408
    %v2118 = vunpack.c.0.s8 %v2117
    %v2119 = vperm.slane %v2111, %v2118
    %v2120 = vrot.slane %v2083, 4
    %v2121 = vsel %vm1724, %v2120, %v2071
    %v2122 = vrot.slane %v2071, 4
    %v2123 = vsel %vm1724, %v2083, %v2122
    %v2125 = vunpack.c.l.s4 1934713408
    %v2126 = vunpack.c.0.s8 %v2125
    %v2127 = vperm.slane %v2121, %v2126
    %v2129 = vunpack.c.l.s4 1934713408
    %v2130 = vunpack.c.0.s8 %v2129
    %v2131 = vperm.slane %v2123, %v2130
    %v2132 = vrot.slane %v2103, 4
    %v2133 = vsel %vm1724, %v2132, %v2091
    %v2134 = vrot.slane %v2091, 4
    %v2135 = vsel %vm1724, %v2103, %v2134
    %v2137 = vunpack.c.l.s4 1934713408
    %v2138 = vunpack.c.0.s8 %v2137
    %v2139 = vperm.slane %v2133, %v2138
    %v2141 = vunpack.c.l.s4 1934713408
    %v2142 = vunpack.c.0.s8 %v2141
    %v2143 = vperm.slane %v2135, %v2142
    %v2144 = vrot.slane %v2107, 4
    %v2145 = vsel %vm1724, %v2144, %v2095
    %v2146 = vrot.slane %v2095, 4
    %v2147 = vsel %vm1724, %v2107, %v2146
    %v2149 = vunpack.c.l.s4 1934713408
    %v2150 = vunpack.c.0.s8 %v2149
    %v2151 = vperm.slane %v2145, %v2150
    %v2153 = vunpack.c.l.s4 1934713408
    %v2154 = vunpack.c.0.s8 %v2153
    %v2155 = vperm.slane %v2147, %v2154
    %v2156 = vrot.slane %v2139, 4
    %v2157 = vsel %vm1724, %v2156, %v2115
    %v2158 = vrot.slane %v2115, 4
    %v2159 = vsel %vm1724, %v2139, %v2158
    %v2160 = vrot.slane %v2143, 4
    %v2161 = vsel %vm1724, %v2160, %v2119
    %v2162 = vrot.slane %v2119, 4
    %v2163 = vsel %vm1724, %v2143, %v2162
    %v2164 = vrot.slane %v2151, 4
    %v2165 = vsel %vm1724, %v2164, %v2127
    %v2166 = vrot.slane %v2127, 4
    %v2167 = vsel %vm1724, %v2151, %v2166
    %v2168 = vrot.slane %v2155, 4
    %v2169 = vsel %vm1724, %v2168, %v2131
    %v2170 = vrot.slane %v2131, 4
    %v2171 = vsel %vm1724, %v2155, %v2170
    %v2172 = vrot.slane %v1631, 4
    %v2173 = vsel %vm1724, %v2172, %v1599
    %v2174 = vrot.slane %v1599, 4
    %v2175 = vsel %vm1724, %v1631, %v2174
    %v2177 = vunpack.c.l.s4 1983009808
    %v2178 = vunpack.c.0.s8 %v2177
    %v2179 = vperm.slane %v2173, %v2178
    %v2181 = vunpack.c.l.s4 1983009808
    %v2182 = vunpack.c.0.s8 %v2181
    %v2183 = vperm.slane %v2175, %v2182
    %v2184 = vrot.slane %v1647, 4
    %v2185 = vsel %vm1724, %v2184, %v1615
    %v2186 = vrot.slane %v1615, 4
    %v2187 = vsel %vm1724, %v1647, %v2186
    %v2189 = vunpack.c.l.s4 1983009808
    %v2190 = vunpack.c.0.s8 %v2189
    %v2191 = vperm.slane %v2185, %v2190
    %v2193 = vunpack.c.l.s4 1983009808
    %v2194 = vunpack.c.0.s8 %v2193
    %v2195 = vperm.slane %v2187, %v2194
    %v2196 = vrot.slane %v1695, 4
    %v2197 = vsel %vm1724, %v2196, %v1663
    %v2198 = vrot.slane %v1663, 4
    %v2199 = vsel %vm1724, %v1695, %v2198
    %v2201 = vunpack.c.l.s4 1983009808
    %v2202 = vunpack.c.0.s8 %v2201
    %v2203 = vperm.slane %v2197, %v2202
    %v2205 = vunpack.c.l.s4 1983009808
    %v2206 = vunpack.c.0.s8 %v2205
    %v2207 = vperm.slane %v2199, %v2206
    %v2208 = vrot.slane %v1711, 4
    %v2209 = vsel %vm1724, %v2208, %v1679
    %v2210 = vrot.slane %v1679, 4
    %v2211 = vsel %vm1724, %v1711, %v2210
    %v2213 = vunpack.c.l.s4 1983009808
    %v2214 = vunpack.c.0.s8 %v2213
    %v2215 = vperm.slane %v2209, %v2214
    %v2217 = vunpack.c.l.s4 1983009808
    %v2218 = vunpack.c.0.s8 %v2217
    %v2219 = vperm.slane %v2211, %v2218
    %v2220 = vrot.slane %v2191, 4
    %v2221 = vsel %vm1724, %v2220, %v2179
    %v2222 = vrot.slane %v2179, 4
    %v2223 = vsel %vm1724, %v2191, %v2222
    %v2225 = vunpack.c.l.s4 1934713408
    %v2226 = vunpack.c.0.s8 %v2225
    %v2227 = vperm.slane %v2221, %v2226
    %v2229 = vunpack.c.l.s4 1934713408
    %v2230 = vunpack.c.0.s8 %v2229
    %v2231 = vperm.slane %v2223, %v2230
    %v2232 = vrot.slane %v2195, 4
    %v2233 = vsel %vm1724, %v2232, %v2183
    %v2234 = vrot.slane %v2183, 4
    %v2235 = vsel %vm1724, %v2195, %v2234
    %v2237 = vunpack.c.l.s4 1934713408
    %v2238 = vunpack.c.0.s8 %v2237
    %v2239 = vperm.slane %v2233, %v2238
    %v2241 = vunpack.c.l.s4 1934713408
    %v2242 = vunpack.c.0.s8 %v2241
    %v2243 = vperm.slane %v2235, %v2242
    %v2244 = vrot.slane %v2215, 4
    %v2245 = vsel %vm1724, %v2244, %v2203
    %v2246 = vrot.slane %v2203, 4
    %v2247 = vsel %vm1724, %v2215, %v2246
    %v2249 = vunpack.c.l.s4 1934713408
    %v2250 = vunpack.c.0.s8 %v2249
    %v2251 = vperm.slane %v2245, %v2250
    %v2253 = vunpack.c.l.s4 1934713408
    %v2254 = vunpack.c.0.s8 %v2253
    %v2255 = vperm.slane %v2247, %v2254
    %v2256 = vrot.slane %v2219, 4
    %v2257 = vsel %vm1724, %v2256, %v2207
    %v2258 = vrot.slane %v2207, 4
    %v2259 = vsel %vm1724, %v2219, %v2258
    %v2261 = vunpack.c.l.s4 1934713408
    %v2262 = vunpack.c.0.s8 %v2261
    %v2263 = vperm.slane %v2257, %v2262
    %v2265 = vunpack.c.l.s4 1934713408
    %v2266 = vunpack.c.0.s8 %v2265
    %v2267 = vperm.slane %v2259, %v2266
    %v2268 = vrot.slane %v2251, 4
    %v2269 = vsel %vm1724, %v2268, %v2227
    %v2270 = vrot.slane %v2227, 4
    %v2271 = vsel %vm1724, %v2251, %v2270
    %v2272 = vrot.slane %v2255, 4
    %v2273 = vsel %vm1724, %v2272, %v2231
    %v2274 = vrot.slane %v2231, 4
    %v2275 = vsel %vm1724, %v2255, %v2274
    %v2276 = vrot.slane %v2263, 4
    %v2277 = vsel %vm1724, %v2276, %v2239
    %v2278 = vrot.slane %v2239, 4
    %v2279 = vsel %vm1724, %v2263, %v2278
    %v2280 = vrot.slane %v2267, 4
    %v2281 = vsel %vm1724, %v2280, %v2243
    %v2282 = vrot.slane %v2243, 4
    %v2283 = vsel %vm1724, %v2267, %v2282
    %v2284 = vrot.slane %v1632, 4
    %v2285 = vsel %vm1724, %v2284, %v1600
    %v2286 = vrot.slane %v1600, 4
    %v2287 = vsel %vm1724, %v1632, %v2286
    %v2289 = vunpack.c.l.s4 1983009808
    %v2290 = vunpack.c.0.s8 %v2289
    %v2291 = vperm.slane %v2285, %v2290
    %v2293 = vunpack.c.l.s4 1983009808
    %v2294 = vunpack.c.0.s8 %v2293
    %v2295 = vperm.slane %v2287, %v2294
    %v2296 = vrot.slane %v1648, 4
    %v2297 = vsel %vm1724, %v2296, %v1616
    %v2298 = vrot.slane %v1616, 4
    %v2299 = vsel %vm1724, %v1648, %v2298
    %v2301 = vunpack.c.l.s4 1983009808
    %v2302 = vunpack.c.0.s8 %v2301
    %v2303 = vperm.slane %v2297, %v2302
    %v2305 = vunpack.c.l.s4 1983009808
    %v2306 = vunpack.c.0.s8 %v2305
    %v2307 = vperm.slane %v2299, %v2306
    %v2308 = vrot.slane %v1696, 4
    %v2309 = vsel %vm1724, %v2308, %v1664
    %v2310 = vrot.slane %v1664, 4
    %v2311 = vsel %vm1724, %v1696, %v2310
    %v2313 = vunpack.c.l.s4 1983009808
    %v2314 = vunpack.c.0.s8 %v2313
    %v2315 = vperm.slane %v2309, %v2314
    %v2317 = vunpack.c.l.s4 1983009808
    %v2318 = vunpack.c.0.s8 %v2317
    %v2319 = vperm.slane %v2311, %v2318
    %v2320 = vrot.slane %v1712, 4
    %v2321 = vsel %vm1724, %v2320, %v1680
    %v2322 = vrot.slane %v1680, 4
    %v2323 = vsel %vm1724, %v1712, %v2322
    %v2325 = vunpack.c.l.s4 1983009808
    %v2326 = vunpack.c.0.s8 %v2325
    %v2327 = vperm.slane %v2321, %v2326
    %v2329 = vunpack.c.l.s4 1983009808
    %v2330 = vunpack.c.0.s8 %v2329
    %v2331 = vperm.slane %v2323, %v2330
    %v2332 = vrot.slane %v2303, 4
    %v2333 = vsel %vm1724, %v2332, %v2291
    %v2334 = vrot.slane %v2291, 4
    %v2335 = vsel %vm1724, %v2303, %v2334
    %v2337 = vunpack.c.l.s4 1934713408
    %v2338 = vunpack.c.0.s8 %v2337
    %v2339 = vperm.slane %v2333, %v2338
    %v2341 = vunpack.c.l.s4 1934713408
    %v2342 = vunpack.c.0.s8 %v2341
    %v2343 = vperm.slane %v2335, %v2342
    %v2344 = vrot.slane %v2307, 4
    %v2345 = vsel %vm1724, %v2344, %v2295
    %v2346 = vrot.slane %v2295, 4
    %v2347 = vsel %vm1724, %v2307, %v2346
    %v2349 = vunpack.c.l.s4 1934713408
    %v2350 = vunpack.c.0.s8 %v2349
    %v2351 = vperm.slane %v2345, %v2350
    %v2353 = vunpack.c.l.s4 1934713408
    %v2354 = vunpack.c.0.s8 %v2353
    %v2355 = vperm.slane %v2347, %v2354
    %v2356 = vrot.slane %v2327, 4
    %v2357 = vsel %vm1724, %v2356, %v2315
    %v2358 = vrot.slane %v2315, 4
    %v2359 = vsel %vm1724, %v2327, %v2358
    %v2361 = vunpack.c.l.s4 1934713408
    %v2362 = vunpack.c.0.s8 %v2361
    %v2363 = vperm.slane %v2357, %v2362
    %v2365 = vunpack.c.l.s4 1934713408
    %v2366 = vunpack.c.0.s8 %v2365
    %v2367 = vperm.slane %v2359, %v2366
    %v2368 = vrot.slane %v2331, 4
    %v2369 = vsel %vm1724, %v2368, %v2319
    %v2370 = vrot.slane %v2319, 4
    %v2371 = vsel %vm1724, %v2331, %v2370
    %v2373 = vunpack.c.l.s4 1934713408
    %v2374 = vunpack.c.0.s8 %v2373
    %v2375 = vperm.slane %v2369, %v2374
    %v2377 = vunpack.c.l.s4 1934713408
    %v2378 = vunpack.c.0.s8 %v2377
    %v2379 = vperm.slane %v2371, %v2378
    %v2380 = vrot.slane %v2363, 4
    %v2381 = vsel %vm1724, %v2380, %v2339
    %v2382 = vrot.slane %v2339, 4
    %v2383 = vsel %vm1724, %v2363, %v2382
    %v2384 = vrot.slane %v2367, 4
    %v2385 = vsel %vm1724, %v2384, %v2343
    %v2386 = vrot.slane %v2343, 4
    %v2387 = vsel %vm1724, %v2367, %v2386
    %v2388 = vrot.slane %v2375, 4
    %v2389 = vsel %vm1724, %v2388, %v2351
    %v2390 = vrot.slane %v2351, 4
    %v2391 = vsel %vm1724, %v2375, %v2390
    %v2392 = vrot.slane %v2379, 4
    %v2393 = vsel %vm1724, %v2392, %v2355
    %v2394 = vrot.slane %v2355, 4
    %v2395 = vsel %vm1724, %v2379, %v2394
    %v2396 = vrot.slane %v1633, 4
    %v2397 = vsel %vm1724, %v2396, %v1601
    %v2398 = vrot.slane %v1601, 4
    %v2399 = vsel %vm1724, %v1633, %v2398
    %v2401 = vunpack.c.l.s4 1983009808
    %v2402 = vunpack.c.0.s8 %v2401
    %v2403 = vperm.slane %v2397, %v2402
    %v2405 = vunpack.c.l.s4 1983009808
    %v2406 = vunpack.c.0.s8 %v2405
    %v2407 = vperm.slane %v2399, %v2406
    %v2408 = vrot.slane %v1649, 4
    %v2409 = vsel %vm1724, %v2408, %v1617
    %v2410 = vrot.slane %v1617, 4
    %v2411 = vsel %vm1724, %v1649, %v2410
    %v2413 = vunpack.c.l.s4 1983009808
    %v2414 = vunpack.c.0.s8 %v2413
    %v2415 = vperm.slane %v2409, %v2414
    %v2417 = vunpack.c.l.s4 1983009808
    %v2418 = vunpack.c.0.s8 %v2417
    %v2419 = vperm.slane %v2411, %v2418
    %v2420 = vrot.slane %v1697, 4
    %v2421 = vsel %vm1724, %v2420, %v1665
    %v2422 = vrot.slane %v1665, 4
    %v2423 = vsel %vm1724, %v1697, %v2422
    %v2425 = vunpack.c.l.s4 1983009808
    %v2426 = vunpack.c.0.s8 %v2425
    %v2427 = vperm.slane %v2421, %v2426
    %v2429 = vunpack.c.l.s4 1983009808
    %v2430 = vunpack.c.0.s8 %v2429
    %v2431 = vperm.slane %v2423, %v2430
    %v2432 = vrot.slane %v1713, 4
    %v2433 = vsel %vm1724, %v2432, %v1681
    %v2434 = vrot.slane %v1681, 4
    %v2435 = vsel %vm1724, %v1713, %v2434
    %v2437 = vunpack.c.l.s4 1983009808
    %v2438 = vunpack.c.0.s8 %v2437
    %v2439 = vperm.slane %v2433, %v2438
    %v2441 = vunpack.c.l.s4 1983009808
    %v2442 = vunpack.c.0.s8 %v2441
    %v2443 = vperm.slane %v2435, %v2442
    %v2444 = vrot.slane %v2415, 4
    %v2445 = vsel %vm1724, %v2444, %v2403
    %v2446 = vrot.slane %v2403, 4
    %v2447 = vsel %vm1724, %v2415, %v2446
    %v2449 = vunpack.c.l.s4 1934713408
    %v2450 = vunpack.c.0.s8 %v2449
    %v2451 = vperm.slane %v2445, %v2450
    %v2453 = vunpack.c.l.s4 1934713408
    %v2454 = vunpack.c.0.s8 %v2453
    %v2455 = vperm.slane %v2447, %v2454
    %v2456 = vrot.slane %v2419, 4
    %v2457 = vsel %vm1724, %v2456, %v2407
    %v2458 = vrot.slane %v2407, 4
    %v2459 = vsel %vm1724, %v2419, %v2458
    %v2461 = vunpack.c.l.s4 1934713408
    %v2462 = vunpack.c.0.s8 %v2461
    %v2463 = vperm.slane %v2457, %v2462
    %v2465 = vunpack.c.l.s4 1934713408
    %v2466 = vunpack.c.0.s8 %v2465
    %v2467 = vperm.slane %v2459, %v2466
    %v2468 = vrot.slane %v2439, 4
    %v2469 = vsel %vm1724, %v2468, %v2427
    %v2470 = vrot.slane %v2427, 4
    %v2471 = vsel %vm1724, %v2439, %v2470
    %v2473 = vunpack.c.l.s4 1934713408
    %v2474 = vunpack.c.0.s8 %v2473
    %v2475 = vperm.slane %v2469, %v2474
    %v2477 = vunpack.c.l.s4 1934713408
    %v2478 = vunpack.c.0.s8 %v2477
    %v2479 = vperm.slane %v2471, %v2478
    %v2480 = vrot.slane %v2443, 4
    %v2481 = vsel %vm1724, %v2480, %v2431
    %v2482 = vrot.slane %v2431, 4
    %v2483 = vsel %vm1724, %v2443, %v2482
    %v2485 = vunpack.c.l.s4 1934713408
    %v2486 = vunpack.c.0.s8 %v2485
    %v2487 = vperm.slane %v2481, %v2486
    %v2489 = vunpack.c.l.s4 1934713408
    %v2490 = vunpack.c.0.s8 %v2489
    %v2491 = vperm.slane %v2483, %v2490
    %v2492 = vrot.slane %v2475, 4
    %v2493 = vsel %vm1724, %v2492, %v2451
    %v2494 = vrot.slane %v2451, 4
    %v2495 = vsel %vm1724, %v2475, %v2494
    %v2496 = vrot.slane %v2479, 4
    %v2497 = vsel %vm1724, %v2496, %v2455
    %v2498 = vrot.slane %v2455, 4
    %v2499 = vsel %vm1724, %v2479, %v2498
    %v2500 = vrot.slane %v2487, 4
    %v2501 = vsel %vm1724, %v2500, %v2463
    %v2502 = vrot.slane %v2463, 4
    %v2503 = vsel %vm1724, %v2487, %v2502
    %v2504 = vrot.slane %v2491, 4
    %v2505 = vsel %vm1724, %v2504, %v2467
    %v2506 = vrot.slane %v2467, 4
    %v2507 = vsel %vm1724, %v2491, %v2506
    %v2508 = vrot.slane %v1634, 4
    %v2509 = vsel %vm1724, %v2508, %v1602
    %v2510 = vrot.slane %v1602, 4
    %v2511 = vsel %vm1724, %v1634, %v2510
    %v2513 = vunpack.c.l.s4 1983009808
    %v2514 = vunpack.c.0.s8 %v2513
    %v2515 = vperm.slane %v2509, %v2514
    %v2517 = vunpack.c.l.s4 1983009808
    %v2518 = vunpack.c.0.s8 %v2517
    %v2519 = vperm.slane %v2511, %v2518
    %v2520 = vrot.slane %v1650, 4
    %v2521 = vsel %vm1724, %v2520, %v1618
    %v2522 = vrot.slane %v1618, 4
    %v2523 = vsel %vm1724, %v1650, %v2522
    %v2525 = vunpack.c.l.s4 1983009808
    %v2526 = vunpack.c.0.s8 %v2525
    %v2527 = vperm.slane %v2521, %v2526
    %v2529 = vunpack.c.l.s4 1983009808
    %v2530 = vunpack.c.0.s8 %v2529
    %v2531 = vperm.slane %v2523, %v2530
    %v2532 = vrot.slane %v1698, 4
    %v2533 = vsel %vm1724, %v2532, %v1666
    %v2534 = vrot.slane %v1666, 4
    %v2535 = vsel %vm1724, %v1698, %v2534
    %v2537 = vunpack.c.l.s4 1983009808
    %v2538 = vunpack.c.0.s8 %v2537
    %v2539 = vperm.slane %v2533, %v2538
    %v2541 = vunpack.c.l.s4 1983009808
    %v2542 = vunpack.c.0.s8 %v2541
    %v2543 = vperm.slane %v2535, %v2542
    %v2544 = vrot.slane %v1714, 4
    %v2545 = vsel %vm1724, %v2544, %v1682
    %v2546 = vrot.slane %v1682, 4
    %v2547 = vsel %vm1724, %v1714, %v2546
    %v2549 = vunpack.c.l.s4 1983009808
    %v2550 = vunpack.c.0.s8 %v2549
    %v2551 = vperm.slane %v2545, %v2550
    %v2553 = vunpack.c.l.s4 1983009808
    %v2554 = vunpack.c.0.s8 %v2553
    %v2555 = vperm.slane %v2547, %v2554
    %v2556 = vrot.slane %v2527, 4
    %v2557 = vsel %vm1724, %v2556, %v2515
    %v2558 = vrot.slane %v2515, 4
    %v2559 = vsel %vm1724, %v2527, %v2558
    %v2561 = vunpack.c.l.s4 1934713408
    %v2562 = vunpack.c.0.s8 %v2561
    %v2563 = vperm.slane %v2557, %v2562
    %v2565 = vunpack.c.l.s4 1934713408
    %v2566 = vunpack.c.0.s8 %v2565
    %v2567 = vperm.slane %v2559, %v2566
    %v2568 = vrot.slane %v2531, 4
    %v2569 = vsel %vm1724, %v2568, %v2519
    %v2570 = vrot.slane %v2519, 4
    %v2571 = vsel %vm1724, %v2531, %v2570
    %v2573 = vunpack.c.l.s4 1934713408
    %v2574 = vunpack.c.0.s8 %v2573
    %v2575 = vperm.slane %v2569, %v2574
    %v2577 = vunpack.c.l.s4 1934713408
    %v2578 = vunpack.c.0.s8 %v2577
    %v2579 = vperm.slane %v2571, %v2578
    %v2580 = vrot.slane %v2551, 4
    %v2581 = vsel %vm1724, %v2580, %v2539
    %v2582 = vrot.slane %v2539, 4
    %v2583 = vsel %vm1724, %v2551, %v2582
    %v2585 = vunpack.c.l.s4 1934713408
    %v2586 = vunpack.c.0.s8 %v2585
    %v2587 = vperm.slane %v2581, %v2586
    %v2589 = vunpack.c.l.s4 1934713408
    %v2590 = vunpack.c.0.s8 %v2589
    %v2591 = vperm.slane %v2583, %v2590
    %v2592 = vrot.slane %v2555, 4
    %v2593 = vsel %vm1724, %v2592, %v2543
    %v2594 = vrot.slane %v2543, 4
    %v2595 = vsel %vm1724, %v2555, %v2594
    %v2597 = vunpack.c.l.s4 1934713408
    %v2598 = vunpack.c.0.s8 %v2597
    %v2599 = vperm.slane %v2593, %v2598
    %v2601 = vunpack.c.l.s4 1934713408
    %v2602 = vunpack.c.0.s8 %v2601
    %v2603 = vperm.slane %v2595, %v2602
    %v2604 = vrot.slane %v2587, 4
    %v2605 = vsel %vm1724, %v2604, %v2563
    %v2606 = vrot.slane %v2563, 4
    %v2607 = vsel %vm1724, %v2587, %v2606
    %v2608 = vrot.slane %v2591, 4
    %v2609 = vsel %vm1724, %v2608, %v2567
    %v2610 = vrot.slane %v2567, 4
    %v2611 = vsel %vm1724, %v2591, %v2610
    %v2612 = vrot.slane %v2599, 4
    %v2613 = vsel %vm1724, %v2612, %v2575
    %v2614 = vrot.slane %v2575, 4
    %v2615 = vsel %vm1724, %v2599, %v2614
    %v2616 = vrot.slane %v2603, 4
    %v2617 = vsel %vm1724, %v2616, %v2579
    %v2618 = vrot.slane %v2579, 4
    %v2619 = vsel %vm1724, %v2603, %v2618
    %v2620 = vrot.slane %v1635, 4
    %v2621 = vsel %vm1724, %v2620, %v1603
    %v2622 = vrot.slane %v1603, 4
    %v2623 = vsel %vm1724, %v1635, %v2622
    %v2625 = vunpack.c.l.s4 1983009808
    %v2626 = vunpack.c.0.s8 %v2625
    %v2627 = vperm.slane %v2621, %v2626
    %v2629 = vunpack.c.l.s4 1983009808
    %v2630 = vunpack.c.0.s8 %v2629
    %v2631 = vperm.slane %v2623, %v2630
    %v2632 = vrot.slane %v1651, 4
    %v2633 = vsel %vm1724, %v2632, %v1619
    %v2634 = vrot.slane %v1619, 4
    %v2635 = vsel %vm1724, %v1651, %v2634
    %v2637 = vunpack.c.l.s4 1983009808
    %v2638 = vunpack.c.0.s8 %v2637
    %v2639 = vperm.slane %v2633, %v2638
    %v2641 = vunpack.c.l.s4 1983009808
    %v2642 = vunpack.c.0.s8 %v2641
    %v2643 = vperm.slane %v2635, %v2642
    %v2644 = vrot.slane %v1699, 4
    %v2645 = vsel %vm1724, %v2644, %v1667
    %v2646 = vrot.slane %v1667, 4
    %v2647 = vsel %vm1724, %v1699, %v2646
    %v2649 = vunpack.c.l.s4 1983009808
    %v2650 = vunpack.c.0.s8 %v2649
    %v2651 = vperm.slane %v2645, %v2650
    %v2653 = vunpack.c.l.s4 1983009808
    %v2654 = vunpack.c.0.s8 %v2653
    %v2655 = vperm.slane %v2647, %v2654
    %v2656 = vrot.slane %v1715, 4
    %v2657 = vsel %vm1724, %v2656, %v1683
    %v2658 = vrot.slane %v1683, 4
    %v2659 = vsel %vm1724, %v1715, %v2658
    %v2661 = vunpack.c.l.s4 1983009808
    %v2662 = vunpack.c.0.s8 %v2661
    %v2663 = vperm.slane %v2657, %v2662
    %v2665 = vunpack.c.l.s4 1983009808
    %v2666 = vunpack.c.0.s8 %v2665
    %v2667 = vperm.slane %v2659, %v2666
    %v2668 = vrot.slane %v2639, 4
    %v2669 = vsel %vm1724, %v2668, %v2627
    %v2670 = vrot.slane %v2627, 4
    %v2671 = vsel %vm1724, %v2639, %v2670
    %v2673 = vunpack.c.l.s4 1934713408
    %v2674 = vunpack.c.0.s8 %v2673
    %v2675 = vperm.slane %v2669, %v2674
    %v2677 = vunpack.c.l.s4 1934713408
    %v2678 = vunpack.c.0.s8 %v2677
    %v2679 = vperm.slane %v2671, %v2678
    %v2680 = vrot.slane %v2643, 4
    %v2681 = vsel %vm1724, %v2680, %v2631
    %v2682 = vrot.slane %v2631, 4
    %v2683 = vsel %vm1724, %v2643, %v2682
    %v2685 = vunpack.c.l.s4 1934713408
    %v2686 = vunpack.c.0.s8 %v2685
    %v2687 = vperm.slane %v2681, %v2686
    %v2689 = vunpack.c.l.s4 1934713408
    %v2690 = vunpack.c.0.s8 %v2689
    %v2691 = vperm.slane %v2683, %v2690
    %v2692 = vrot.slane %v2663, 4
    %v2693 = vsel %vm1724, %v2692, %v2651
    %v2694 = vrot.slane %v2651, 4
    %v2695 = vsel %vm1724, %v2663, %v2694
    %v2697 = vunpack.c.l.s4 1934713408
    %v2698 = vunpack.c.0.s8 %v2697
    %v2699 = vperm.slane %v2693, %v2698
    %v2701 = vunpack.c.l.s4 1934713408
    %v2702 = vunpack.c.0.s8 %v2701
    %v2703 = vperm.slane %v2695, %v2702
    %v2704 = vrot.slane %v2667, 4
    %v2705 = vsel %vm1724, %v2704, %v2655
    %v2706 = vrot.slane %v2655, 4
    %v2707 = vsel %vm1724, %v2667, %v2706
    %v2709 = vunpack.c.l.s4 1934713408
    %v2710 = vunpack.c.0.s8 %v2709
    %v2711 = vperm.slane %v2705, %v2710
    %v2713 = vunpack.c.l.s4 1934713408
    %v2714 = vunpack.c.0.s8 %v2713
    %v2715 = vperm.slane %v2707, %v2714
    %v2716 = vrot.slane %v2699, 4
    %v2717 = vsel %vm1724, %v2716, %v2675
    %v2718 = vrot.slane %v2675, 4
    %v2719 = vsel %vm1724, %v2699, %v2718
    %v2720 = vrot.slane %v2703, 4
    %v2721 = vsel %vm1724, %v2720, %v2679
    %v2722 = vrot.slane %v2679, 4
    %v2723 = vsel %vm1724, %v2703, %v2722
    %v2724 = vrot.slane %v2711, 4
    %v2725 = vsel %vm1724, %v2724, %v2687
    %v2726 = vrot.slane %v2687, 4
    %v2727 = vsel %vm1724, %v2711, %v2726
    %v2728 = vrot.slane %v2715, 4
    %v2729 = vsel %vm1724, %v2728, %v2691
    %v2730 = vrot.slane %v2691, 4
    %v2731 = vsel %vm1724, %v2715, %v2730
    %v2732 = vrot.slane %v1636, 4
    %v2733 = vsel %vm1724, %v2732, %v1604
    %v2734 = vrot.slane %v1604, 4
    %v2735 = vsel %vm1724, %v1636, %v2734
    %v2737 = vunpack.c.l.s4 1983009808
    %v2738 = vunpack.c.0.s8 %v2737
    %v2739 = vperm.slane %v2733, %v2738
    %v2741 = vunpack.c.l.s4 1983009808
    %v2742 = vunpack.c.0.s8 %v2741
    %v2743 = vperm.slane %v2735, %v2742
    %v2744 = vrot.slane %v1652, 4
    %v2745 = vsel %vm1724, %v2744, %v1620
    %v2746 = vrot.slane %v1620, 4
    %v2747 = vsel %vm1724, %v1652, %v2746
    %v2749 = vunpack.c.l.s4 1983009808
    %v2750 = vunpack.c.0.s8 %v2749
    %v2751 = vperm.slane %v2745, %v2750
    %v2753 = vunpack.c.l.s4 1983009808
    %v2754 = vunpack.c.0.s8 %v2753
    %v2755 = vperm.slane %v2747, %v2754
    %v2756 = vrot.slane %v1700, 4
    %v2757 = vsel %vm1724, %v2756, %v1668
    %v2758 = vrot.slane %v1668, 4
    %v2759 = vsel %vm1724, %v1700, %v2758
    %v2761 = vunpack.c.l.s4 1983009808
    %v2762 = vunpack.c.0.s8 %v2761
    %v2763 = vperm.slane %v2757, %v2762
    %v2765 = vunpack.c.l.s4 1983009808
    %v2766 = vunpack.c.0.s8 %v2765
    %v2767 = vperm.slane %v2759, %v2766
    %v2768 = vrot.slane %v1716, 4
    %v2769 = vsel %vm1724, %v2768, %v1684
    %v2770 = vrot.slane %v1684, 4
    %v2771 = vsel %vm1724, %v1716, %v2770
    %v2773 = vunpack.c.l.s4 1983009808
    %v2774 = vunpack.c.0.s8 %v2773
    %v2775 = vperm.slane %v2769, %v2774
    %v2777 = vunpack.c.l.s4 1983009808
    %v2778 = vunpack.c.0.s8 %v2777
    %v2779 = vperm.slane %v2771, %v2778
    %v2780 = vrot.slane %v2751, 4
    %v2781 = vsel %vm1724, %v2780, %v2739
    %v2782 = vrot.slane %v2739, 4
    %v2783 = vsel %vm1724, %v2751, %v2782
    %v2785 = vunpack.c.l.s4 1934713408
    %v2786 = vunpack.c.0.s8 %v2785
    %v2787 = vperm.slane %v2781, %v2786
    %v2789 = vunpack.c.l.s4 1934713408
    %v2790 = vunpack.c.0.s8 %v2789
    %v2791 = vperm.slane %v2783, %v2790
    %v2792 = vrot.slane %v2755, 4
    %v2793 = vsel %vm1724, %v2792, %v2743
    %v2794 = vrot.slane %v2743, 4
    %v2795 = vsel %vm1724, %v2755, %v2794
    %v2797 = vunpack.c.l.s4 1934713408
    %v2798 = vunpack.c.0.s8 %v2797
    %v2799 = vperm.slane %v2793, %v2798
    %v2801 = vunpack.c.l.s4 1934713408
    %v2802 = vunpack.c.0.s8 %v2801
    %v2803 = vperm.slane %v2795, %v2802
    %v2804 = vrot.slane %v2775, 4
    %v2805 = vsel %vm1724, %v2804, %v2763
    %v2806 = vrot.slane %v2763, 4
    %v2807 = vsel %vm1724, %v2775, %v2806
    %v2809 = vunpack.c.l.s4 1934713408
    %v2810 = vunpack.c.0.s8 %v2809
    %v2811 = vperm.slane %v2805, %v2810
    %v2813 = vunpack.c.l.s4 1934713408
    %v2814 = vunpack.c.0.s8 %v2813
    %v2815 = vperm.slane %v2807, %v2814
    %v2816 = vrot.slane %v2779, 4
    %v2817 = vsel %vm1724, %v2816, %v2767
    %v2818 = vrot.slane %v2767, 4
    %v2819 = vsel %vm1724, %v2779, %v2818
    %v2821 = vunpack.c.l.s4 1934713408
    %v2822 = vunpack.c.0.s8 %v2821
    %v2823 = vperm.slane %v2817, %v2822
    %v2825 = vunpack.c.l.s4 1934713408
    %v2826 = vunpack.c.0.s8 %v2825
    %v2827 = vperm.slane %v2819, %v2826
    %v2828 = vrot.slane %v2811, 4
    %v2829 = vsel %vm1724, %v2828, %v2787
    %v2830 = vrot.slane %v2787, 4
    %v2831 = vsel %vm1724, %v2811, %v2830
    %v2832 = vrot.slane %v2815, 4
    %v2833 = vsel %vm1724, %v2832, %v2791
    %v2834 = vrot.slane %v2791, 4
    %v2835 = vsel %vm1724, %v2815, %v2834
    %v2836 = vrot.slane %v2823, 4
    %v2837 = vsel %vm1724, %v2836, %v2799
    %v2838 = vrot.slane %v2799, 4
    %v2839 = vsel %vm1724, %v2823, %v2838
    %v2840 = vrot.slane %v2827, 4
    %v2841 = vsel %vm1724, %v2840, %v2803
    %v2842 = vrot.slane %v2803, 4
    %v2843 = vsel %vm1724, %v2827, %v2842
    %v2844 = vrot.slane %v1637, 4
    %v2845 = vsel %vm1724, %v2844, %v1605
    %v2846 = vrot.slane %v1605, 4
    %v2847 = vsel %vm1724, %v1637, %v2846
    %v2849 = vunpack.c.l.s4 1983009808
    %v2850 = vunpack.c.0.s8 %v2849
    %v2851 = vperm.slane %v2845, %v2850
    %v2853 = vunpack.c.l.s4 1983009808
    %v2854 = vunpack.c.0.s8 %v2853
    %v2855 = vperm.slane %v2847, %v2854
    %v2856 = vrot.slane %v1653, 4
    %v2857 = vsel %vm1724, %v2856, %v1621
    %v2858 = vrot.slane %v1621, 4
    %v2859 = vsel %vm1724, %v1653, %v2858
    %v2861 = vunpack.c.l.s4 1983009808
    %v2862 = vunpack.c.0.s8 %v2861
    %v2863 = vperm.slane %v2857, %v2862
    %v2865 = vunpack.c.l.s4 1983009808
    %v2866 = vunpack.c.0.s8 %v2865
    %v2867 = vperm.slane %v2859, %v2866
    %v2868 = vrot.slane %v1701, 4
    %v2869 = vsel %vm1724, %v2868, %v1669
    %v2870 = vrot.slane %v1669, 4
    %v2871 = vsel %vm1724, %v1701, %v2870
    %v2873 = vunpack.c.l.s4 1983009808
    %v2874 = vunpack.c.0.s8 %v2873
    %v2875 = vperm.slane %v2869, %v2874
    %v2877 = vunpack.c.l.s4 1983009808
    %v2878 = vunpack.c.0.s8 %v2877
    %v2879 = vperm.slane %v2871, %v2878
    %v2880 = vrot.slane %v1717, 4
    %v2881 = vsel %vm1724, %v2880, %v1685
    %v2882 = vrot.slane %v1685, 4
    %v2883 = vsel %vm1724, %v1717, %v2882
    %v2885 = vunpack.c.l.s4 1983009808
    %v2886 = vunpack.c.0.s8 %v2885
    %v2887 = vperm.slane %v2881, %v2886
    %v2889 = vunpack.c.l.s4 1983009808
    %v2890 = vunpack.c.0.s8 %v2889
    %v2891 = vperm.slane %v2883, %v2890
    %v2892 = vrot.slane %v2863, 4
    %v2893 = vsel %vm1724, %v2892, %v2851
    %v2894 = vrot.slane %v2851, 4
    %v2895 = vsel %vm1724, %v2863, %v2894
    %v2897 = vunpack.c.l.s4 1934713408
    %v2898 = vunpack.c.0.s8 %v2897
    %v2899 = vperm.slane %v2893, %v2898
    %v2901 = vunpack.c.l.s4 1934713408
    %v2902 = vunpack.c.0.s8 %v2901
    %v2903 = vperm.slane %v2895, %v2902
    %v2904 = vrot.slane %v2867, 4
    %v2905 = vsel %vm1724, %v2904, %v2855
    %v2906 = vrot.slane %v2855, 4
    %v2907 = vsel %vm1724, %v2867, %v2906
    %v2909 = vunpack.c.l.s4 1934713408
    %v2910 = vunpack.c.0.s8 %v2909
    %v2911 = vperm.slane %v2905, %v2910
    %v2913 = vunpack.c.l.s4 1934713408
    %v2914 = vunpack.c.0.s8 %v2913
    %v2915 = vperm.slane %v2907, %v2914
    %v2916 = vrot.slane %v2887, 4
    %v2917 = vsel %vm1724, %v2916, %v2875
    %v2918 = vrot.slane %v2875, 4
    %v2919 = vsel %vm1724, %v2887, %v2918
    %v2921 = vunpack.c.l.s4 1934713408
    %v2922 = vunpack.c.0.s8 %v2921
    %v2923 = vperm.slane %v2917, %v2922
    %v2925 = vunpack.c.l.s4 1934713408
    %v2926 = vunpack.c.0.s8 %v2925
    %v2927 = vperm.slane %v2919, %v2926
    %v2928 = vrot.slane %v2891, 4
    %v2929 = vsel %vm1724, %v2928, %v2879
    %v2930 = vrot.slane %v2879, 4
    %v2931 = vsel %vm1724, %v2891, %v2930
    %v2933 = vunpack.c.l.s4 1934713408
    %v2934 = vunpack.c.0.s8 %v2933
    %v2935 = vperm.slane %v2929, %v2934
    %v2937 = vunpack.c.l.s4 1934713408
    %v2938 = vunpack.c.0.s8 %v2937
    %v2939 = vperm.slane %v2931, %v2938
    %v2940 = vrot.slane %v2923, 4
    %v2941 = vsel %vm1724, %v2940, %v2899
    %v2942 = vrot.slane %v2899, 4
    %v2943 = vsel %vm1724, %v2923, %v2942
    %v2944 = vrot.slane %v2927, 4
    %v2945 = vsel %vm1724, %v2944, %v2903
    %v2946 = vrot.slane %v2903, 4
    %v2947 = vsel %vm1724, %v2927, %v2946
    %v2948 = vrot.slane %v2935, 4
    %v2949 = vsel %vm1724, %v2948, %v2911
    %v2950 = vrot.slane %v2911, 4
    %v2951 = vsel %vm1724, %v2935, %v2950
    %v2952 = vrot.slane %v2939, 4
    %v2953 = vsel %vm1724, %v2952, %v2915
    %v2954 = vrot.slane %v2915, 4
    %v2955 = vsel %vm1724, %v2939, %v2954
    %v2956 = vrot.slane %v1638, 4
    %v2957 = vsel %vm1724, %v2956, %v1606
    %v2958 = vrot.slane %v1606, 4
    %v2959 = vsel %vm1724, %v1638, %v2958
    %v2961 = vunpack.c.l.s4 1983009808
    %v2962 = vunpack.c.0.s8 %v2961
    %v2963 = vperm.slane %v2957, %v2962
    %v2965 = vunpack.c.l.s4 1983009808
    %v2966 = vunpack.c.0.s8 %v2965
    %v2967 = vperm.slane %v2959, %v2966
    %v2968 = vrot.slane %v1654, 4
    %v2969 = vsel %vm1724, %v2968, %v1622
    %v2970 = vrot.slane %v1622, 4
    %v2971 = vsel %vm1724, %v1654, %v2970
    %v2973 = vunpack.c.l.s4 1983009808
    %v2974 = vunpack.c.0.s8 %v2973
    %v2975 = vperm.slane %v2969, %v2974
    %v2977 = vunpack.c.l.s4 1983009808
    %v2978 = vunpack.c.0.s8 %v2977
    %v2979 = vperm.slane %v2971, %v2978
    %v2980 = vrot.slane %v1702, 4
    %v2981 = vsel %vm1724, %v2980, %v1670
    %v2982 = vrot.slane %v1670, 4
    %v2983 = vsel %vm1724, %v1702, %v2982
    %v2985 = vunpack.c.l.s4 1983009808
    %v2986 = vunpack.c.0.s8 %v2985
    %v2987 = vperm.slane %v2981, %v2986
    %v2989 = vunpack.c.l.s4 1983009808
    %v2990 = vunpack.c.0.s8 %v2989
    %v2991 = vperm.slane %v2983, %v2990
    %v2992 = vrot.slane %v1718, 4
    %v2993 = vsel %vm1724, %v2992, %v1686
    %v2994 = vrot.slane %v1686, 4
    %v2995 = vsel %vm1724, %v1718, %v2994
    %v2997 = vunpack.c.l.s4 1983009808
    %v2998 = vunpack.c.0.s8 %v2997
    %v2999 = vperm.slane %v2993, %v2998
    %v3001 = vunpack.c.l.s4 1983009808
    %v3002 = vunpack.c.0.s8 %v3001
    %v3003 = vperm.slane %v2995, %v3002
    %v3004 = vrot.slane %v2975, 4
    %v3005 = vsel %vm1724, %v3004, %v2963
    %v3006 = vrot.slane %v2963, 4
    %v3007 = vsel %vm1724, %v2975, %v3006
    %v3009 = vunpack.c.l.s4 1934713408
    %v3010 = vunpack.c.0.s8 %v3009
    %v3011 = vperm.slane %v3005, %v3010
    %v3013 = vunpack.c.l.s4 1934713408
    %v3014 = vunpack.c.0.s8 %v3013
    %v3015 = vperm.slane %v3007, %v3014
    %v3016 = vrot.slane %v2979, 4
    %v3017 = vsel %vm1724, %v3016, %v2967
    %v3018 = vrot.slane %v2967, 4
    %v3019 = vsel %vm1724, %v2979, %v3018
    %v3021 = vunpack.c.l.s4 1934713408
    %v3022 = vunpack.c.0.s8 %v3021
    %v3023 = vperm.slane %v3017, %v3022
    %v3025 = vunpack.c.l.s4 1934713408
    %v3026 = vunpack.c.0.s8 %v3025
    %v3027 = vperm.slane %v3019, %v3026
    %v3028 = vrot.slane %v2999, 4
    %v3029 = vsel %vm1724, %v3028, %v2987
    %v3030 = vrot.slane %v2987, 4
    %v3031 = vsel %vm1724, %v2999, %v3030
    %v3033 = vunpack.c.l.s4 1934713408
    %v3034 = vunpack.c.0.s8 %v3033
    %v3035 = vperm.slane %v3029, %v3034
    %v3037 = vunpack.c.l.s4 1934713408
    %v3038 = vunpack.c.0.s8 %v3037
    %v3039 = vperm.slane %v3031, %v3038
    %v3040 = vrot.slane %v3003, 4
    %v3041 = vsel %vm1724, %v3040, %v2991
    %v3042 = vrot.slane %v2991, 4
    %v3043 = vsel %vm1724, %v3003, %v3042
    %v3045 = vunpack.c.l.s4 1934713408
    %v3046 = vunpack.c.0.s8 %v3045
    %v3047 = vperm.slane %v3041, %v3046
    %v3049 = vunpack.c.l.s4 1934713408
    %v3050 = vunpack.c.0.s8 %v3049
    %v3051 = vperm.slane %v3043, %v3050
    %v3052 = vrot.slane %v3035, 4
    %v3053 = vsel %vm1724, %v3052, %v3011
    %v3054 = vrot.slane %v3011, 4
    %v3055 = vsel %vm1724, %v3035, %v3054
    %v3056 = vrot.slane %v3039, 4
    %v3057 = vsel %vm1724, %v3056, %v3015
    %v3058 = vrot.slane %v3015, 4
    %v3059 = vsel %vm1724, %v3039, %v3058
    %v3060 = vrot.slane %v3047, 4
    %v3061 = vsel %vm1724, %v3060, %v3023
    %v3062 = vrot.slane %v3023, 4
    %v3063 = vsel %vm1724, %v3047, %v3062
    %v3064 = vrot.slane %v3051, 4
    %v3065 = vsel %vm1724, %v3064, %v3027
    %v3066 = vrot.slane %v3027, 4
    %v3067 = vsel %vm1724, %v3051, %v3066
    %v3068 = vrot.slane %v1639, 4
    %v3069 = vsel %vm1724, %v3068, %v1607
    %v3070 = vrot.slane %v1607, 4
    %v3071 = vsel %vm1724, %v1639, %v3070
    %v3073 = vunpack.c.l.s4 1983009808
    %v3074 = vunpack.c.0.s8 %v3073
    %v3075 = vperm.slane %v3069, %v3074
    %v3077 = vunpack.c.l.s4 1983009808
    %v3078 = vunpack.c.0.s8 %v3077
    %v3079 = vperm.slane %v3071, %v3078
    %v3080 = vrot.slane %v1655, 4
    %v3081 = vsel %vm1724, %v3080, %v1623
    %v3082 = vrot.slane %v1623, 4
    %v3083 = vsel %vm1724, %v1655, %v3082
    %v3085 = vunpack.c.l.s4 1983009808
    %v3086 = vunpack.c.0.s8 %v3085
    %v3087 = vperm.slane %v3081, %v3086
    %v3089 = vunpack.c.l.s4 1983009808
    %v3090 = vunpack.c.0.s8 %v3089
    %v3091 = vperm.slane %v3083, %v3090
    %v3092 = vrot.slane %v1703, 4
    %v3093 = vsel %vm1724, %v3092, %v1671
    %v3094 = vrot.slane %v1671, 4
    %v3095 = vsel %vm1724, %v1703, %v3094
    %v3097 = vunpack.c.l.s4 1983009808
    %v3098 = vunpack.c.0.s8 %v3097
    %v3099 = vperm.slane %v3093, %v3098
    %v3101 = vunpack.c.l.s4 1983009808
    %v3102 = vunpack.c.0.s8 %v3101
    %v3103 = vperm.slane %v3095, %v3102
    %v3104 = vrot.slane %v1719, 4
    %v3105 = vsel %vm1724, %v3104, %v1687
    %v3106 = vrot.slane %v1687, 4
    %v3107 = vsel %vm1724, %v1719, %v3106
    %v3109 = vunpack.c.l.s4 1983009808
    %v3110 = vunpack.c.0.s8 %v3109
    %v3111 = vperm.slane %v3105, %v3110
    %v3113 = vunpack.c.l.s4 1983009808
    %v3114 = vunpack.c.0.s8 %v3113
    %v3115 = vperm.slane %v3107, %v3114
    %v3116 = vrot.slane %v3087, 4
    %v3117 = vsel %vm1724, %v3116, %v3075
    %v3118 = vrot.slane %v3075, 4
    %v3119 = vsel %vm1724, %v3087, %v3118
    %v3121 = vunpack.c.l.s4 1934713408
    %v3122 = vunpack.c.0.s8 %v3121
    %v3123 = vperm.slane %v3117, %v3122
    %v3125 = vunpack.c.l.s4 1934713408
    %v3126 = vunpack.c.0.s8 %v3125
    %v3127 = vperm.slane %v3119, %v3126
    %v3128 = vrot.slane %v3091, 4
    %v3129 = vsel %vm1724, %v3128, %v3079
    %v3130 = vrot.slane %v3079, 4
    %v3131 = vsel %vm1724, %v3091, %v3130
    %v3133 = vunpack.c.l.s4 1934713408
    %v3134 = vunpack.c.0.s8 %v3133
    %v3135 = vperm.slane %v3129, %v3134
    %v3137 = vunpack.c.l.s4 1934713408
    %v3138 = vunpack.c.0.s8 %v3137
    %v3139 = vperm.slane %v3131, %v3138
    %v3140 = vrot.slane %v3111, 4
    %v3141 = vsel %vm1724, %v3140, %v3099
    %v3142 = vrot.slane %v3099, 4
    %v3143 = vsel %vm1724, %v3111, %v3142
    %v3145 = vunpack.c.l.s4 1934713408
    %v3146 = vunpack.c.0.s8 %v3145
    %v3147 = vperm.slane %v3141, %v3146
    %v3149 = vunpack.c.l.s4 1934713408
    %v3150 = vunpack.c.0.s8 %v3149
    %v3151 = vperm.slane %v3143, %v3150
    %v3152 = vrot.slane %v3115, 4
    %v3153 = vsel %vm1724, %v3152, %v3103
    %v3154 = vrot.slane %v3103, 4
    %v3155 = vsel %vm1724, %v3115, %v3154
    %v3157 = vunpack.c.l.s4 1934713408
    %v3158 = vunpack.c.0.s8 %v3157
    %v3159 = vperm.slane %v3153, %v3158
    %v3161 = vunpack.c.l.s4 1934713408
    %v3162 = vunpack.c.0.s8 %v3161
    %v3163 = vperm.slane %v3155, %v3162
    %v3164 = vrot.slane %v3147, 4
    %v3165 = vsel %vm1724, %v3164, %v3123
    %v3166 = vrot.slane %v3123, 4
    %v3167 = vsel %vm1724, %v3147, %v3166
    %v3168 = vrot.slane %v3151, 4
    %v3169 = vsel %vm1724, %v3168, %v3127
    %v3170 = vrot.slane %v3127, 4
    %v3171 = vsel %vm1724, %v3151, %v3170
    %v3172 = vrot.slane %v3159, 4
    %v3173 = vsel %vm1724, %v3172, %v3135
    %v3174 = vrot.slane %v3135, 4
    %v3175 = vsel %vm1724, %v3159, %v3174
    %v3176 = vrot.slane %v3163, 4
    %v3177 = vsel %vm1724, %v3176, %v3139
    %v3178 = vrot.slane %v3139, 4
    %v3179 = vsel %vm1724, %v3163, %v3178
    %v3180 = vrot.slane %v1640, 4
    %v3181 = vsel %vm1724, %v3180, %v1608
    %v3182 = vrot.slane %v1608, 4
    %v3183 = vsel %vm1724, %v1640, %v3182
    %v3185 = vunpack.c.l.s4 1983009808
    %v3186 = vunpack.c.0.s8 %v3185
    %v3187 = vperm.slane %v3181, %v3186
    %v3189 = vunpack.c.l.s4 1983009808
    %v3190 = vunpack.c.0.s8 %v3189
    %v3191 = vperm.slane %v3183, %v3190
    %v3192 = vrot.slane %v1656, 4
    %v3193 = vsel %vm1724, %v3192, %v1624
    %v3194 = vrot.slane %v1624, 4
    %v3195 = vsel %vm1724, %v1656, %v3194
    %v3197 = vunpack.c.l.s4 1983009808
    %v3198 = vunpack.c.0.s8 %v3197
    %v3199 = vperm.slane %v3193, %v3198
    %v3201 = vunpack.c.l.s4 1983009808
    %v3202 = vunpack.c.0.s8 %v3201
    %v3203 = vperm.slane %v3195, %v3202
    %v3204 = vrot.slane %v1704, 4
    %v3205 = vsel %vm1724, %v3204, %v1672
    %v3206 = vrot.slane %v1672, 4
    %v3207 = vsel %vm1724, %v1704, %v3206
    %v3209 = vunpack.c.l.s4 1983009808
    %v3210 = vunpack.c.0.s8 %v3209
    %v3211 = vperm.slane %v3205, %v3210
    %v3213 = vunpack.c.l.s4 1983009808
    %v3214 = vunpack.c.0.s8 %v3213
    %v3215 = vperm.slane %v3207, %v3214
    %v3216 = vrot.slane %v1720, 4
    %v3217 = vsel %vm1724, %v3216, %v1688
    %v3218 = vrot.slane %v1688, 4
    %v3219 = vsel %vm1724, %v1720, %v3218
    %v3221 = vunpack.c.l.s4 1983009808
    %v3222 = vunpack.c.0.s8 %v3221
    %v3223 = vperm.slane %v3217, %v3222
    %v3225 = vunpack.c.l.s4 1983009808
    %v3226 = vunpack.c.0.s8 %v3225
    %v3227 = vperm.slane %v3219, %v3226
    %v3228 = vrot.slane %v3199, 4
    %v3229 = vsel %vm1724, %v3228, %v3187
    %v3230 = vrot.slane %v3187, 4
    %v3231 = vsel %vm1724, %v3199, %v3230
    %v3233 = vunpack.c.l.s4 1934713408
    %v3234 = vunpack.c.0.s8 %v3233
    %v3235 = vperm.slane %v3229, %v3234
    %v3237 = vunpack.c.l.s4 1934713408
    %v3238 = vunpack.c.0.s8 %v3237
    %v3239 = vperm.slane %v3231, %v3238
    %v3240 = vrot.slane %v3203, 4
    %v3241 = vsel %vm1724, %v3240, %v3191
    %v3242 = vrot.slane %v3191, 4
    %v3243 = vsel %vm1724, %v3203, %v3242
    %v3245 = vunpack.c.l.s4 1934713408
    %v3246 = vunpack.c.0.s8 %v3245
    %v3247 = vperm.slane %v3241, %v3246
    %v3249 = vunpack.c.l.s4 1934713408
    %v3250 = vunpack.c.0.s8 %v3249
    %v3251 = vperm.slane %v3243, %v3250
    %v3252 = vrot.slane %v3223, 4
    %v3253 = vsel %vm1724, %v3252, %v3211
    %v3254 = vrot.slane %v3211, 4
    %v3255 = vsel %vm1724, %v3223, %v3254
    %v3257 = vunpack.c.l.s4 1934713408
    %v3258 = vunpack.c.0.s8 %v3257
    %v3259 = vperm.slane %v3253, %v3258
    %v3261 = vunpack.c.l.s4 1934713408
    %v3262 = vunpack.c.0.s8 %v3261
    %v3263 = vperm.slane %v3255, %v3262
    %v3264 = vrot.slane %v3227, 4
    %v3265 = vsel %vm1724, %v3264, %v3215
    %v3266 = vrot.slane %v3215, 4
    %v3267 = vsel %vm1724, %v3227, %v3266
    %v3269 = vunpack.c.l.s4 1934713408
    %v3270 = vunpack.c.0.s8 %v3269
    %v3271 = vperm.slane %v3265, %v3270
    %v3273 = vunpack.c.l.s4 1934713408
    %v3274 = vunpack.c.0.s8 %v3273
    %v3275 = vperm.slane %v3267, %v3274
    %v3276 = vrot.slane %v3259, 4
    %v3277 = vsel %vm1724, %v3276, %v3235
    %v3278 = vrot.slane %v3235, 4
    %v3279 = vsel %vm1724, %v3259, %v3278
    %v3280 = vrot.slane %v3263, 4
    %v3281 = vsel %vm1724, %v3280, %v3239
    %v3282 = vrot.slane %v3239, 4
    %v3283 = vsel %vm1724, %v3263, %v3282
    %v3284 = vrot.slane %v3271, 4
    %v3285 = vsel %vm1724, %v3284, %v3247
    %v3286 = vrot.slane %v3247, 4
    %v3287 = vsel %vm1724, %v3271, %v3286
    %v3288 = vrot.slane %v3275, 4
    %v3289 = vsel %vm1724, %v3288, %v3251
    %v3290 = vrot.slane %v3251, 4
    %v3291 = vsel %vm1724, %v3275, %v3290
    %v3292 = vrot.slane %v1641, 4
    %v3293 = vsel %vm1724, %v3292, %v1609
    %v3294 = vrot.slane %v1609, 4
    %v3295 = vsel %vm1724, %v1641, %v3294
    %v3297 = vunpack.c.l.s4 1983009808
    %v3298 = vunpack.c.0.s8 %v3297
    %v3299 = vperm.slane %v3293, %v3298
    %v3301 = vunpack.c.l.s4 1983009808
    %v3302 = vunpack.c.0.s8 %v3301
    %v3303 = vperm.slane %v3295, %v3302
    %v3304 = vrot.slane %v1657, 4
    %v3305 = vsel %vm1724, %v3304, %v1625
    %v3306 = vrot.slane %v1625, 4
    %v3307 = vsel %vm1724, %v1657, %v3306
    %v3309 = vunpack.c.l.s4 1983009808
    %v3310 = vunpack.c.0.s8 %v3309
    %v3311 = vperm.slane %v3305, %v3310
    %v3313 = vunpack.c.l.s4 1983009808
    %v3314 = vunpack.c.0.s8 %v3313
    %v3315 = vperm.slane %v3307, %v3314
    %v3316 = vrot.slane %v1705, 4
    %v3317 = vsel %vm1724, %v3316, %v1673
    %v3318 = vrot.slane %v1673, 4
    %v3319 = vsel %vm1724, %v1705, %v3318
    %v3321 = vunpack.c.l.s4 1983009808
    %v3322 = vunpack.c.0.s8 %v3321
    %v3323 = vperm.slane %v3317, %v3322
    %v3325 = vunpack.c.l.s4 1983009808
    %v3326 = vunpack.c.0.s8 %v3325
    %v3327 = vperm.slane %v3319, %v3326
    %v3328 = vrot.slane %v1721, 4
    %v3329 = vsel %vm1724, %v3328, %v1689
    %v3330 = vrot.slane %v1689, 4
    %v3331 = vsel %vm1724, %v1721, %v3330
    %v3333 = vunpack.c.l.s4 1983009808
    %v3334 = vunpack.c.0.s8 %v3333
    %v3335 = vperm.slane %v3329, %v3334
    %v3337 = vunpack.c.l.s4 1983009808
    %v3338 = vunpack.c.0.s8 %v3337
    %v3339 = vperm.slane %v3331, %v3338
    %v3340 = vrot.slane %v3311, 4
    %v3341 = vsel %vm1724, %v3340, %v3299
    %v3342 = vrot.slane %v3299, 4
    %v3343 = vsel %vm1724, %v3311, %v3342
    %v3345 = vunpack.c.l.s4 1934713408
    %v3346 = vunpack.c.0.s8 %v3345
    %v3347 = vperm.slane %v3341, %v3346
    %v3349 = vunpack.c.l.s4 1934713408
    %v3350 = vunpack.c.0.s8 %v3349
    %v3351 = vperm.slane %v3343, %v3350
    %v3352 = vrot.slane %v3315, 4
    %v3353 = vsel %vm1724, %v3352, %v3303
    %v3354 = vrot.slane %v3303, 4
    %v3355 = vsel %vm1724, %v3315, %v3354
    %v3357 = vunpack.c.l.s4 1934713408
    %v3358 = vunpack.c.0.s8 %v3357
    %v3359 = vperm.slane %v3353, %v3358
    %v3361 = vunpack.c.l.s4 1934713408
    %v3362 = vunpack.c.0.s8 %v3361
    %v3363 = vperm.slane %v3355, %v3362
    %v3364 = vrot.slane %v3335, 4
    %v3365 = vsel %vm1724, %v3364, %v3323
    %v3366 = vrot.slane %v3323, 4
    %v3367 = vsel %vm1724, %v3335, %v3366
    %v3369 = vunpack.c.l.s4 1934713408
    %v3370 = vunpack.c.0.s8 %v3369
    %v3371 = vperm.slane %v3365, %v3370
    %v3373 = vunpack.c.l.s4 1934713408
    %v3374 = vunpack.c.0.s8 %v3373
    %v3375 = vperm.slane %v3367, %v3374
    %v3376 = vrot.slane %v3339, 4
    %v3377 = vsel %vm1724, %v3376, %v3327
    %v3378 = vrot.slane %v3327, 4
    %v3379 = vsel %vm1724, %v3339, %v3378
    %v3381 = vunpack.c.l.s4 1934713408
    %v3382 = vunpack.c.0.s8 %v3381
    %v3383 = vperm.slane %v3377, %v3382
    %v3385 = vunpack.c.l.s4 1934713408
    %v3386 = vunpack.c.0.s8 %v3385
    %v3387 = vperm.slane %v3379, %v3386
    %v3388 = vrot.slane %v3371, 4
    %v3389 = vsel %vm1724, %v3388, %v3347
    %v3390 = vrot.slane %v3347, 4
    %v3391 = vsel %vm1724, %v3371, %v3390
    %v3392 = vrot.slane %v3375, 4
    %v3393 = vsel %vm1724, %v3392, %v3351
    %v3394 = vrot.slane %v3351, 4
    %v3395 = vsel %vm1724, %v3375, %v3394
    %v3396 = vrot.slane %v3383, 4
    %v3397 = vsel %vm1724, %v3396, %v3359
    %v3398 = vrot.slane %v3359, 4
    %v3399 = vsel %vm1724, %v3383, %v3398
    %v3400 = vrot.slane %v3387, 4
    %v3401 = vsel %vm1724, %v3400, %v3363
    %v3402 = vrot.slane %v3363, 4
    %v3403 = vsel %vm1724, %v3387, %v3402
    %v3404 = vrot.slane %v1642, 4
    %v3405 = vsel %vm1724, %v3404, %v1610
    %v3406 = vrot.slane %v1610, 4
    %v3407 = vsel %vm1724, %v1642, %v3406
    %v3409 = vunpack.c.l.s4 1983009808
    %v3410 = vunpack.c.0.s8 %v3409
    %v3411 = vperm.slane %v3405, %v3410
    %v3413 = vunpack.c.l.s4 1983009808
    %v3414 = vunpack.c.0.s8 %v3413
    %v3415 = vperm.slane %v3407, %v3414
    %v3416 = vrot.slane %v1658, 4
    %v3417 = vsel %vm1724, %v3416, %v1626
    %v3418 = vrot.slane %v1626, 4
    %v3419 = vsel %vm1724, %v1658, %v3418
    %v3421 = vunpack.c.l.s4 1983009808
    %v3422 = vunpack.c.0.s8 %v3421
    %v3423 = vperm.slane %v3417, %v3422
    %v3425 = vunpack.c.l.s4 1983009808
    %v3426 = vunpack.c.0.s8 %v3425
    %v3427 = vperm.slane %v3419, %v3426
    %v3428 = vrot.slane %v1706, 4
    %v3429 = vsel %vm1724, %v3428, %v1674
    %v3430 = vrot.slane %v1674, 4
    %v3431 = vsel %vm1724, %v1706, %v3430
    %v3433 = vunpack.c.l.s4 1983009808
    %v3434 = vunpack.c.0.s8 %v3433
    %v3435 = vperm.slane %v3429, %v3434
    %v3437 = vunpack.c.l.s4 1983009808
    %v3438 = vunpack.c.0.s8 %v3437
    %v3439 = vperm.slane %v3431, %v3438
    %v3440 = vrot.slane %v1722, 4
    %v3441 = vsel %vm1724, %v3440, %v1690
    %v3442 = vrot.slane %v1690, 4
    %v3443 = vsel %vm1724, %v1722, %v3442
    %v3445 = vunpack.c.l.s4 1983009808
    %v3446 = vunpack.c.0.s8 %v3445
    %v3447 = vperm.slane %v3441, %v3446
    %v3449 = vunpack.c.l.s4 1983009808
    %v3450 = vunpack.c.0.s8 %v3449
    %v3451 = vperm.slane %v3443, %v3450
    %v3452 = vrot.slane %v3423, 4
    %v3453 = vsel %vm1724, %v3452, %v3411
    %v3454 = vrot.slane %v3411, 4
    %v3455 = vsel %vm1724, %v3423, %v3454
    %v3457 = vunpack.c.l.s4 1934713408
    %v3458 = vunpack.c.0.s8 %v3457
    %v3459 = vperm.slane %v3453, %v3458
    %v3461 = vunpack.c.l.s4 1934713408
    %v3462 = vunpack.c.0.s8 %v3461
    %v3463 = vperm.slane %v3455, %v3462
    %v3464 = vrot.slane %v3427, 4
    %v3465 = vsel %vm1724, %v3464, %v3415
    %v3466 = vrot.slane %v3415, 4
    %v3467 = vsel %vm1724, %v3427, %v3466
    %v3469 = vunpack.c.l.s4 1934713408
    %v3470 = vunpack.c.0.s8 %v3469
    %v3471 = vperm.slane %v3465, %v3470
    %v3473 = vunpack.c.l.s4 1934713408
    %v3474 = vunpack.c.0.s8 %v3473
    %v3475 = vperm.slane %v3467, %v3474
    %v3476 = vrot.slane %v3447, 4
    %v3477 = vsel %vm1724, %v3476, %v3435
    %v3478 = vrot.slane %v3435, 4
    %v3479 = vsel %vm1724, %v3447, %v3478
    %v3481 = vunpack.c.l.s4 1934713408
    %v3482 = vunpack.c.0.s8 %v3481
    %v3483 = vperm.slane %v3477, %v3482
    %v3485 = vunpack.c.l.s4 1934713408
    %v3486 = vunpack.c.0.s8 %v3485
    %v3487 = vperm.slane %v3479, %v3486
    %v3488 = vrot.slane %v3451, 4
    %v3489 = vsel %vm1724, %v3488, %v3439
    %v3490 = vrot.slane %v3439, 4
    %v3491 = vsel %vm1724, %v3451, %v3490
    %v3493 = vunpack.c.l.s4 1934713408
    %v3494 = vunpack.c.0.s8 %v3493
    %v3495 = vperm.slane %v3489, %v3494
    %v3497 = vunpack.c.l.s4 1934713408
    %v3498 = vunpack.c.0.s8 %v3497
    %v3499 = vperm.slane %v3491, %v3498
    %v3500 = vrot.slane %v3483, 4
    %v3501 = vsel %vm1724, %v3500, %v3459
    %v3502 = vrot.slane %v3459, 4
    %v3503 = vsel %vm1724, %v3483, %v3502
    %v3504 = vrot.slane %v3487, 4
    %v3505 = vsel %vm1724, %v3504, %v3463
    %v3506 = vrot.slane %v3463, 4
    %v3507 = vsel %vm1724, %v3487, %v3506
    %v3508 = vrot.slane %v3495, 4
    %v3509 = vsel %vm1724, %v3508, %v3471
    %v3510 = vrot.slane %v3471, 4
    %v3511 = vsel %vm1724, %v3495, %v3510
    %v3512 = vrot.slane %v3499, 4
    %v3513 = vsel %vm1724, %v3512, %v3475
    %v3514 = vrot.slane %v3475, 4
    %v3515 = vsel %vm1724, %v3499, %v3514
    %3517 = vrot.lane.b32.xlu0 %v1823, 2
    %v3518 = vpop.permute.xlu0 %3517
    %3521 = vrot.lane.b32.xlu0 %v1825, 4
    %v3522 = vpop.permute.xlu0 %3521
    %3525 = vrot.lane.b32.xlu0 %v1827, 6
    %v3526 = vpop.permute.xlu0 %3525
    %3529 = vrot.lane.b32.xlu0 %v1829, 8
    %v3530 = vpop.permute.xlu0 %3529
    %3533 = vrot.lane.b32.xlu0 %v1831, 10
    %v3534 = vpop.permute.xlu0 %3533
    %3537 = vrot.lane.b32.xlu0 %v1833, 12
    %v3538 = vpop.permute.xlu0 %3537
    %3541 = vrot.lane.b32.xlu0 %v1835, 14
    %v3542 = vpop.permute.xlu0 %3541
    %3545 = vrot.lane.b32.xlu0 %v1933, 16
    %v3546 = vpop.permute.xlu0 %3545
    %3549 = vrot.lane.b32.xlu0 %v1935, 18
    %v3550 = vpop.permute.xlu0 %3549
    %3553 = vrot.lane.b32.xlu0 %v1937, 20
    %v3554 = vpop.permute.xlu0 %3553
    %3557 = vrot.lane.b32.xlu0 %v1939, 22
    %v3558 = vpop.permute.xlu0 %3557
    %3561 = vrot.lane.b32.xlu0 %v1941, 24
    %v3562 = vpop.permute.xlu0 %3561
    %3565 = vrot.lane.b32.xlu0 %v1943, 26
    %v3566 = vpop.permute.xlu0 %3565
    %3569 = vrot.lane.b32.xlu0 %v1945, 28
    %v3570 = vpop.permute.xlu0 %3569
    %3573 = vrot.lane.b32.xlu0 %v1947, 30
    %v3574 = vpop.permute.xlu0 %3573
    %3577 = vrot.lane.b32.xlu0 %v2045, 32
    %v3578 = vpop.permute.xlu0 %3577
    %3581 = vrot.lane.b32.xlu0 %v2047, 34
    %v3582 = vpop.permute.xlu0 %3581
    %3585 = vrot.lane.b32.xlu0 %v2049, 36
    %v3586 = vpop.permute.xlu0 %3585
    %3589 = vrot.lane.b32.xlu0 %v2051, 38
    %v3590 = vpop.permute.xlu0 %3589
    %3593 = vrot.lane.b32.xlu0 %v2053, 40
    %v3594 = vpop.permute.xlu0 %3593
    %3597 = vrot.lane.b32.xlu0 %v2055, 42
    %v3598 = vpop.permute.xlu0 %3597
    %3601 = vrot.lane.b32.xlu0 %v2057, 44
    %v3602 = vpop.permute.xlu0 %3601
    %3605 = vrot.lane.b32.xlu0 %v2059, 46
    %v3606 = vpop.permute.xlu0 %3605
    %3609 = vrot.lane.b32.xlu0 %v2157, 48
    %v3610 = vpop.permute.xlu0 %3609
    %3613 = vrot.lane.b32.xlu0 %v2159, 50
    %v3614 = vpop.permute.xlu0 %3613
    %3617 = vrot.lane.b32.xlu0 %v2161, 52
    %v3618 = vpop.permute.xlu0 %3617
    %3621 = vrot.lane.b32.xlu0 %v2163, 54
    %v3622 = vpop.permute.xlu0 %3621
    %3625 = vrot.lane.b32.xlu0 %v2165, 56
    %v3626 = vpop.permute.xlu0 %3625
    %3629 = vrot.lane.b32.xlu0 %v2167, 58
    %v3630 = vpop.permute.xlu0 %3629
    %3633 = vrot.lane.b32.xlu0 %v2169, 60
    %v3634 = vpop.permute.xlu0 %3633
    %3637 = vrot.lane.b32.xlu0 %v2171, 62
    %v3638 = vpop.permute.xlu0 %3637
    %3641 = vrot.lane.b32.xlu0 %v2269, 64
    %v3642 = vpop.permute.xlu0 %3641
    %3645 = vrot.lane.b32.xlu0 %v2271, 66
    %v3646 = vpop.permute.xlu0 %3645
    %3649 = vrot.lane.b32.xlu0 %v2273, 68
    %v3650 = vpop.permute.xlu0 %3649
    %3653 = vrot.lane.b32.xlu0 %v2275, 70
    %v3654 = vpop.permute.xlu0 %3653
    %3657 = vrot.lane.b32.xlu0 %v2277, 72
    %v3658 = vpop.permute.xlu0 %3657
    %3661 = vrot.lane.b32.xlu0 %v2279, 74
    %v3662 = vpop.permute.xlu0 %3661
    %3665 = vrot.lane.b32.xlu0 %v2281, 76
    %v3666 = vpop.permute.xlu0 %3665
    %3669 = vrot.lane.b32.xlu0 %v2283, 78
    %v3670 = vpop.permute.xlu0 %3669
    %3673 = vrot.lane.b32.xlu0 %v2381, 80
    %v3674 = vpop.permute.xlu0 %3673
    %3677 = vrot.lane.b32.xlu0 %v2383, 82
    %v3678 = vpop.permute.xlu0 %3677
    %3681 = vrot.lane.b32.xlu0 %v2385, 84
    %v3682 = vpop.permute.xlu0 %3681
    %3685 = vrot.lane.b32.xlu0 %v2387, 86
    %v3686 = vpop.permute.xlu0 %3685
    %3689 = vrot.lane.b32.xlu0 %v2389, 88
    %v3690 = vpop.permute.xlu0 %3689
    %3693 = vrot.lane.b32.xlu0 %v2391, 90
    %v3694 = vpop.permute.xlu0 %3693
    %3697 = vrot.lane.b32.xlu0 %v2393, 92
    %v3698 = vpop.permute.xlu0 %3697
    %3701 = vrot.lane.b32.xlu0 %v2395, 94
    %v3702 = vpop.permute.xlu0 %3701
    %3705 = vrot.lane.b32.xlu0 %v2493, 96
    %v3706 = vpop.permute.xlu0 %3705
    %3709 = vrot.lane.b32.xlu0 %v2495, 98
    %v3710 = vpop.permute.xlu0 %3709
    %3713 = vrot.lane.b32.xlu0 %v2497, 100
    %v3714 = vpop.permute.xlu0 %3713
    %3717 = vrot.lane.b32.xlu0 %v2499, 102
    %v3718 = vpop.permute.xlu0 %3717
    %3721 = vrot.lane.b32.xlu0 %v2501, 104
    %v3722 = vpop.permute.xlu0 %3721
    %3725 = vrot.lane.b32.xlu0 %v2503, 106
    %v3726 = vpop.permute.xlu0 %3725
    %3729 = vrot.lane.b32.xlu0 %v2505, 108
    %v3730 = vpop.permute.xlu0 %3729
    %3733 = vrot.lane.b32.xlu0 %v2507, 110
    %v3734 = vpop.permute.xlu0 %3733
    %3737 = vrot.lane.b32.xlu0 %v2605, 112
    %v3738 = vpop.permute.xlu0 %3737
    %3741 = vrot.lane.b32.xlu0 %v2607, 114
    %v3742 = vpop.permute.xlu0 %3741
    %3745 = vrot.lane.b32.xlu0 %v2609, 116
    %v3746 = vpop.permute.xlu0 %3745
    %3749 = vrot.lane.b32.xlu0 %v2611, 118
    %v3750 = vpop.permute.xlu0 %3749
    %3753 = vrot.lane.b32.xlu0 %v2613, 120
    %v3754 = vpop.permute.xlu0 %3753
    %3757 = vrot.lane.b32.xlu0 %v2615, 122
    %v3758 = vpop.permute.xlu0 %3757
    %3761 = vrot.lane.b32.xlu0 %v2617, 124
    %v3762 = vpop.permute.xlu0 %3761
    %3765 = vrot.lane.b32.xlu0 %v2619, 126
    %v3766 = vpop.permute.xlu0 %3765
    %3769 = vrot.lane.b32.xlu0 %v2719, 2
    %v3770 = vpop.permute.xlu0 %3769
    %3773 = vrot.lane.b32.xlu0 %v2721, 4
    %v3774 = vpop.permute.xlu0 %3773
    %3777 = vrot.lane.b32.xlu0 %v2723, 6
    %v3778 = vpop.permute.xlu0 %3777
    %3781 = vrot.lane.b32.xlu0 %v2725, 8
    %v3782 = vpop.permute.xlu0 %3781
    %3785 = vrot.lane.b32.xlu0 %v2727, 10
    %v3786 = vpop.permute.xlu0 %3785
    %3789 = vrot.lane.b32.xlu0 %v2729, 12
    %v3790 = vpop.permute.xlu0 %3789
    %3793 = vrot.lane.b32.xlu0 %v2731, 14
    %v3794 = vpop.permute.xlu0 %3793
    %3797 = vrot.lane.b32.xlu0 %v2829, 16
    %v3798 = vpop.permute.xlu0 %3797
    %3801 = vrot.lane.b32.xlu0 %v2831, 18
    %v3802 = vpop.permute.xlu0 %3801
    %3805 = vrot.lane.b32.xlu0 %v2833, 20
    %v3806 = vpop.permute.xlu0 %3805
    %3809 = vrot.lane.b32.xlu0 %v2835, 22
    %v3810 = vpop.permute.xlu0 %3809
    %3813 = vrot.lane.b32.xlu0 %v2837, 24
    %v3814 = vpop.permute.xlu0 %3813
    %3817 = vrot.lane.b32.xlu0 %v2839, 26
    %v3818 = vpop.permute.xlu0 %3817
    %3821 = vrot.lane.b32.xlu0 %v2841, 28
    %v3822 = vpop.permute.xlu0 %3821
    %3825 = vrot.lane.b32.xlu0 %v2843, 30
    %v3826 = vpop.permute.xlu0 %3825
    %3829 = vrot.lane.b32.xlu0 %v2941, 32
    %v3830 = vpop.permute.xlu0 %3829
    %3833 = vrot.lane.b32.xlu0 %v2943, 34
    %v3834 = vpop.permute.xlu0 %3833
    %3837 = vrot.lane.b32.xlu0 %v2945, 36
    %v3838 = vpop.permute.xlu0 %3837
    %3841 = vrot.lane.b32.xlu0 %v2947, 38
    %v3842 = vpop.permute.xlu0 %3841
    %3845 = vrot.lane.b32.xlu0 %v2949, 40
    %v3846 = vpop.permute.xlu0 %3845
    %3849 = vrot.lane.b32.xlu0 %v2951, 42
    %v3850 = vpop.permute.xlu0 %3849
    %3853 = vrot.lane.b32.xlu0 %v2953, 44
    %v3854 = vpop.permute.xlu0 %3853
    %3857 = vrot.lane.b32.xlu0 %v2955, 46
    %v3858 = vpop.permute.xlu0 %3857
    %3861 = vrot.lane.b32.xlu0 %v3053, 48
    %v3862 = vpop.permute.xlu0 %3861
    %3865 = vrot.lane.b32.xlu0 %v3055, 50
    %v3866 = vpop.permute.xlu0 %3865
    %3869 = vrot.lane.b32.xlu0 %v3057, 52
    %v3870 = vpop.permute.xlu0 %3869
    %3873 = vrot.lane.b32.xlu0 %v3059, 54
    %v3874 = vpop.permute.xlu0 %3873
    %3877 = vrot.lane.b32.xlu0 %v3061, 56
    %v3878 = vpop.permute.xlu0 %3877
    %3881 = vrot.lane.b32.xlu0 %v3063, 58
    %v3882 = vpop.permute.xlu0 %3881
    %3885 = vrot.lane.b32.xlu0 %v3065, 60
    %v3886 = vpop.permute.xlu0 %3885
    %3889 = vrot.lane.b32.xlu0 %v3067, 62
    %v3890 = vpop.permute.xlu0 %3889
    %3893 = vrot.lane.b32.xlu0 %v3165, 64
    %v3894 = vpop.permute.xlu0 %3893
    %3897 = vrot.lane.b32.xlu0 %v3167, 66
    %v3898 = vpop.permute.xlu0 %3897
    %3901 = vrot.lane.b32.xlu0 %v3169, 68
    %v3902 = vpop.permute.xlu0 %3901
    %3905 = vrot.lane.b32.xlu0 %v3171, 70
    %v3906 = vpop.permute.xlu0 %3905
    %3909 = vrot.lane.b32.xlu0 %v3173, 72
    %v3910 = vpop.permute.xlu0 %3909
    %3913 = vrot.lane.b32.xlu0 %v3175, 74
    %v3914 = vpop.permute.xlu0 %3913
    %3917 = vrot.lane.b32.xlu0 %v3177, 76
    %v3918 = vpop.permute.xlu0 %3917
    %3921 = vrot.lane.b32.xlu0 %v3179, 78
    %v3922 = vpop.permute.xlu0 %3921
    %3925 = vrot.lane.b32.xlu0 %v3277, 80
    %v3926 = vpop.permute.xlu0 %3925
    %3929 = vrot.lane.b32.xlu0 %v3279, 82
    %v3930 = vpop.permute.xlu0 %3929
    %3933 = vrot.lane.b32.xlu0 %v3281, 84
    %v3934 = vpop.permute.xlu0 %3933
    %3937 = vrot.lane.b32.xlu0 %v3283, 86
    %v3938 = vpop.permute.xlu0 %3937
    %3941 = vrot.lane.b32.xlu0 %v3285, 88
    %v3942 = vpop.permute.xlu0 %3941
    %3945 = vrot.lane.b32.xlu0 %v3287, 90
    %v3946 = vpop.permute.xlu0 %3945
    %3949 = vrot.lane.b32.xlu0 %v3289, 92
    %v3950 = vpop.permute.xlu0 %3949
    %3953 = vrot.lane.b32.xlu0 %v3291, 94
    %v3954 = vpop.permute.xlu0 %3953
    %3957 = vrot.lane.b32.xlu0 %v3389, 96
    %v3958 = vpop.permute.xlu0 %3957
    %3961 = vrot.lane.b32.xlu0 %v3391, 98
    %v3962 = vpop.permute.xlu0 %3961
    %3965 = vrot.lane.b32.xlu0 %v3393, 100
    %v3966 = vpop.permute.xlu0 %3965
    %3969 = vrot.lane.b32.xlu0 %v3395, 102
    %v3970 = vpop.permute.xlu0 %3969
    %3973 = vrot.lane.b32.xlu0 %v3397, 104
    %v3974 = vpop.permute.xlu0 %3973
    %3977 = vrot.lane.b32.xlu0 %v3399, 106
    %v3978 = vpop.permute.xlu0 %3977
    %3981 = vrot.lane.b32.xlu0 %v3401, 108
    %v3982 = vpop.permute.xlu0 %3981
    %3985 = vrot.lane.b32.xlu0 %v3403, 110
    %v3986 = vpop.permute.xlu0 %3985
    %3989 = vrot.lane.b32.xlu0 %v3501, 112
    %v3990 = vpop.permute.xlu0 %3989
    %3993 = vrot.lane.b32.xlu0 %v3503, 114
    %v3994 = vpop.permute.xlu0 %3993
    %3997 = vrot.lane.b32.xlu0 %v3505, 116
    %v3998 = vpop.permute.xlu0 %3997
    %4001 = vrot.lane.b32.xlu0 %v3507, 118
    %v4002 = vpop.permute.xlu0 %4001
    %4005 = vrot.lane.b32.xlu0 %v3509, 120
    %v4006 = vpop.permute.xlu0 %4005
    %4009 = vrot.lane.b32.xlu0 %v3511, 122
    %v4010 = vpop.permute.xlu0 %4009
    %4013 = vrot.lane.b32.xlu0 %v3513, 124
    %v4014 = vpop.permute.xlu0 %4013
    %4017 = vrot.lane.b32.xlu0 %v3515, 126
    %v4018 = vpop.permute.xlu0 %4017
    %vm4020 = vcmask 15360
    %v4021 = vsel %vm4020, %v1821, %v3518
    %vm4022 = vcmask 31744
    %v4023 = vsel %vm4022, %v4021, %v3522
    %vm4024 = vcmask 48128
    %v4025 = vsel %vm4024, %v4023, %v3526
    %vm4026 = vcmask 64512
    %v4027 = vsel %vm4026, %v4025, %v3530
    %vm4028 = vcmask 80896
    %v4029 = vsel %vm4028, %v4027, %v3534
    %vm4030 = vcmask 97280
    %v4031 = vsel %vm4030, %v4029, %v3538
    %vm4032 = vcmask 113664
    %v4033 = vsel %vm4032, %v4031, %v3542
    %vm4034 = vcmask 130048
    %v4035 = vsel %vm4034, %v4033, %v3546
    %vm4036 = vcmask 146432
    %v4037 = vsel %vm4036, %v4035, %v3550
    %vm4038 = vcmask 162816
    %v4039 = vsel %vm4038, %v4037, %v3554
    %vm4040 = vcmask 179200
    %v4041 = vsel %vm4040, %v4039, %v3558
    %vm4042 = vcmask 195584
    %v4043 = vsel %vm4042, %v4041, %v3562
    %vm4044 = vcmask 211968
    %v4045 = vsel %vm4044, %v4043, %v3566
    %vm4046 = vcmask 228352
    %v4047 = vsel %vm4046, %v4045, %v3570
    %vm4048 = vcmask 244736
    %v4049 = vsel %vm4048, %v4047, %v3574
    %vm4050 = vcmask 261120
    %v4051 = vsel %vm4050, %v4049, %v3578
    %vm4052 = vcmask 277504
    %v4053 = vsel %vm4052, %v4051, %v3582
    %vm4054 = vcmask 293888
    %v4055 = vsel %vm4054, %v4053, %v3586
    %vm4056 = vcmask 310272
    %v4057 = vsel %vm4056, %v4055, %v3590
    %vm4058 = vcmask 326656
    %v4059 = vsel %vm4058, %v4057, %v3594
    %vm4060 = vcmask 343040
    %v4061 = vsel %vm4060, %v4059, %v3598
    %vm4062 = vcmask 359424
    %v4063 = vsel %vm4062, %v4061, %v3602
    %vm4064 = vcmask 375808
    %v4065 = vsel %vm4064, %v4063, %v3606
    %vm4066 = vcmask 392192
    %v4067 = vsel %vm4066, %v4065, %v3610
    %vm4068 = vcmask 408576
    %v4069 = vsel %vm4068, %v4067, %v3614
    %vm4070 = vcmask 424960
    %v4071 = vsel %vm4070, %v4069, %v3618
    %vm4072 = vcmask 441344
    %v4073 = vsel %vm4072, %v4071, %v3622
    %vm4074 = vcmask 457728
    %v4075 = vsel %vm4074, %v4073, %v3626
    %vm4076 = vcmask 474112
    %v4077 = vsel %vm4076, %v4075, %v3630
    %vm4078 = vcmask 490496
    %v4079 = vsel %vm4078, %v4077, %v3634
    %vm4080 = vcmask 506880
    %v4081 = vsel %vm4080, %v4079, %v3638
    %vm4082 = vcmask 523264
    %v4083 = vsel %vm4082, %v4081, %v3642
    %vm4084 = vcmask 539648
    %v4085 = vsel %vm4084, %v4083, %v3646
    %vm4086 = vcmask 556032
    %v4087 = vsel %vm4086, %v4085, %v3650
    %vm4088 = vcmask 572416
    %v4089 = vsel %vm4088, %v4087, %v3654
    %vm4090 = vcmask 588800
    %v4091 = vsel %vm4090, %v4089, %v3658
    %vm4092 = vcmask 605184
    %v4093 = vsel %vm4092, %v4091, %v3662
    %vm4094 = vcmask 621568
    %v4095 = vsel %vm4094, %v4093, %v3666
    %vm4096 = vcmask 637952
    %v4097 = vsel %vm4096, %v4095, %v3670
    %vm4098 = vcmask 654336
    %v4099 = vsel %vm4098, %v4097, %v3674
    %vm4100 = vcmask 670720
    %v4101 = vsel %vm4100, %v4099, %v3678
    %vm4102 = vcmask 687104
    %v4103 = vsel %vm4102, %v4101, %v3682
    %vm4104 = vcmask 703488
    %v4105 = vsel %vm4104, %v4103, %v3686
    %vm4106 = vcmask 719872
    %v4107 = vsel %vm4106, %v4105, %v3690
    %vm4108 = vcmask 736256
    %v4109 = vsel %vm4108, %v4107, %v3694
    %vm4110 = vcmask 752640
    %v4111 = vsel %vm4110, %v4109, %v3698
    %vm4112 = vcmask 769024
    %v4113 = vsel %vm4112, %v4111, %v3702
    %vm4114 = vcmask 785408
    %v4115 = vsel %vm4114, %v4113, %v3706
    %vm4116 = vcmask 801792
    %v4117 = vsel %vm4116, %v4115, %v3710
    %vm4118 = vcmask 818176
    %v4119 = vsel %vm4118, %v4117, %v3714
    %vm4120 = vcmask 834560
    %v4121 = vsel %vm4120, %v4119, %v3718
    %vm4122 = vcmask 850944
    %v4123 = vsel %vm4122, %v4121, %v3722
    %vm4124 = vcmask 867328
    %v4125 = vsel %vm4124, %v4123, %v3726
    %vm4126 = vcmask 883712
    %v4127 = vsel %vm4126, %v4125, %v3730
    %vm4128 = vcmask 900096
    %v4129 = vsel %vm4128, %v4127, %v3734
    %vm4130 = vcmask 916480
    %v4131 = vsel %vm4130, %v4129, %v3738
    %vm4132 = vcmask 932864
    %v4133 = vsel %vm4132, %v4131, %v3742
    %vm4134 = vcmask 949248
    %v4135 = vsel %vm4134, %v4133, %v3746
    %vm4136 = vcmask 965632
    %v4137 = vsel %vm4136, %v4135, %v3750
    %vm4138 = vcmask 982016
    %v4139 = vsel %vm4138, %v4137, %v3754
    %vm4140 = vcmask 998400
    %v4141 = vsel %vm4140, %v4139, %v3758
    %vm4142 = vcmask 1014784
    %v4143 = vsel %vm4142, %v4141, %v3762
    %vm4144 = vcmask 1031168
    %v4145 = vsel %vm4144, %v4143, %v3766
    %v4146 = vsel %vm4020, %v2717, %v3770
    %v4147 = vsel %vm4022, %v4146, %v3774
    %v4148 = vsel %vm4024, %v4147, %v3778
    %v4149 = vsel %vm4026, %v4148, %v3782
    %v4150 = vsel %vm4028, %v4149, %v3786
    %v4151 = vsel %vm4030, %v4150, %v3790
    %v4152 = vsel %vm4032, %v4151, %v3794
    %v4153 = vsel %vm4034, %v4152, %v3798
    %v4154 = vsel %vm4036, %v4153, %v3802
    %v4155 = vsel %vm4038, %v4154, %v3806
    %v4156 = vsel %vm4040, %v4155, %v3810
    %v4157 = vsel %vm4042, %v4156, %v3814
    %v4158 = vsel %vm4044, %v4157, %v3818
    %v4159 = vsel %vm4046, %v4158, %v3822
    %v4160 = vsel %vm4048, %v4159, %v3826
    %v4161 = vsel %vm4050, %v4160, %v3830
    %v4162 = vsel %vm4052, %v4161, %v3834
    %v4163 = vsel %vm4054, %v4162, %v3838
    %v4164 = vsel %vm4056, %v4163, %v3842
    %v4165 = vsel %vm4058, %v4164, %v3846
    %v4166 = vsel %vm4060, %v4165, %v3850
    %v4167 = vsel %vm4062, %v4166, %v3854
    %v4168 = vsel %vm4064, %v4167, %v3858
    %v4169 = vsel %vm4066, %v4168, %v3862
    %v4170 = vsel %vm4068, %v4169, %v3866
    %v4171 = vsel %vm4070, %v4170, %v3870
    %v4172 = vsel %vm4072, %v4171, %v3874
    %v4173 = vsel %vm4074, %v4172, %v3878
    %v4174 = vsel %vm4076, %v4173, %v3882
    %v4175 = vsel %vm4078, %v4174, %v3886
    %v4176 = vsel %vm4080, %v4175, %v3890
    %v4177 = vsel %vm4082, %v4176, %v3894
    %v4178 = vsel %vm4084, %v4177, %v3898
    %v4179 = vsel %vm4086, %v4178, %v3902
    %v4180 = vsel %vm4088, %v4179, %v3906
    %v4181 = vsel %vm4090, %v4180, %v3910
    %v4182 = vsel %vm4092, %v4181, %v3914
    %v4183 = vsel %vm4094, %v4182, %v3918
    %v4184 = vsel %vm4096, %v4183, %v3922
    %v4185 = vsel %vm4098, %v4184, %v3926
    %v4186 = vsel %vm4100, %v4185, %v3930
    %v4187 = vsel %vm4102, %v4186, %v3934
    %v4188 = vsel %vm4104, %v4187, %v3938
    %v4189 = vsel %vm4106, %v4188, %v3942
    %v4190 = vsel %vm4108, %v4189, %v3946
    %v4191 = vsel %vm4110, %v4190, %v3950
    %v4192 = vsel %vm4112, %v4191, %v3954
    %v4193 = vsel %vm4114, %v4192, %v3958
    %v4194 = vsel %vm4116, %v4193, %v3962
    %v4195 = vsel %vm4118, %v4194, %v3966
    %v4196 = vsel %vm4120, %v4195, %v3970
    %v4197 = vsel %vm4122, %v4196, %v3974
    %v4198 = vsel %vm4124, %v4197, %v3978
    %v4199 = vsel %vm4126, %v4198, %v3982
    %v4200 = vsel %vm4128, %v4199, %v3986
    %v4201 = vsel %vm4130, %v4200, %v3990
    %v4202 = vsel %vm4132, %v4201, %v3994
    %v4203 = vsel %vm4134, %v4202, %v3998
    %v4204 = vsel %vm4136, %v4203, %v4002
    %v4205 = vsel %vm4138, %v4204, %v4006
    %v4206 = vsel %vm4140, %v4205, %v4010
    %v4207 = vsel %vm4142, %v4206, %v4014
    %v4208 = vsel %vm4144, %v4207, %v4018
    %4209 = vst [vmem:[#allocation7] sm:$0xff] %v4145
    %4210 = vst [vmem:[#allocation7 + $0x8] sm:$0xff] %v4208
    // Predicated region
    $region18: #{tpu_custom_call.1} parent=1 // pred_check
      _
    $region19: #{tpu_custom_call.1} parent=1 // pred_check_branch
      %4212 = sbr.rel (0) target = $region21
    $region20: #{tpu_custom_call.1} parent=1 // pred_region
      %4214 = vsyncadd [#allocation4], 0
      %s4216 = sshll.u32 [#allocation7], 4
      %s4217 = int_to_ptr.vmem [resolvable:$true] %s4216
      %s4218 = sshll.u32 %s2, 4
      %s4219 = int_to_ptr.hbm [resolvable:$true] %s4218
      %4221 = dma.vmem_to_hbm [thread:$0]  %s4217, 256, %s4219, [#allocation4]
    $region21: #{tpu_custom_call.1} parent=1 // pred_fallthru
      _
    // Predicated region
    $region22: #{tpu_custom_call.1} parent=1 // pred_check
      _
    $region23: #{tpu_custom_call.1} parent=1 // pred_check_branch
      %4223 = sbr.rel (0) target = $region25
    $region24: #{tpu_custom_call.1} parent=1 // pred_region
      %4225 = dma.done [#allocation4], 256
    $region25: #{tpu_custom_call.1} parent=1 // pred_fallthru
      _
    %4226 = vsyncpa [#allocation3], 1
    %4227 = vsyncpa [#allocation6], 1
    %4228 = vsyncpa [#allocation4], 1

// kernel: tpu_custom_call.1
$region0: #{tpu_custom_call.1}
  #allocation0 [shape = 'u32[]', space=smem, size = 0x4, offset = 0x4, fixed_abs, tag = 'smem constant byte address 0x4 - core index']
  #allocation1 [shape = 'u32[72,128]{1,0:T(1,128)}', space=vmem, size = 0x9000, scoped, tag = 'internal scratch']
  %s0 = inlined_call_operand.hbm [shape: f32[8,128], index: 0, kind: input, shape index: {}]
  %s1 = inlined_call_operand.hbm [shape: f32[8,128], index: 1, kind: output, shape index: {}]
  %s2 = sld [smem:[#allocation0]]
  $region18: #{tpu_custom_call.1} parent=0
    _
  %s4 = ssub.s32 1, %s2
  %s5 = scalar_select 0, %s4, %s2
  $region1: #{tpu_custom_call.1} parent=0
    #allocation2 [shape = 'u8[4096]{0}', space=vmem, size = 0x1000, scoped, tag = 'input window, operand 0, single buffered']
    #allocation3 [shape = 's32[1]{0}', space=sflag, size = 0x4, scoped, tag = 'scoped memory for tpu_custom_call.1']
    #allocation4 [shape = 's32[1]{0}', space=sflag, size = 0x4, scoped, tag = 'scoped memory for tpu_custom_call.1']
    #allocation5 [shape = 'u8[4096]{0}', space=vmem, size = 0x1000, scoped, tag = 'output window, operand 0, single buffered']
    %6 = vsyncpa [#allocation3], 0
    %7 = vsyncpa [#allocation4], 0
    // Predicated region
    $region2: #{tpu_custom_call.1} parent=1 // pred_check
      _
    $region3: #{tpu_custom_call.1} parent=1 // pred_check_branch
      %9 = sbr.rel (0) target = $region5
    $region4: #{tpu_custom_call.1} parent=1 // pred_region
      %11 = vsyncadd [#allocation3], 0
      %s13 = sshll.u32 %s0, 4
      %s14 = int_to_ptr.hbm [resolvable:$true] %s13
      %s15 = sshll.u32 [#allocation2], 4
      %s16 = int_to_ptr.vmem [resolvable:$true] %s15
      %18 = dma.hbm_to_vmem [thread:$0]  %s14, 128, %s16, [#allocation3]
    $region5: #{tpu_custom_call.1} parent=1 // pred_fallthru
      _
    // Predicated region
    $region6: #{tpu_custom_call.1} parent=1 // pred_check
      _
    $region7: #{tpu_custom_call.1} parent=1 // pred_check_branch
      %20 = sbr.rel (0) target = $region9
    $region8: #{tpu_custom_call.1} parent=1 // pred_region
      %22 = dma.done [#allocation3], 128
    $region9: #{tpu_custom_call.1} parent=1 // pred_fallthru
      _
    %v23 = vld [vmem:[#allocation2] sm:$0xff]
    %24 = vrot.lane.b32.xlu0 %v23, 1
    %v25 = vpop.permute.xlu0 %24
    %26 = vst [vmem:[#allocation5] sm:$0xff] %v25
    // Predicated region
    $region10: #{tpu_custom_call.1} parent=1 // pred_check
      _
    $region11: #{tpu_custom_call.1} parent=1 // pred_check_branch
      %28 = sbr.rel (0) target = $region13
    $region12: #{tpu_custom_call.1} parent=1 // pred_region
      %30 = vsyncadd [#allocation4], 0
      %s32 = sshll.u32 [#allocation5], 4
      %s33 = int_to_ptr.vmem [resolvable:$true] %s32
      %s34 = sshll.u32 %s1, 4
      %s35 = int_to_ptr.hbm [resolvable:$true] %s34
      %37 = dma.vmem_to_hbm [thread:$0]  %s33, 128, %s35, [#allocation4]
    $region13: #{tpu_custom_call.1} parent=1 // pred_fallthru
      _
    // Predicated region
    $region14: #{tpu_custom_call.1} parent=1 // pred_check
      _
    $region15: #{tpu_custom_call.1} parent=1 // pred_check_branch
      %39 = sbr.rel (0) target = $region17
    $region16: #{tpu_custom_call.1} parent=1 // pred_region
      %41 = dma.done [#allocation4], 128
    $region17: #{tpu_custom_call.1} parent=1 // pred_fallthru
      _
    %42 = vsyncpa [#allocation3], 1
    %43 = vsyncpa [#allocation4], 1

// kernel: tpu_custom_call.1
$region0: #{tpu_custom_call.1}
  #allocation0 [shape = 'u32[]', space=smem, size = 0x4, offset = 0x4, fixed_abs, tag = 'smem constant byte address 0x4 - core index']
  #allocation1 [shape = 'u32[72,128]{1,0:T(1,128)}', space=vmem, size = 0x9000, scoped, tag = 'internal scratch']
  %s0 = inlined_call_operand.hbm [shape: f32[2,4,18], index: 0, kind: input, shape index: {}]
  %s1 = inlined_call_operand.hbm [shape: f32[2,4,16], index: 1, kind: output, shape index: {0}]
  %s2 = inlined_call_operand.hbm [shape: f32[2,4,16], index: 2, kind: output, shape index: {1}]
  %3 = xla_tuple %s1, %s2
  %s4 = sld [smem:[#allocation0]]
  $region49: #{tpu_custom_call.1} parent=0
    _
  %s6 = ssub.s32 1, %s4
  %s7 = scalar_select 0, %s6, %s4
  $region1: #{tpu_custom_call.1} parent=0
    #allocation2 [shape = 'u8[4096]{0}', space=vmem, size = 0x1000, scoped, tag = 'input window, operand 0']
    #allocation3 [shape = 's32[2]{0}', space=sflag, size = 0x8, scoped, tag = 'scoped memory for tpu_custom_call.1']
    #allocation4 [shape = 's32[2]{0}', space=sflag, size = 0x8, scoped, tag = 'scoped memory for tpu_custom_call.1']
    #allocation5 [shape = 'u8[4096]{0}', space=vmem, size = 0x1000, scoped, tag = 'output window, operand 0']
    #allocation6 [shape = 'u8[4096]{0}', space=vmem, size = 0x1000, scoped, tag = 'output window, operand 1']
    #allocation7 [shape = 's32[2]{0}', space=sflag, size = 0x8, scoped, tag = 'scoped memory for tpu_custom_call.1']
    %8 = vsyncpa [#allocation3], 0
    %s9 = scalar_lea.sflag [#allocation3], 1
    %10 = vsyncpa %s9, 0
    %11 = vsyncpa [#allocation4], 0
    %s12 = scalar_lea.sflag [#allocation4], 1
    %13 = vsyncpa %s12, 0
    %14 = vsyncpa [#allocation7], 0
    %s15 = scalar_lea.sflag [#allocation7], 1
    %16 = vsyncpa %s15, 0
    loop: start=0, step=1, limit=4
    $region2: #{tpu_custom_call.1} parent=1 // loop_pre_header
      _
    $region3: #{tpu_custom_call.1} parent=1 // loop_header
      %s18 = sphi 0, %s22
      %p19 = scmp.ge.s32.totalorder %s18, 4
      %s28 = sphi 0, %s30
      %s31 = sphi 0, %s28
      %s32 = sphi 0, %s31
      %s48 = sphi 0, %s32
      %s54 = sphi 0, %s56
      %s57 = sphi 0, %s54
      %s58 = sphi 0, %s57
      %s74 = sphi 0, %s58
      %s80 = sphi 0, %s82
      %s83 = sphi 0, %s80
      %s84 = sphi 0, %s83
      %s100 = sphi 0, %s84
    $region4: #{tpu_custom_call.1} parent=1 // loop_header_branch
      %21 = sbr.rel (%p19) target = $region8
    $region5: #{tpu_custom_call.1} parent=1 // loop_body
      %s23 = ssub.s32 %s18, 1
      %s24 = ssub.s32 %s18, 2
      %s25 = sadd.s32 %s18, 1
      %s26 = ssub.s32 %s18, %s25
      %p27 = scmp.eq.s32.totalorder %s26, 0
      %s29 = sadd.s32 %s28, 1
      %s30 = scalar_select %p27, %s28, %s29
      %p33 = pneg %p27
      %p34 = scmp.eq.s32.totalorder %s18, 1
      %p35 = por %p33, %p34
      %p36 = scmp.ne.s32.totalorder %s28, %s31
      %p37 = scmp.eq.s32.totalorder %s18, 0
      %p38 = por %p36, %p37
      %p39 = scmp.ne.s32.totalorder %s28, %s31
      %p40 = scmp.eq.s32.totalorder %s23, 1
      %p41 = por %p39, %p40
      %p42 = scmp.ne.s32.totalorder %s31, %s32
      %p43 = scmp.eq.s32.totalorder %s23, 0
      %p44 = por %p42, %p43
      %p45 = scmp.ne.s32.totalorder %s31, %s32
      %p46 = scmp.eq.s32.totalorder %s24, 1
      %p47 = por %p45, %p46
      %p49 = scmp.ne.s32.totalorder %s32, %s48
      %p50 = scmp.eq.s32.totalorder %s24, 0
      %p51 = por %p49, %p50
      %s52 = ssub.s32 %s18, %s25
      %p53 = scmp.eq.s32.totalorder %s52, 0
      %s55 = sadd.s32 %s54, 1
      %s56 = scalar_select %p53, %s54, %s55
      %p59 = pneg %p53
      %p60 = scmp.eq.s32.totalorder %s18, 1
      %p61 = por %p59, %p60
      %p62 = scmp.ne.s32.totalorder %s54, %s57
      %p63 = scmp.eq.s32.totalorder %s18, 0
      %p64 = por %p62, %p63
      %p65 = scmp.ne.s32.totalorder %s54, %s57
      %p66 = scmp.eq.s32.totalorder %s23, 1
      %p67 = por %p65, %p66
      %p68 = scmp.ne.s32.totalorder %s57, %s58
      %p69 = scmp.eq.s32.totalorder %s23, 0
      %p70 = por %p68, %p69
      %p71 = scmp.ne.s32.totalorder %s57, %s58
      %p72 = scmp.eq.s32.totalorder %s24, 1
      %p73 = por %p71, %p72
      %p75 = scmp.ne.s32.totalorder %s58, %s74
      %p76 = scmp.eq.s32.totalorder %s24, 0
      %p77 = por %p75, %p76
      %s78 = ssub.s32 %s18, %s25
      %p79 = scmp.eq.s32.totalorder %s78, 0
      %s81 = sadd.s32 %s80, 1
      %s82 = scalar_select %p79, %s80, %s81
      %p85 = pneg %p79
      %p86 = scmp.eq.s32.totalorder %s18, 1
      %p87 = por %p85, %p86
      %p88 = scmp.ne.s32.totalorder %s80, %s83
      %p89 = scmp.eq.s32.totalorder %s18, 0
      %p90 = por %p88, %p89
      %p91 = scmp.ne.s32.totalorder %s80, %s83
      %p92 = scmp.eq.s32.totalorder %s23, 1
      %p93 = por %p91, %p92
      %p94 = scmp.ne.s32.totalorder %s83, %s84
      %p95 = scmp.eq.s32.totalorder %s23, 0
      %p96 = por %p94, %p95
      %p97 = scmp.ne.s32.totalorder %s83, %s84
      %p98 = scmp.eq.s32.totalorder %s24, 1
      %p99 = por %p97, %p98
      %p101 = scmp.ne.s32.totalorder %s84, %s100
      %p102 = scmp.eq.s32.totalorder %s24, 0
      %p103 = por %p101, %p102
      %p104 = scmp.le.s32.totalorder 1, %s18
      %p105 = scmp.lt.s32.totalorder %s18, 3
      %p106 = pnand %p104, %p105
      %p107 = pneg %p106
      // Predicated region
      $region9: #{tpu_custom_call.1} parent=5 // pred_check
        _
      $region10: #{tpu_custom_call.1} parent=5 // pred_check_branch
        %109 = sbr.rel (%p106) target = $region12
      $region11: #{tpu_custom_call.1} parent=5 // pred_region
        %s110 = ssub.s32 %s18, 1
      $region12: #{tpu_custom_call.1} parent=5 // pred_fallthru
        _
      %p111 = scmp.lt.s32.totalorder %s18, 2
      // Predicated region
      $region13: #{tpu_custom_call.1} parent=5 // pred_check
        %p112 = pneg %p111
      $region14: #{tpu_custom_call.1} parent=5 // pred_check_branch
        %114 = sbr.rel (%p112) target = $region16
      $region15: #{tpu_custom_call.1} parent=5 // pred_region
        // Predicated region
        $region17: #{tpu_custom_call.1} parent=15 // pred_check
          %p115 = pneg %p38
        $region18: #{tpu_custom_call.1} parent=15 // pred_check_branch
          %117 = sbr.rel (%p115) target = $region20
        $region19: #{tpu_custom_call.1} parent=15 // pred_region
          %s118 = sand.u32 %s28, 1
          %s119 = scalar_lea.sflag [#allocation3], %s118
          %s120 = sand.u32 %s28, 1
          %s121 = smul.addr %s120, 4
          %s122 = scalar_lea.vmem [#allocation2], %s121
          %124 = vsyncadd %s119, 0
          %s125 = smul.addr %s18, 4
          %s126 = scalar_lea.hbm %s0, %s125
          %s128 = sshll.u32 %s126, 4
          %s129 = int_to_ptr.hbm [resolvable:$true] %s128
          %s130 = sshll.u32 %s122, 4
          %s131 = int_to_ptr.vmem [resolvable:$true] %s130
          %133 = dma.hbm_to_vmem [thread:$0]  %s129, 64, %s131, %s119
        $region20: #{tpu_custom_call.1} parent=15 // pred_fallthru
          _
      $region16: #{tpu_custom_call.1} parent=5 // pred_fallthru
        _
      %p134 = scmp.le.s32.totalorder 1, %s18
      %p135 = scmp.lt.s32.totalorder %s18, 3
      %p136 = pnand %p134, %p135
      %p137 = pneg %p136
      // Predicated region
      $region21: #{tpu_custom_call.1} parent=5 // pred_check
        _
      $region22: #{tpu_custom_call.1} parent=5 // pred_check_branch
        %139 = sbr.rel (%p136) target = $region24
      $region23: #{tpu_custom_call.1} parent=5 // pred_region
        %s140 = ssub.s32 %s18, 1
        %s141 = sand.u32 %s31, 1
        %s142 = scalar_lea.sflag [#allocation3], %s141
        %s143 = sand.u32 %s31, 1
        %s144 = smul.addr %s143, 4
        %s145 = scalar_lea.vmem [#allocation2], %s144
        // Predicated region
        $region25: #{tpu_custom_call.1} parent=23 // pred_check
          %p146 = pneg %p44
        $region26: #{tpu_custom_call.1} parent=23 // pred_check_branch
          %148 = sbr.rel (%p146) target = $region28
        $region27: #{tpu_custom_call.1} parent=23 // pred_region
          %150 = dma.done %s142, 64
        $region28: #{tpu_custom_call.1} parent=23 // pred_fallthru
          _
        %s151 = sand.u32 %s31, 1
        %s152 = scalar_lea.sflag [#allocation3], %s151
        %s153 = sand.u32 %s31, 1
        %s154 = smul.addr %s153, 4
        %s155 = scalar_lea.vmem [#allocation2], %s154
        %p156 = pneg %p44
        %p157 = pneg %p41
        %p158 = pneg %p70
        %p159 = pneg %p67
        %s160 = sand.u32 %s57, 1
        %s161 = scalar_lea.sflag [#allocation4], %s160
        %s162 = sand.u32 %s57, 1
        %s163 = smul.addr %s162, 4
        %s164 = scalar_lea.vmem [#allocation5], %s163
        %p165 = pneg %p96
        %p166 = pneg %p93
        %s167 = sand.u32 %s83, 1
        %s168 = scalar_lea.sflag [#allocation7], %s167
        %s169 = sand.u32 %s83, 1
        %s170 = smul.addr %s169, 4
        %s171 = scalar_lea.vmem [#allocation6], %s170
        %v172 = vld [vmem:[%s145] sm:$0xf]
        %v173 = vmul.f32 %v172, 0.25
        %v174 = vadd.f32 %v173, 0.0
        %v175 = vmul.f32 %v172, 0.75
        %v176 = vadd.f32 %v175, 0.0
        %178 = vrot.lane.b32.xlu0 %v175, 1
        %v179 = vpop.permute.xlu0 %178
        %v181 = vadd.f32 %v174, %v179
        %183 = vrot.lane.b32.xlu0 %v173, 1
        %v184 = vpop.permute.xlu0 %183
        %v186 = vadd.f32 %v176, %v184
        %188 = vrot.lane.b32.xlu0 %v186, 127
        %v189 = vpop.permute.xlu0 %188
        %vm191 = vcmask 125952
        %192 = vst.msk [vmem:[%s164] sm:$0xf] %vm191, %v189
        %194 = vrot.lane.b32.xlu0 %v181, 126
        %v195 = vpop.permute.xlu0 %194
        %197 = vst.msk [vmem:[%s171] sm:$0xf] %vm191, %v195
        %s198 = sand.u32 %s57, 1
        %s199 = scalar_lea.sflag [#allocation4], %s198
        %s200 = sand.u32 %s57, 1
        %s201 = smul.addr %s200, 4
        %s202 = scalar_lea.vmem [#allocation5], %s201
        %s203 = sand.u32 %s83, 1
        %s204 = scalar_lea.sflag [#allocation7], %s203
        %s205 = sand.u32 %s83, 1
        %s206 = smul.addr %s205, 4
        %s207 = scalar_lea.vmem [#allocation6], %s206
        // Predicated region
        $region29: #{tpu_custom_call.1} parent=23 // pred_check
          %p208 = pneg %p67
        $region30: #{tpu_custom_call.1} parent=23 // pred_check_branch
          %210 = sbr.rel (%p208) target = $region32
        $region31: #{tpu_custom_call.1} parent=23 // pred_region
          %212 = vsyncadd %s199, 0
          %s213 = smul.addr %s23, 4
          %s214 = scalar_lea.hbm %s1, %s213
          %s216 = sshll.u32 %s202, 4
          %s217 = int_to_ptr.vmem [resolvable:$true] %s216
          %s218 = sshll.u32 %s214, 4
          %s219 = int_to_ptr.hbm [resolvable:$true] %s218
          %221 = dma.vmem_to_hbm [thread:$0]  %s217, 64, %s219, %s199
        $region32: #{tpu_custom_call.1} parent=23 // pred_fallthru
          _
        // Predicated region
        $region33: #{tpu_custom_call.1} parent=23 // pred_check
          %p222 = pneg %p93
        $region34: #{tpu_custom_call.1} parent=23 // pred_check_branch
          %224 = sbr.rel (%p222) target = $region36
        $region35: #{tpu_custom_call.1} parent=23 // pred_region
          %226 = vsyncadd %s204, 0
          %s227 = smul.addr %s23, 4
          %s228 = scalar_lea.hbm %s2, %s227
          %s230 = sshll.u32 %s207, 4
          %s231 = int_to_ptr.vmem [resolvable:$true] %s230
          %s232 = sshll.u32 %s228, 4
          %s233 = int_to_ptr.hbm [resolvable:$true] %s232
          %235 = dma.vmem_to_hbm [thread:$0]  %s231, 64, %s233, %s204
        $region36: #{tpu_custom_call.1} parent=23 // pred_fallthru
          _
      $region24: #{tpu_custom_call.1} parent=5 // pred_fallthru
        _
      %p236 = scmp.le.s32.totalorder 2, %s18
      // Predicated region
      $region37: #{tpu_custom_call.1} parent=5 // pred_check
        %p237 = pneg %p236
      $region38: #{tpu_custom_call.1} parent=5 // pred_check_branch
        %239 = sbr.rel (%p237) target = $region40
      $region39: #{tpu_custom_call.1} parent=5 // pred_region
        %s240 = ssub.s32 %s18, 2
        // Predicated region
        $region41: #{tpu_custom_call.1} parent=39 // pred_check
          %p241 = pneg %p73
        $region42: #{tpu_custom_call.1} parent=39 // pred_check_branch
          %243 = sbr.rel (%p241) target = $region44
        $region43: #{tpu_custom_call.1} parent=39 // pred_region
          %s244 = sand.u32 %s58, 1
          %s245 = scalar_lea.sflag [#allocation4], %s244
          %s246 = sand.u32 %s58, 1
          %s247 = smul.addr %s246, 4
          %s248 = scalar_lea.vmem [#allocation5], %s247
          %250 = dma.done %s245, 64
        $region44: #{tpu_custom_call.1} parent=39 // pred_fallthru
          _
        // Predicated region
        $region45: #{tpu_custom_call.1} parent=39 // pred_check
          %p251 = pneg %p99
        $region46: #{tpu_custom_call.1} parent=39 // pred_check_branch
          %253 = sbr.rel (%p251) target = $region48
        $region47: #{tpu_custom_call.1} parent=39 // pred_region
          %s254 = sand.u32 %s84, 1
          %s255 = scalar_lea.sflag [#allocation7], %s254
          %s256 = sand.u32 %s84, 1
          %s257 = smul.addr %s256, 4
          %s258 = scalar_lea.vmem [#allocation6], %s257
          %260 = dma.done %s255, 64
        $region48: #{tpu_custom_call.1} parent=39 // pred_fallthru
          _
      $region40: #{tpu_custom_call.1} parent=5 // pred_fallthru
        _
    $region6: #{tpu_custom_call.1} parent=1 // loop_footer
      %s22 = sadd.s32 1, %s18
    $region7: #{tpu_custom_call.1} parent=1 // loop_footer_branch
      %17 = sbr.rel target = $region3
    $region8: #{tpu_custom_call.1} parent=1 // loop_exit
      _
    %261 = vsyncpa [#allocation3], 1
    %s262 = scalar_lea.sflag [#allocation3], 1
    %263 = vsyncpa %s262, 1
    %264 = vsyncpa [#allocation4], 1
    %s265 = scalar_lea.sflag [#allocation4], 1
    %266 = vsyncpa %s265, 1
    %267 = vsyncpa [#allocation7], 1
    %s268 = scalar_lea.sflag [#allocation7], 1
    %269 = vsyncpa %s268, 1

</llo_original>
